<compile_context>
chip_gen: v6e
topology: v6e:2x2x1
jax: 0.10.0
libtpu: 0.0.40
codegen_flags: <defaults>
</compile_context>

<pallas_src>
import numpy as np
import jax
import jax.numpy as jnp
from jax.experimental import pallas as pl
from jax.experimental.pallas import tpu as pltpu


# ----------------------------------------------------------------------------
# helpers
# ----------------------------------------------------------------------------
def _sigmoid(x):
    return 1.0 / (1.0 + jnp.exp(-x))


def _round_up(x, m):
    return (x + m - 1) // m * m


# ----------------------------------------------------------------------------
# Kernel 1: tiled linear  y = x @ w + b   (used for all hoisted matmuls)
# ----------------------------------------------------------------------------
def _linear_kernel(x_ref, w_ref, b_ref, o_ref, acc_ref):
    k = pl.program_id(2)

    @pl.when(k == 0)
    def _():
        acc_ref[...] = jnp.zeros_like(acc_ref)

    acc_ref[...] += jnp.dot(x_ref[...], w_ref[...],
                            preferred_element_type=jnp.float32)

    @pl.when(k == pl.num_programs(2) - 1)
    def _():
        o_ref[...] = (acc_ref[...] + b_ref[...]).astype(o_ref.dtype)


def pallas_linear(x, w, b, *, tm_max=256, tk_max=512, tn_max=512):
    """x: (M, K) f32, w: (K, N) f32, b: (N,) f32  ->  (M, N) f32."""
    M, K = x.shape
    Kw, N = w.shape
    assert K == Kw, (K, Kw)
    x = x.astype(jnp.float32)
    w = w.astype(jnp.float32)
    b = b.reshape(1, N).astype(jnp.float32)

    def plan(dim, cap, align):
        # tile bounded by `cap`; pad the dim to a tile multiple (no giant tiles)
        if dim <= cap:
            t = _round_up(dim, align)
            return t, t
        return cap, _round_up(dim, cap)

    tm, Mp = plan(M, tm_max, 8)
    tk, Kp = plan(K, tk_max, 128)
    tn, Np = plan(N, tn_max, 128)

    if Mp != M or Kp != K:
        x = jnp.pad(x, ((0, Mp - M), (0, Kp - K)))
    if Kp != K or Np != N:
        w = jnp.pad(w, ((0, Kp - K), (0, Np - N)))
    if Np != N:
        b = jnp.pad(b, ((0, 0), (0, Np - N)))

    out = pl.pallas_call(
        _linear_kernel,
        out_shape=jax.ShapeDtypeStruct((Mp, Np), jnp.float32),
        grid_spec=pltpu.PrefetchScalarGridSpec(
            num_scalar_prefetch=0,
            grid=(Mp // tm, Np // tn, Kp // tk),
            in_specs=[
                pl.BlockSpec((tm, tk), lambda i, j, k: (i, k)),
                pl.BlockSpec((tk, tn), lambda i, j, k: (k, j)),
                pl.BlockSpec((1, tn), lambda i, j, k: (0, j)),
            ],
            out_specs=pl.BlockSpec((tm, tn), lambda i, j, k: (i, j)),
            scratch_shapes=[pltpu.VMEM((tm, tn), jnp.float32)],
        ),
        compiler_params=pltpu.CompilerParams(
            dimension_semantics=("parallel", "parallel", "arbitrary")),
    )(x, w, b)

    if Mp != M or Np != N:
        out = out[:M, :N]
    return out


# ----------------------------------------------------------------------------
# Kernel 2: fused recurrent decode loop — grid over timesteps
#   attention (decoder_att matmul, relu, score, softmax, MXU-contraction awe)
#   + sigmoid gate (f_beta) + LSTMCell, with h/c carried in VMEM scratch and
#   the "still decoding" mask applied in-kernel.
# ----------------------------------------------------------------------------
def _fused_decode_kernel(dl_ref, att1_ref, enc_ref, embih_ref, h0_ref, c0_ref,
                         wdec_ref, bdec_ref, wfull_ref, bfull_ref,
                         wfb_ref, bfb_ref, wiha_ref, whh_ref,
                         h_all_ref, alpha_ref,
                         h_s, c_s):
    t = pl.program_id(0)

    @pl.when(t == 0)
    def _():
        h_s[...] = h0_ref[...]
        c_s[...] = c0_ref[...]

    h = h_s[...]                                                       # (B, D)
    c = c_s[...]

    # --- soft attention ---
    att2 = jnp.dot(h, wdec_ref[...],
                   preferred_element_type=jnp.float32) + bdec_ref[...]  # (B, A)
    pre = jnp.maximum(att1_ref[...] + att2[:, None, :], 0.0)            # (B, P, A)
    scores = jnp.sum(pre * wfull_ref[...], axis=-1) + bfull_ref[...]    # (B, P)
    m = jnp.max(scores, axis=-1, keepdims=True)
    e = jnp.exp(scores - m)
    alpha = e / jnp.sum(e, axis=-1, keepdims=True)                      # (B, P)
    # attention-weighted encoding on the MXU (batched contraction over pixels)
    awe = jnp.einsum('bqp,bpe->bqe', alpha[:, None, :], enc_ref[...],
                     preferred_element_type=jnp.float32)[:, 0, :]       # (B, E)

    # --- gated context + LSTMCell (emb @ W_ih half precomputed outside) ---
    gate = _sigmoid(jnp.dot(h, wfb_ref[...],
                            preferred_element_type=jnp.float32) + bfb_ref[...])
    awe = gate * awe
    gates = (embih_ref[0]
             + jnp.dot(awe, wiha_ref[...], preferred_element_type=jnp.float32)
             + jnp.dot(h, whh_ref[...], preferred_element_type=jnp.float32))
    D = h.shape[-1]
    i_g = _sigmoid(gates[:, 0 * D:1 * D])
    f_g = _sigmoid(gates[:, 1 * D:2 * D])
    g_g = jnp.tanh(gates[:, 2 * D:3 * D])
    o_g = _sigmoid(gates[:, 3 * D:4 * D])
    c_new = f_g * c + i_g * g_g
    h_new = o_g * jnp.tanh(c_new)

    # rows still being decoded at this step update; finished rows freeze h/c
    mask = dl_ref[...] > t                                               # (B, 1)
    h_s[...] = jnp.where(mask, h_new, h)
    c_s[...] = jnp.where(mask, c_new, c)
    h_all_ref[0] = h_new                      # fc + masking happen after the loop
    alpha_ref[0] = jnp.where(mask, alpha, 0.0)


def fused_decode_loop(dl, att1, enc, emb_ih_t, h0, c0,
                      wdec, bdec, wfull, bfull, wfb, bfb, wiha, whh):
    T = emb_ih_t.shape[0]
    B, P, A = att1.shape
    E = enc.shape[-1]
    D = h0.shape[-1]

    const2 = lambda t: (0, 0)
    const3 = lambda t: (0, 0, 0)
    step3 = lambda t: (t, 0, 0)

    in_specs = [
        pl.BlockSpec((B, 1), const2),            # decode_lengths (int32)
        pl.BlockSpec((B, P, A), const3),         # att1 (loop-invariant)
        pl.BlockSpec((B, P, E), const3),         # enc  (loop-invariant)
        pl.BlockSpec((1, B, 4 * D), step3),      # emb @ W_ih_e + b (per step)
        pl.BlockSpec((B, D), const2),            # h0
        pl.BlockSpec((B, D), const2),            # c0
        pl.BlockSpec((D, A), const2),            # W_dec_att
        pl.BlockSpec((1, A), const2),            # b_dec_att
        pl.BlockSpec((1, A), const2),            # w_full
        pl.BlockSpec((1, 1), const2),            # b_full
        pl.BlockSpec((D, E), const2),            # W_f_beta
        pl.BlockSpec((1, E), const2),            # b_f_beta
        pl.BlockSpec((E, 4 * D), const2),        # W_ih (awe half)
        pl.BlockSpec((D, 4 * D), const2),        # W_hh
    ]
    out_specs = [
        pl.BlockSpec((1, B, D), step3),          # h_new per step (time-major)
        pl.BlockSpec((1, B, P), step3),          # alpha per step (time-major)
    ]
    return pl.pallas_call(
        _fused_decode_kernel,
        out_shape=(jax.ShapeDtypeStruct((T, B, D), jnp.float32),
                   jax.ShapeDtypeStruct((T, B, P), jnp.float32)),
        grid_spec=pltpu.PrefetchScalarGridSpec(
            num_scalar_prefetch=0,
            grid=(T,),
            in_specs=in_specs,
            out_specs=out_specs,
            scratch_shapes=[pltpu.VMEM((B, D), jnp.float32),
                            pltpu.VMEM((B, D), jnp.float32)],
        ),
        compiler_params=pltpu.CompilerParams(
            dimension_semantics=("arbitrary",)),
    )(dl, att1, enc, emb_ih_t, h0, c0,
      wdec, bdec, wfull, bfull, wfb, bfb, wiha, whh)


# ----------------------------------------------------------------------------
# Forward pass (Pallas path) — fully jittable (static trip count, no host sync)
# ----------------------------------------------------------------------------
def decoder_forward(params, encoder_out, encoded_captions, caption_lengths):
    B = encoder_out.shape[0]
    E = encoder_out.shape[-1]
    enc = encoder_out.reshape(B, -1, E).astype(jnp.float32)
    P = enc.shape[1]
    A = params['W_enc_att'].shape[1]
    Emb = params['embedding'].shape[1]
    D = params['W_init_h'].shape[1]
    L = encoded_captions.shape[1]
    # static trip count; per-row masking handles shorter captions.  (PyTorch
    # truncates to max(decode_lengths); identical whenever any caption is full
    # length, as in this demo.)
    T = L - 1

    # sort by caption length (descending) — matches the PyTorch forward
    cap_len = caption_lengths.reshape(-1)
    sort_ind = jnp.argsort(-cap_len)
    cap_len = cap_len[sort_ind]
    enc = enc[sort_ind]
    caps = encoded_captions[sort_ind]
    decode_lengths = cap_len - 1

    # embedding gather stays in XLA (pure gather, negligible compute)
    emb = jnp.take(params['embedding'], caps, axis=0)                # (B, L, Emb)

    # init_hidden_state — init_h and init_c fused into one matmul
    mean_enc = jnp.mean(enc, axis=1)
    w_init = jnp.concatenate([params['W_init_h'], params['W_init_c']], axis=1)
    b_init = jnp.concatenate([params['b_init_h'], params['b_init_c']], axis=0)
    hc0 = pallas_linear(mean_enc, w_init, b_init)
    h0, c0 = hc0[:, :D], hc0[:, D:]

    # hoisted, h-independent encoder_att projection over all B*P pixel rows
    att1 = pallas_linear(enc.reshape(B * P, E),
                         params['W_enc_att'], params['b_enc_att']).reshape(B, P, A)

    # hoisted embedding half of the LSTM input: emb @ W_ih[:Emb] + (b_ih + b_hh)
    wih_e = params['W_ih'][:Emb]
    wih_a = params['W_ih'][Emb:]
    blstm = params['b_ih'] + params['b_hh']
    emb_t = jnp.transpose(emb[:, :T, :], (1, 0, 2))                  # (T, B, Emb)
    emb_ih_t = pallas_linear(emb_t.reshape(T * B, Emb), wih_e,
                             blstm).reshape(T, B, 4 * D)

    # fused recurrent loop over timesteps
    dl_2d = decode_lengths.reshape(B, 1).astype(jnp.int32)
    h_all, alphas_t = fused_decode_loop(
        dl_2d, att1, enc, emb_ih_t, h0, c0,
        params['W_dec_att'], params['b_dec_att'].reshape(1, A),
        params['w_full'].reshape(1, A),
        jnp.reshape(params['b_full'], (1, 1)).astype(jnp.float32),
        params['W_f_beta'], params['b_f_beta'].reshape(1, E),
        wih_a, params['W_hh'])

    # hoisted vocab projection: one (T*B, D) @ (D, V) matmul, W_fc loaded once
    # (dropout before fc == identity, eval mode)
    preds = pallas_linear(h_all.reshape(T * B, D), params['W_fc'], params['b_fc'])
    preds = jnp.transpose(preds.reshape(T, B, -1), (1, 0, 2))        # (B, T, V)
    alphas = jnp.transpose(alphas_t, (1, 0, 2))                      # (B, T, P)

    mask_bt = decode_lengths[:, None] > jnp.arange(T)[None, :]
    preds = jnp.where(mask_bt[:, :, None], preds, 0.0)
    return preds, caps, decode_lengths, alphas, sort_ind


decoder_forward_jit = jax.jit(decoder_forward)


# ----------------------------------------------------------------------------
# Pure-JAX reference (mirrors the PyTorch module math exactly)
# ----------------------------------------------------------------------------
def reference_forward(p, encoder_out, encoded_captions, caption_lengths):
    B = encoder_out.shape[0]
    E = encoder_out.shape[-1]
    enc = encoder_out.reshape(B, -1, E).astype(jnp.float32)
    cl = caption_lengths.reshape(-1)
    sort_ind = jnp.argsort(-cl)
    cl = cl[sort_ind]
    enc = enc[sort_ind]
    caps = encoded_captions[sort_ind]
    dec_len = cl - 1
    T = encoded_captions.shape[1] - 1
    emb = p['embedding'][caps]
    mean_enc = enc.mean(axis=1)
    h = mean_enc @ p['W_init_h'] + p['b_init_h']
    c = mean_enc @ p['W_init_c'] + p['b_init_c']
    att1 = enc @ p['W_enc_att'] + p['b_enc_att']
    D = h.shape[-1]
    preds_all, alphas_all = [], []
    for t in range(T):
        att2 = h @ p['W_dec_att'] + p['b_dec_att']
        scores = (jnp.maximum(att1 + att2[:, None, :], 0.0) @ p['w_full'])[..., 0] \
            + p['b_full']
        alpha = jax.nn.softmax(scores, axis=1)
        awe = (enc * alpha[:, :, None]).sum(axis=1)
        gate = _sigmoid(h @ p['W_f_beta'] + p['b_f_beta'])
        x = jnp.concatenate([emb[:, t, :], gate * awe], axis=1)
        gates = x @ p['W_ih'] + p['b_ih'] + h @ p['W_hh'] + p['b_hh']
        i_g = _sigmoid(gates[:, :D])
        f_g = _sigmoid(gates[:, D:2 * D])
        g_g = jnp.tanh(gates[:, 2 * D:3 * D])
        o_g = _sigmoid(gates[:, 3 * D:4 * D])
        c_new = f_g * c + i_g * g_g
        h_new = o_g * jnp.tanh(c_new)
        preds = h_new @ p['W_fc'] + p['b_fc']
        mask = dec_len > t
        h = jnp.where(mask[:, None], h_new, h)
        c = jnp.where(mask[:, None], c_new, c)
        preds_all.append(jnp.where(mask[:, None], preds, 0.0))
        alphas_all.append(jnp.where(mask[:, None], alpha, 0.0))
    return (jnp.stack(preds_all, 1), caps, dec_len,
            jnp.stack(alphas_all, 1), sort_ind)


# ----------------------------------------------------------------------------
# Deterministic parameter init (weights stored as (in_features, out_features))
# ----------------------------------------------------------------------------
def init_params(key, *, encoder_dim, attention_dim, embed_dim, decoder_dim,
                vocab_size):
    keys = iter(jax.random.split(key, 24))

    def linear(fan_in, fan_out):
        bound = 1.0 / np.sqrt(fan_in)
        w = jax.random.uniform(next(keys), (fan_in, fan_out), jnp.float32,
                               -bound, bound)
        b = jax.random.uniform(next(keys), (fan_out,), jnp.float32, -bound, bound)
        return w, b

    p = {}
    p['W_enc_att'], p['b_enc_att'] = linear(encoder_dim, attention_dim)
    p['W_dec_att'], p['b_dec_att'] = linear(decoder_dim, attention_dim)
    wf, bf = linear(attention_dim, 1)
    p['w_full'] = wf                     # (A, 1)
    p['b_full'] = bf[0]                  # scalar
    p['embedding'] = jax.random.uniform(next(keys), (vocab_size, embed_dim),
                                        jnp.float32, -0.1, 0.1)
    p['W_init_h'], p['b_init_h'] = linear(encoder_dim, decoder_dim)
    p['W_init_c'], p['b_init_c'] = linear(encoder_dim, decoder_dim)
    p['W_f_beta'], p['b_f_beta'] = linear(decoder_dim, encoder_dim)
    in_dim = embed_dim + encoder_dim
    bound = 1.0 / np.sqrt(decoder_dim)
    p['W_ih'] = jax.random.uniform(next(keys), (in_dim, 4 * decoder_dim),
                                   jnp.float32, -bound, bound)
    p['W_hh'] = jax.random.uniform(next(keys), (decoder_dim, 4 * decoder_dim),
                                   jnp.float32, -bound, bound)
    p['b_ih'] = jax.random.uniform(next(keys), (4 * decoder_dim,), jnp.float32,
                                   -bound, bound)
    p['b_hh'] = jax.random.uniform(next(keys), (4 * decoder_dim,), jnp.float32,
                                   -bound, bound)
    # fc follows init_weights(): uniform(-0.1, 0.1) weight, zero bias
    p['W_fc'] = jax.random.uniform(next(keys), (decoder_dim, vocab_size),
                                   jnp.float32, -0.1, 0.1)
    p['b_fc'] = jnp.zeros((vocab_size,), jnp.float32)
    return p


# ----------------------------------------------------------------------------
if __name__ == "__main__":
    key = jax.random.PRNGKey(0)

    # small shapes, lane dims chosen as multiples of 128
    B = 2
    enc_image_size = 4          # -> num_pixels = 16
    encoder_dim = 256
    attention_dim = 128
    embed_dim = 128
    decoder_dim = 256
    vocab_size = 512
    max_cap_len = 8

    k_par, k_enc, k_cap = jax.random.split(key, 3)
    params = init_params(k_par, encoder_dim=encoder_dim,
                         attention_dim=attention_dim, embed_dim=embed_dim,
                         decoder_dim=decoder_dim, vocab_size=vocab_size)

    encoder_out = jax.random.normal(
        k_enc, (B, enc_image_size, enc_image_size, encoder_dim), jnp.float32)
    encoded_captions = jax.random.randint(k_cap, (B, max_cap_len), 0, vocab_size)
    caption_lengths = jnp.array([[6], [8]], dtype=jnp.int32)

    preds, caps_s, dec_len, alphas, sort_ind = decoder_forward_jit(
        params, encoder_out, encoded_captions, caption_lengths)
    preds = jax.block_until_ready(preds)
    alphas = jax.block_until_ready(alphas)

    # pure-JAX reference (accurate f32 matmuls)
    with jax.default_matmul_precision("highest"):
        r_preds, r_caps, r_dec_len, r_alphas, r_sort = reference_forward(
            params, encoder_out, encoded_captions, caption_lengths)

    T = max_cap_len - 1
    assert preds.shape == (B, T, vocab_size), preds.shape
    assert alphas.shape == (B, T, enc_image_size * enc_image_size), alphas.shape
    assert jnp.array_equal(sort_ind, r_sort)
    assert jnp.array_equal(caps_s, r_caps)
    assert jnp.array_equal(dec_len, r_dec_len)
    assert jnp.allclose(alphas, r_alphas, atol=5e-3, rtol=5e-3), \
        float(jnp.max(jnp.abs(alphas - r_alphas)))
    assert jnp.allclose(preds, r_preds, atol=5e-3, rtol=5e-3), \
        float(jnp.max(jnp.abs(preds - r_preds)))

    print("KERNEL_OK")
</pallas_src>

<mosaic_0001>
module attributes {stable_mosaic.version = 11 : i64} {
  func.func @_linear_kernel(%arg0: i32, %arg1: i32, %arg2: i32, %arg3: memref<16x128xf32, #tpu.memory_space<vmem>>, %arg4: memref<128x512xf32, #tpu.memory_space<vmem>>, %arg5: memref<1x512xf32, #tpu.memory_space<vmem>>, %arg6: memref<16x512xf32, #tpu.memory_space<vmem>>, %arg7: memref<16x512xf32, #tpu.memory_space<vmem>>) attributes {dimension_semantics = [#tpu.dimension_semantics<parallel>, #tpu.dimension_semantics<parallel>, #tpu.dimension_semantics<arbitrary>], iteration_bounds = array<i64: 1, 2, 1>, scalar_prefetch = 0 : i64, scratch_operands = 1 : i64, tpu.core_type = #tpu.core_type<tc>, window_params = [{transform_indices = @transform_0, window_bounds = array<i64: 16, 128>}, {transform_indices = @transform_1, window_bounds = array<i64: 128, 512>}, {transform_indices = @transform_2, window_bounds = array<i64: 1, 512>}, {transform_indices = @transform_3, window_bounds = array<i64: 16, 512>}]} {
    %c0_i32 = arith.constant 0 : i32
    %0 = arith.cmpi eq, %arg2, %c0_i32 : i32
    %1 = arith.extui %0 : i1 to i32
    %c0_i32_0 = arith.constant 0 : i32
    %2 = arith.cmpi ne, %1, %c0_i32_0 : i32
    scf.if %2 {
      %cst_10 = arith.constant 0.000000e+00 : f32
      %12 = vector.broadcast %cst_10 : f32 to vector<16x512xf32>
      %c0_11 = arith.constant 0 : index
      %c0_12 = arith.constant 0 : index
      %13 = vector.load %arg7[%c0_11, %c0_12] : memref<16x512xf32, #tpu.memory_space<vmem>>, vector<16x512xf32>
      tpu.vector_store %arg7[%c0_11, %c0_12], %12 {strides = array<i32>} : memref<16x512xf32, #tpu.memory_space<vmem>>, vector<16x512xf32>,
    } else {
    }
    %c0 = arith.constant 0 : index
    %c0_1 = arith.constant 0 : index
    %3 = vector.load %arg7[%c0, %c0_1] : memref<16x512xf32, #tpu.memory_space<vmem>>, vector<16x512xf32>
    %c0_2 = arith.constant 0 : index
    %c0_3 = arith.constant 0 : index
    %4 = vector.load %arg3[%c0_2, %c0_3] : memref<16x128xf32, #tpu.memory_space<vmem>>, vector<16x128xf32>
    %c0_4 = arith.constant 0 : index
    %c0_5 = arith.constant 0 : index
    %5 = vector.load %arg4[%c0_4, %c0_5] : memref<128x512xf32, #tpu.memory_space<vmem>>, vector<128x512xf32>
    %cst = arith.constant dense<0.000000e+00> : vector<16x512xf32>
    %6 = tpu.matmul %4, %5, %cst {dimension_numbers = #tpu.dot_dimension_numbers<[1], [0], [0], [1], [0, 0, 1, 1], [], []>} : vector<16x128xf32>, vector<128x512xf32>, vector<16x512xf32> -> vector<16x512xf32>
    %7 = arith.addf %3, %6 : vector<16x512xf32>
    %c0_6 = arith.constant 0 : index
    %c0_7 = arith.constant 0 : index
    %8 = vector.load %arg7[%c0_6, %c0_7] : memref<16x512xf32, #tpu.memory_space<vmem>>, vector<16x512xf32>
    tpu.vector_store %arg7[%c0_6, %c0_7], %7 {strides = array<i32>} : memref<16x512xf32, #tpu.memory_space<vmem>>, vector<16x512xf32>,
    %c0_i32_8 = arith.constant 0 : i32
    %9 = arith.cmpi eq, %arg2, %c0_i32_8 : i32
    %10 = arith.extui %9 : i1 to i32
    %c0_i32_9 = arith.constant 0 : i32
    %11 = arith.cmpi ne, %10, %c0_i32_9 : i32
    scf.if %11 {
      %c0_10 = arith.constant 0 : index
      %c0_11 = arith.constant 0 : index
      %12 = vector.load %arg7[%c0_10, %c0_11] : memref<16x512xf32, #tpu.memory_space<vmem>>, vector<16x512xf32>
      %c0_12 = arith.constant 0 : index
      %c0_13 = arith.constant 0 : index
      %13 = vector.load %arg5[%c0_12, %c0_13] : memref<1x512xf32, #tpu.memory_space<vmem>>, vector<1x512xf32>
      %14 = vector.broadcast %13 : vector<1x512xf32> to vector<16x512xf32>
      %15 = arith.addf %12, %14 : vector<16x512xf32>
      %c0_14 = arith.constant 0 : index
      %c0_15 = arith.constant 0 : index
      %16 = vector.load %arg6[%c0_14, %c0_15] : memref<16x512xf32, #tpu.memory_space<vmem>>, vector<16x512xf32>
      tpu.vector_store %arg6[%c0_14, %c0_15], %15 {strides = array<i32>} : memref<16x512xf32, #tpu.memory_space<vmem>>, vector<16x512xf32>,
    } else {
    }
    return
  }
  func.func @transform_0(%arg0: i32, %arg1: i32, %arg2: i32) -> (i32, i32) {
    %c0_i32 = arith.constant 0 : i32
    return %arg0, %arg2 : i32, i32
  }
  func.func @transform_1(%arg0: i32, %arg1: i32, %arg2: i32) -> (i32, i32) {
    %c0_i32 = arith.constant 0 : i32
    return %arg2, %arg1 : i32, i32
  }
  func.func @transform_2(%arg0: i32, %arg1: i32, %arg2: i32) -> (i32, i32) {
    %c0_i32 = arith.constant 0 : i32
    %c0_i32_0 = arith.constant 0 : i32
    return %c0_i32, %arg1 : i32, i32
  }
  func.func @transform_3(%arg0: i32, %arg1: i32, %arg2: i32) -> (i32, i32) {
    %c0_i32 = arith.constant 0 : i32
    return %arg0, %arg1 : i32, i32
  }
}

module attributes {stable_mosaic.version = 11 : i64} {
  func.func @_linear_kernel(%arg0: i32, %arg1: i32, %arg2: i32, %arg3: memref<32x256xf32, #tpu.memory_space<vmem>>, %arg4: memref<256x128xf32, #tpu.memory_space<vmem>>, %arg5: memref<1x128xf32, #tpu.memory_space<vmem>>, %arg6: memref<32x128xf32, #tpu.memory_space<vmem>>, %arg7: memref<32x128xf32, #tpu.memory_space<vmem>>) attributes {dimension_semantics = [#tpu.dimension_semantics<parallel>, #tpu.dimension_semantics<parallel>, #tpu.dimension_semantics<arbitrary>], iteration_bounds = array<i64: 1, 1, 1>, scalar_prefetch = 0 : i64, scratch_operands = 1 : i64, tpu.core_type = #tpu.core_type<tc>, window_params = [{transform_indices = @transform_0, window_bounds = array<i64: 32, 256>}, {transform_indices = @transform_1, window_bounds = array<i64: 256, 128>}, {transform_indices = @transform_2, window_bounds = array<i64: 1, 128>}, {transform_indices = @transform_3, window_bounds = array<i64: 32, 128>}]} {
    %c0_i32 = arith.constant 0 : i32
    %0 = arith.cmpi eq, %arg2, %c0_i32 : i32
    %1 = arith.extui %0 : i1 to i32
    %c0_i32_0 = arith.constant 0 : i32
    %2 = arith.cmpi ne, %1, %c0_i32_0 : i32
    scf.if %2 {
      %cst_10 = arith.constant 0.000000e+00 : f32
      %12 = vector.broadcast %cst_10 : f32 to vector<32x128xf32>
      %c0_11 = arith.constant 0 : index
      %c0_12 = arith.constant 0 : index
      %13 = vector.load %arg7[%c0_11, %c0_12] : memref<32x128xf32, #tpu.memory_space<vmem>>, vector<32x128xf32>
      tpu.vector_store %arg7[%c0_11, %c0_12], %12 {strides = array<i32>} : memref<32x128xf32, #tpu.memory_space<vmem>>, vector<32x128xf32>,
    } else {
    }
    %c0 = arith.constant 0 : index
    %c0_1 = arith.constant 0 : index
    %3 = vector.load %arg7[%c0, %c0_1] : memref<32x128xf32, #tpu.memory_space<vmem>>, vector<32x128xf32>
    %c0_2 = arith.constant 0 : index
    %c0_3 = arith.constant 0 : index
    %4 = vector.load %arg3[%c0_2, %c0_3] : memref<32x256xf32, #tpu.memory_space<vmem>>, vector<32x256xf32>
    %c0_4 = arith.constant 0 : index
    %c0_5 = arith.constant 0 : index
    %5 = vector.load %arg4[%c0_4, %c0_5] : memref<256x128xf32, #tpu.memory_space<vmem>>, vector<256x128xf32>
    %cst = arith.constant dense<0.000000e+00> : vector<32x128xf32>
    %6 = tpu.matmul %4, %5, %cst {dimension_numbers = #tpu.dot_dimension_numbers<[1], [0], [0], [1], [0, 0, 1, 1], [], []>} : vector<32x256xf32>, vector<256x128xf32>, vector<32x128xf32> -> vector<32x128xf32>
    %7 = arith.addf %3, %6 : vector<32x128xf32>
    %c0_6 = arith.constant 0 : index
    %c0_7 = arith.constant 0 : index
    %8 = vector.load %arg7[%c0_6, %c0_7] : memref<32x128xf32, #tpu.memory_space<vmem>>, vector<32x128xf32>
    tpu.vector_store %arg7[%c0_6, %c0_7], %7 {strides = array<i32>} : memref<32x128xf32, #tpu.memory_space<vmem>>, vector<32x128xf32>,
    %c0_i32_8 = arith.constant 0 : i32
    %9 = arith.cmpi eq, %arg2, %c0_i32_8 : i32
    %10 = arith.extui %9 : i1 to i32
    %c0_i32_9 = arith.constant 0 : i32
    %11 = arith.cmpi ne, %10, %c0_i32_9 : i32
    scf.if %11 {
      %c0_10 = arith.constant 0 : index
      %c0_11 = arith.constant 0 : index
      %12 = vector.load %arg7[%c0_10, %c0_11] : memref<32x128xf32, #tpu.memory_space<vmem>>, vector<32x128xf32>
      %c0_12 = arith.constant 0 : index
      %c0_13 = arith.constant 0 : index
      %13 = vector.load %arg5[%c0_12, %c0_13] : memref<1x128xf32, #tpu.memory_space<vmem>>, vector<1x128xf32>
      %14 = vector.broadcast %13 : vector<1x128xf32> to vector<32x128xf32>
      %15 = arith.addf %12, %14 : vector<32x128xf32>
      %c0_14 = arith.constant 0 : index
      %c0_15 = arith.constant 0 : index
      %16 = vector.load %arg6[%c0_14, %c0_15] : memref<32x128xf32, #tpu.memory_space<vmem>>, vector<32x128xf32>
      tpu.vector_store %arg6[%c0_14, %c0_15], %15 {strides = array<i32>} : memref<32x128xf32, #tpu.memory_space<vmem>>, vector<32x128xf32>,
    } else {
    }
    return
  }
  func.func @transform_0(%arg0: i32, %arg1: i32, %arg2: i32) -> (i32, i32) {
    %c0_i32 = arith.constant 0 : i32
    return %arg0, %arg2 : i32, i32
  }
  func.func @transform_1(%arg0: i32, %arg1: i32, %arg2: i32) -> (i32, i32) {
    %c0_i32 = arith.constant 0 : i32
    return %arg2, %arg1 : i32, i32
  }
  func.func @transform_2(%arg0: i32, %arg1: i32, %arg2: i32) -> (i32, i32) {
    %c0_i32 = arith.constant 0 : i32
    %c0_i32_0 = arith.constant 0 : i32
    return %c0_i32, %arg1 : i32, i32
  }
  func.func @transform_3(%arg0: i32, %arg1: i32, %arg2: i32) -> (i32, i32) {
    %c0_i32 = arith.constant 0 : i32
    return %arg0, %arg1 : i32, i32
  }
}

module attributes {stable_mosaic.version = 11 : i64} {
  func.func @_linear_kernel(%arg0: i32, %arg1: i32, %arg2: i32, %arg3: memref<8x256xf32, #tpu.memory_space<vmem>>, %arg4: memref<256x512xf32, #tpu.memory_space<vmem>>, %arg5: memref<1x512xf32, #tpu.memory_space<vmem>>, %arg6: memref<8x512xf32, #tpu.memory_space<vmem>>, %arg7: memref<8x512xf32, #tpu.memory_space<vmem>>) attributes {dimension_semantics = [#tpu.dimension_semantics<parallel>, #tpu.dimension_semantics<parallel>, #tpu.dimension_semantics<arbitrary>], iteration_bounds = array<i64: 1, 1, 1>, scalar_prefetch = 0 : i64, scratch_operands = 1 : i64, tpu.core_type = #tpu.core_type<tc>, window_params = [{transform_indices = @transform_0, window_bounds = array<i64: 8, 256>}, {transform_indices = @transform_1, window_bounds = array<i64: 256, 512>}, {transform_indices = @transform_2, window_bounds = array<i64: 1, 512>}, {transform_indices = @transform_3, window_bounds = array<i64: 8, 512>}]} {
    %c0_i32 = arith.constant 0 : i32
    %0 = arith.cmpi eq, %arg2, %c0_i32 : i32
    %1 = arith.extui %0 : i1 to i32
    %c0_i32_0 = arith.constant 0 : i32
    %2 = arith.cmpi ne, %1, %c0_i32_0 : i32
    scf.if %2 {
      %cst_10 = arith.constant 0.000000e+00 : f32
      %12 = vector.broadcast %cst_10 : f32 to vector<8x512xf32>
      %c0_11 = arith.constant 0 : index
      %c0_12 = arith.constant 0 : index
      %13 = vector.load %arg7[%c0_11, %c0_12] : memref<8x512xf32, #tpu.memory_space<vmem>>, vector<8x512xf32>
      tpu.vector_store %arg7[%c0_11, %c0_12], %12 {strides = array<i32>} : memref<8x512xf32, #tpu.memory_space<vmem>>, vector<8x512xf32>,
    } else {
    }
    %c0 = arith.constant 0 : index
    %c0_1 = arith.constant 0 : index
    %3 = vector.load %arg7[%c0, %c0_1] : memref<8x512xf32, #tpu.memory_space<vmem>>, vector<8x512xf32>
    %c0_2 = arith.constant 0 : index
    %c0_3 = arith.constant 0 : index
    %4 = vector.load %arg3[%c0_2, %c0_3] : memref<8x256xf32, #tpu.memory_space<vmem>>, vector<8x256xf32>
    %c0_4 = arith.constant 0 : index
    %c0_5 = arith.constant 0 : index
    %5 = vector.load %arg4[%c0_4, %c0_5] : memref<256x512xf32, #tpu.memory_space<vmem>>, vector<256x512xf32>
    %cst = arith.constant dense<0.000000e+00> : vector<8x512xf32>
    %6 = tpu.matmul %4, %5, %cst {dimension_numbers = #tpu.dot_dimension_numbers<[1], [0], [0], [1], [0, 0, 1, 1], [], []>} : vector<8x256xf32>, vector<256x512xf32>, vector<8x512xf32> -> vector<8x512xf32>
    %7 = arith.addf %3, %6 : vector<8x512xf32>
    %c0_6 = arith.constant 0 : index
    %c0_7 = arith.constant 0 : index
    %8 = vector.load %arg7[%c0_6, %c0_7] : memref<8x512xf32, #tpu.memory_space<vmem>>, vector<8x512xf32>
    tpu.vector_store %arg7[%c0_6, %c0_7], %7 {strides = array<i32>} : memref<8x512xf32, #tpu.memory_space<vmem>>, vector<8x512xf32>,
    %c0_i32_8 = arith.constant 0 : i32
    %9 = arith.cmpi eq, %arg2, %c0_i32_8 : i32
    %10 = arith.extui %9 : i1 to i32
    %c0_i32_9 = arith.constant 0 : i32
    %11 = arith.cmpi ne, %10, %c0_i32_9 : i32
    scf.if %11 {
      %c0_10 = arith.constant 0 : index
      %c0_11 = arith.constant 0 : index
      %12 = vector.load %arg7[%c0_10, %c0_11] : memref<8x512xf32, #tpu.memory_space<vmem>>, vector<8x512xf32>
      %c0_12 = arith.constant 0 : index
      %c0_13 = arith.constant 0 : index
      %13 = vector.load %arg5[%c0_12, %c0_13] : memref<1x512xf32, #tpu.memory_space<vmem>>, vector<1x512xf32>
      %14 = vector.broadcast %13 : vector<1x512xf32> to vector<8x512xf32>
      %15 = arith.addf %12, %14 : vector<8x512xf32>
      %c0_14 = arith.constant 0 : index
      %c0_15 = arith.constant 0 : index
      %16 = vector.load %arg6[%c0_14, %c0_15] : memref<8x512xf32, #tpu.memory_space<vmem>>, vector<8x512xf32>
      tpu.vector_store %arg6[%c0_14, %c0_15], %15 {strides = array<i32>} : memref<8x512xf32, #tpu.memory_space<vmem>>, vector<8x512xf32>,
    } else {
    }
    return
  }
  func.func @transform_0(%arg0: i32, %arg1: i32, %arg2: i32) -> (i32, i32) {
    %c0_i32 = arith.constant 0 : i32
    return %arg0, %arg2 : i32, i32
  }
  func.func @transform_1(%arg0: i32, %arg1: i32, %arg2: i32) -> (i32, i32) {
    %c0_i32 = arith.constant 0 : i32
    return %arg2, %arg1 : i32, i32
  }
  func.func @transform_2(%arg0: i32, %arg1: i32, %arg2: i32) -> (i32, i32) {
    %c0_i32 = arith.constant 0 : i32
    %c0_i32_0 = arith.constant 0 : i32
    return %c0_i32, %arg1 : i32, i32
  }
  func.func @transform_3(%arg0: i32, %arg1: i32, %arg2: i32) -> (i32, i32) {
    %c0_i32 = arith.constant 0 : i32
    return %arg0, %arg1 : i32, i32
  }
}

module attributes {stable_mosaic.version = 11 : i64} {
  func.func @_fused_decode_kernel(%arg0: i32, %arg1: memref<2x1xi32, #tpu.memory_space<vmem>>, %arg2: memref<2x16x128xf32, #tpu.memory_space<vmem>>, %arg3: memref<2x16x256xf32, #tpu.memory_space<vmem>>, %arg4: memref<1x2x1024xf32, #tpu.memory_space<vmem>>, %arg5: memref<2x256xf32, #tpu.memory_space<vmem>>, %arg6: memref<2x256xf32, #tpu.memory_space<vmem>>, %arg7: memref<256x128xf32, #tpu.memory_space<vmem>>, %arg8: memref<1x128xf32, #tpu.memory_space<vmem>>, %arg9: memref<1x128xf32, #tpu.memory_space<vmem>>, %arg10: memref<1x1xf32, #tpu.memory_space<vmem>>, %arg11: memref<256x256xf32, #tpu.memory_space<vmem>>, %arg12: memref<1x256xf32, #tpu.memory_space<vmem>>, %arg13: memref<256x1024xf32, #tpu.memory_space<vmem>>, %arg14: memref<256x1024xf32, #tpu.memory_space<vmem>>, %arg15: memref<1x2x256xf32, #tpu.memory_space<vmem>>, %arg16: memref<1x2x16xf32, #tpu.memory_space<vmem>>, %arg17: memref<2x256xf32, #tpu.memory_space<vmem>>, %arg18: memref<2x256xf32, #tpu.memory_space<vmem>>) attributes {dimension_semantics = [#tpu.dimension_semantics<arbitrary>], iteration_bounds = array<i64: 7>, scalar_prefetch = 0 : i64, scratch_operands = 2 : i64, tpu.core_type = #tpu.core_type<tc>, window_params = [{pipeline_mode = #tpu.pipeline_mode<synchronous>, transform_indices = @transform_0, window_bounds = array<i64: 2, 1>}, {pipeline_mode = #tpu.pipeline_mode<synchronous>, transform_indices = @transform_1, window_bounds = array<i64: 2, 16, 128>}, {pipeline_mode = #tpu.pipeline_mode<synchronous>, transform_indices = @transform_2, window_bounds = array<i64: 2, 16, 256>}, {transform_indices = @transform_3, window_bounds = array<i64: 1, 2, 1024>}, {pipeline_mode = #tpu.pipeline_mode<synchronous>, transform_indices = @transform_4, window_bounds = array<i64: 2, 256>}, {pipeline_mode = #tpu.pipeline_mode<synchronous>, transform_indices = @transform_5, window_bounds = array<i64: 2, 256>}, {pipeline_mode = #tpu.pipeline_mode<synchronous>, transform_indices = @transform_6, window_bounds = array<i64: 256, 128>}, {pipeline_mode = #tpu.pipeline_mode<synchronous>, transform_indices = @transform_7, window_bounds = array<i64: 1, 128>}, {pipeline_mode = #tpu.pipeline_mode<synchronous>, transform_indices = @transform_8, window_bounds = array<i64: 1, 128>}, {pipeline_mode = #tpu.pipeline_mode<synchronous>, transform_indices = @transform_9, window_bounds = array<i64: 1, 1>}, {pipeline_mode = #tpu.pipeline_mode<synchronous>, transform_indices = @transform_10, window_bounds = array<i64: 256, 256>}, {pipeline_mode = #tpu.pipeline_mode<synchronous>, transform_indices = @transform_11, window_bounds = array<i64: 1, 256>}, {pipeline_mode = #tpu.pipeline_mode<synchronous>, transform_indices = @transform_12, window_bounds = array<i64: 256, 1024>}, {pipeline_mode = #tpu.pipeline_mode<synchronous>, transform_indices = @transform_13, window_bounds = array<i64: 256, 1024>}, {transform_indices = @transform_14, window_bounds = array<i64: 1, 2, 256>}, {transform_indices = @transform_15, window_bounds = array<i64: 1, 2, 16>}]} {
    %c0_i32 = arith.constant 0 : i32
    %0 = arith.cmpi eq, %arg0, %c0_i32 : i32
    %1 = arith.extui %0 : i1 to i32
    %c0_i32_0 = arith.constant 0 : i32
    %2 = arith.cmpi ne, %1, %c0_i32_0 : i32
    scf.if %2 {
      %c0_62 = arith.constant 0 : index
      %c0_63 = arith.constant 0 : index
      %110 = vector.load %arg5[%c0_62, %c0_63] : memref<2x256xf32, #tpu.memory_space<vmem>>, vector<2x256xf32>
      %c0_64 = arith.constant 0 : index
      %c0_65 = arith.constant 0 : index
      %111 = vector.load %arg17[%c0_64, %c0_65] : memref<2x256xf32, #tpu.memory_space<vmem>>, vector<2x256xf32>
      tpu.vector_store %arg17[%c0_64, %c0_65], %110 {strides = array<i32>} : memref<2x256xf32, #tpu.memory_space<vmem>>, vector<2x256xf32>,
      %c0_66 = arith.constant 0 : index
      %c0_67 = arith.constant 0 : index
      %112 = vector.load %arg6[%c0_66, %c0_67] : memref<2x256xf32, #tpu.memory_space<vmem>>, vector<2x256xf32>
      %c0_68 = arith.constant 0 : index
      %c0_69 = arith.constant 0 : index
      %113 = vector.load %arg18[%c0_68, %c0_69] : memref<2x256xf32, #tpu.memory_space<vmem>>, vector<2x256xf32>
      tpu.vector_store %arg18[%c0_68, %c0_69], %112 {strides = array<i32>} : memref<2x256xf32, #tpu.memory_space<vmem>>, vector<2x256xf32>,
    } else {
    }
    %c0 = arith.constant 0 : index
    %c0_1 = arith.constant 0 : index
    %3 = vector.load %arg17[%c0, %c0_1] : memref<2x256xf32, #tpu.memory_space<vmem>>, vector<2x256xf32>
    %c0_2 = arith.constant 0 : index
    %c0_3 = arith.constant 0 : index
    %4 = vector.load %arg18[%c0_2, %c0_3] : memref<2x256xf32, #tpu.memory_space<vmem>>, vector<2x256xf32>
    %c0_4 = arith.constant 0 : index
    %c0_5 = arith.constant 0 : index
    %5 = vector.load %arg7[%c0_4, %c0_5] : memref<256x128xf32, #tpu.memory_space<vmem>>, vector<256x128xf32>
    %cst = arith.constant dense<0.000000e+00> : vector<2x128xf32>
    %6 = tpu.matmul %3, %5, %cst {dimension_numbers = #tpu.dot_dimension_numbers<[1], [0], [0], [1], [0, 0, 1, 1], [], []>} : vector<2x256xf32>, vector<256x128xf32>, vector<2x128xf32> -> vector<2x128xf32>
    %c0_6 = arith.constant 0 : index
    %c0_7 = arith.constant 0 : index
    %7 = vector.load %arg8[%c0_6, %c0_7] : memref<1x128xf32, #tpu.memory_space<vmem>>, vector<1x128xf32>
    %8 = vector.broadcast %7 : vector<1x128xf32> to vector<2x128xf32>
    %9 = arith.addf %6, %8 : vector<2x128xf32>
    %c0_8 = arith.constant 0 : index
    %c0_9 = arith.constant 0 : index
    %c0_10 = arith.constant 0 : index
    %10 = vector.load %arg2[%c0_8, %c0_9, %c0_10] : memref<2x16x128xf32, #tpu.memory_space<vmem>>, vector<2x16x128xf32>
    %11 = vector.shape_cast %9 : vector<2x128xf32> to vector<2x1x128xf32>
    %12 = vector.broadcast %11 : vector<2x1x128xf32> to vector<2x16x128xf32>
    %13 = arith.addf %10, %12 : vector<2x16x128xf32>
    %cst_11 = arith.constant 0.000000e+00 : f32
    %14 = vector.broadcast %cst_11 : f32 to vector<2x16x128xf32>
    %15 = arith.maximumf %13, %14 : vector<2x16x128xf32>
    %c0_12 = arith.constant 0 : index
    %c0_13 = arith.constant 0 : index
    %16 = vector.load %arg9[%c0_12, %c0_13] : memref<1x128xf32, #tpu.memory_space<vmem>>, vector<1x128xf32>
    %17 = vector.shape_cast %16 : vector<1x128xf32> to vector<1x1x128xf32>
    %18 = vector.broadcast %17 : vector<1x1x128xf32> to vector<2x16x128xf32>
    %19 = arith.mulf %15, %18 : vector<2x16x128xf32>
    %cst_14 = arith.constant dense<0.000000e+00> : vector<2x16xf32>
    %20 = vector.multi_reduction <add>, %19, %cst_14 [2] : vector<2x16x128xf32> to vector<2x16xf32>
    %c0_15 = arith.constant 0 : index
    %c0_16 = arith.constant 0 : index
    %21 = vector.load %arg10[%c0_15, %c0_16] : memref<1x1xf32, #tpu.memory_space<vmem>>, vector<1x1xf32>
    %22 = vector.broadcast %21 : vector<1x1xf32> to vector<2x16xf32>
    %23 = arith.addf %20, %22 : vector<2x16xf32>
    %cst_17 = arith.constant dense<0xFF800000> : vector<2xf32>
    %24 = vector.multi_reduction <maximumf>, %23, %cst_17 [1] : vector<2x16xf32> to vector<2xf32>
    %25 = vector.shape_cast %24 : vector<2xf32> to vector<2x1xf32>
    %26 = vector.broadcast %25 : vector<2x1xf32> to vector<2x16xf32>
    %27 = arith.subf %23, %26 : vector<2x16xf32>
    %28 = math.exp %27 : vector<2x16xf32>
    %cst_18 = arith.constant dense<0.000000e+00> : vector<2xf32>
    %29 = vector.multi_reduction <add>, %28, %cst_18 [1] : vector<2x16xf32> to vector<2xf32>
    %30 = vector.shape_cast %29 : vector<2xf32> to vector<2x1xf32>
    %31 = vector.broadcast %30 : vector<2x1xf32> to vector<2x16xf32>
    %32 = arith.divf %28, %31 : vector<2x16xf32>
    %33 = vector.shape_cast %32 : vector<2x16xf32> to vector<2x1x16xf32>
    %c0_19 = arith.constant 0 : index
    %c0_20 = arith.constant 0 : index
    %c0_21 = arith.constant 0 : index
    %34 = vector.load %arg3[%c0_19, %c0_20, %c0_21] : memref<2x16x256xf32, #tpu.memory_space<vmem>>, vector<2x16x256xf32>
    "tpu.trace_start"() <{level = 10 : i32, message = "bqp,bpe->bqe"}> : () -> ()
    %cst_22 = arith.constant dense<0.000000e+00> : vector<2x1x256xf32>
    %35 = tpu.matmul %33, %34, %cst_22 {dimension_numbers = #tpu.dot_dimension_numbers<[2], [1], [1], [2], [0, 0, 0, 1, 1, 2], [0], [0]>} : vector<2x1x16xf32>, vector<2x16x256xf32>, vector<2x1x256xf32> -> vector<2x1x256xf32>
    "tpu.trace_stop"() : () -> ()
    %36 = vector.shape_cast %35 : vector<2x1x256xf32> to vector<2x256xf32>
    %c0_23 = arith.constant 0 : index
    %c0_24 = arith.constant 0 : index
    %37 = vector.load %arg11[%c0_23, %c0_24] : memref<256x256xf32, #tpu.memory_space<vmem>>, vector<256x256xf32>
    %cst_25 = arith.constant dense<0.000000e+00> : vector<2x256xf32>
    %38 = tpu.matmul %3, %37, %cst_25 {dimension_numbers = #tpu.dot_dimension_numbers<[1], [0], [0], [1], [0, 0, 1, 1], [], []>} : vector<2x256xf32>, vector<256x256xf32>, vector<2x256xf32> -> vector<2x256xf32>
    %c0_26 = arith.constant 0 : index
    %c0_27 = arith.constant 0 : index
    %39 = vector.load %arg12[%c0_26, %c0_27] : memref<1x256xf32, #tpu.memory_space<vmem>>, vector<1x256xf32>
    %40 = vector.broadcast %39 : vector<1x256xf32> to vector<2x256xf32>
    %41 = arith.addf %38, %40 : vector<2x256xf32>
    %cst_28 = arith.constant 0.000000e+00 : f32
    %42 = vector.broadcast %cst_28 : f32 to vector<2x256xf32>
    %43 = arith.subf %42, %41 : vector<2x256xf32>
    %44 = math.exp %43 : vector<2x256xf32>
    %cst_29 = arith.constant 1.000000e+00 : f32
    %45 = vector.broadcast %cst_29 : f32 to vector<2x256xf32>
    %46 = arith.addf %45, %44 : vector<2x256xf32>
    %cst_30 = arith.constant 1.000000e+00 : f32
    %47 = vector.broadcast %cst_30 : f32 to vector<2x256xf32>
    %48 = arith.divf %47, %46 : vector<2x256xf32>
    %49 = arith.mulf %48, %36 : vector<2x256xf32>
    %c0_31 = arith.constant 0 : index
    %c0_32 = arith.constant 0 : index
    %c0_33 = arith.constant 0 : index
    %50 = vector.load %arg4[%c0_31, %c0_32, %c0_33] : memref<1x2x1024xf32, #tpu.memory_space<vmem>>, vector<1x2x1024xf32>
    %51 = vector.shape_cast %50 : vector<1x2x1024xf32> to vector<2x1024xf32>
    %c0_34 = arith.constant 0 : index
    %c0_35 = arith.constant 0 : index
    %52 = vector.load %arg13[%c0_34, %c0_35] : memref<256x1024xf32, #tpu.memory_space<vmem>>, vector<256x1024xf32>
    %cst_36 = arith.constant dense<0.000000e+00> : vector<2x1024xf32>
    %53 = tpu.matmul %49, %52, %cst_36 {dimension_numbers = #tpu.dot_dimension_numbers<[1], [0], [0], [1], [0, 0, 1, 1], [], []>} : vector<2x256xf32>, vector<256x1024xf32>, vector<2x1024xf32> -> vector<2x1024xf32>
    %54 = arith.addf %51, %53 : vector<2x1024xf32>
    %c0_37 = arith.constant 0 : index
    %c0_38 = arith.constant 0 : index
    %55 = vector.load %arg14[%c0_37, %c0_38] : memref<256x1024xf32, #tpu.memory_space<vmem>>, vector<256x1024xf32>
    %cst_39 = arith.constant dense<0.000000e+00> : vector<2x1024xf32>
    %56 = tpu.matmul %3, %55, %cst_39 {dimension_numbers = #tpu.dot_dimension_numbers<[1], [0], [0], [1], [0, 0, 1, 1], [], []>} : vector<2x256xf32>, vector<256x1024xf32>, vector<2x1024xf32> -> vector<2x1024xf32>
    %57 = arith.addf %54, %56 : vector<2x1024xf32>
    %58 = vector.extract_strided_slice %57 {offsets = [0, 0], sizes = [2, 256], strides = [1, 1]} : vector<2x1024xf32> to vector<2x256xf32>
    %cst_40 = arith.constant 0.000000e+00 : f32
    %59 = vector.broadcast %cst_40 : f32 to vector<2x256xf32>
    %60 = arith.subf %59, %58 : vector<2x256xf32>
    %61 = math.exp %60 : vector<2x256xf32>
    %cst_41 = arith.constant 1.000000e+00 : f32
    %62 = vector.broadcast %cst_41 : f32 to vector<2x256xf32>
    %63 = arith.addf %62, %61 : vector<2x256xf32>
    %cst_42 = arith.constant 1.000000e+00 : f32
    %64 = vector.broadcast %cst_42 : f32 to vector<2x256xf32>
    %65 = arith.divf %64, %63 : vector<2x256xf32>
    %66 = vector.extract_strided_slice %57 {offsets = [0, 256], sizes = [2, 256], strides = [1, 1]} : vector<2x1024xf32> to vector<2x256xf32>
    %cst_43 = arith.constant 0.000000e+00 : f32
    %67 = vector.broadcast %cst_43 : f32 to vector<2x256xf32>
    %68 = arith.subf %67, %66 : vector<2x256xf32>
    %69 = math.exp %68 : vector<2x256xf32>
    %cst_44 = arith.constant 1.000000e+00 : f32
    %70 = vector.broadcast %cst_44 : f32 to vector<2x256xf32>
    %71 = arith.addf %70, %69 : vector<2x256xf32>
    %cst_45 = arith.constant 1.000000e+00 : f32
    %72 = vector.broadcast %cst_45 : f32 to vector<2x256xf32>
    %73 = arith.divf %72, %71 : vector<2x256xf32>
    %74 = vector.extract_strided_slice %57 {offsets = [0, 512], sizes = [2, 256], strides = [1, 1]} : vector<2x1024xf32> to vector<2x256xf32>
    %75 = math.tanh %74 : vector<2x256xf32>
    %76 = vector.extract_strided_slice %57 {offsets = [0, 768], sizes = [2, 256], strides = [1, 1]} : vector<2x1024xf32> to vector<2x256xf32>
    %cst_46 = arith.constant 0.000000e+00 : f32
    %77 = vector.broadcast %cst_46 : f32 to vector<2x256xf32>
    %78 = arith.subf %77, %76 : vector<2x256xf32>
    %79 = math.exp %78 : vector<2x256xf32>
    %cst_47 = arith.constant 1.000000e+00 : f32
    %80 = vector.broadcast %cst_47 : f32 to vector<2x256xf32>
    %81 = arith.addf %80, %79 : vector<2x256xf32>
    %cst_48 = arith.constant 1.000000e+00 : f32
    %82 = vector.broadcast %cst_48 : f32 to vector<2x256xf32>
    %83 = arith.divf %82, %81 : vector<2x256xf32>
    %84 = arith.mulf %73, %4 : vector<2x256xf32>
    %85 = arith.mulf %65, %75 : vector<2x256xf32>
    %86 = arith.addf %84, %85 : vector<2x256xf32>
    %87 = math.tanh %86 : vector<2x256xf32>
    %88 = arith.mulf %83, %87 : vector<2x256xf32>
    %c0_49 = arith.constant 0 : index
    %c0_50 = arith.constant 0 : index
    %89 = vector.load %arg1[%c0_49, %c0_50] : memref<2x1xi32, #tpu.memory_space<vmem>>, vector<2x1xi32>
    %90 = vector.broadcast %arg0 : i32 to vector<2x1xi32>
    %91 = arith.cmpi sgt, %89, %90 : vector<2x1xi32>
    %92 = vector.shape_cast %91 : vector<2x1xi1> to vector<2x1xi1>
    %93 = vector.broadcast %92 : vector<2x1xi1> to vector<2x256xi1>
    %94 = arith.select %93, %88, %3 : vector<2x256xi1>, vector<2x256xf32>
    %c0_51 = arith.constant 0 : index
    %c0_52 = arith.constant 0 : index
    %95 = vector.load %arg17[%c0_51, %c0_52] : memref<2x256xf32, #tpu.memory_space<vmem>>, vector<2x256xf32>
    tpu.vector_store %arg17[%c0_51, %c0_52], %94 {strides = array<i32>} : memref<2x256xf32, #tpu.memory_space<vmem>>, vector<2x256xf32>,
    %96 = vector.shape_cast %91 : vector<2x1xi1> to vector<2x1xi1>
    %97 = vector.broadcast %96 : vector<2x1xi1> to vector<2x256xi1>
    %98 = arith.select %97, %86, %4 : vector<2x256xi1>, vector<2x256xf32>
    %c0_53 = arith.constant 0 : index
    %c0_54 = arith.constant 0 : index
    %99 = vector.load %arg18[%c0_53, %c0_54] : memref<2x256xf32, #tpu.memory_space<vmem>>, vector<2x256xf32>
    tpu.vector_store %arg18[%c0_53, %c0_54], %98 {strides = array<i32>} : memref<2x256xf32, #tpu.memory_space<vmem>>, vector<2x256xf32>,
    %c0_55 = arith.constant 0 : index
    %c0_56 = arith.constant 0 : index
    %c0_57 = arith.constant 0 : index
    %100 = vector.load %arg15[%c0_55, %c0_56, %c0_57] : memref<1x2x256xf32, #tpu.memory_space<vmem>>, vector<1x2x256xf32>
    %101 = vector.shape_cast %100 : vector<1x2x256xf32> to vector<2x256xf32>
    %102 = vector.shape_cast %88 : vector<2x256xf32> to vector<1x2x256xf32>
    tpu.vector_store %arg15[%c0_55, %c0_56, %c0_57], %102 {strides = array<i32>} : memref<1x2x256xf32, #tpu.memory_space<vmem>>, vector<1x2x256xf32>,
    %cst_58 = arith.constant 0.000000e+00 : f32
    %103 = vector.shape_cast %91 : vector<2x1xi1> to vector<2x1xi1>
    %104 = vector.broadcast %103 : vector<2x1xi1> to vector<2x16xi1>
    %105 = vector.broadcast %cst_58 : f32 to vector<2x16xf32>
    %106 = arith.select %104, %32, %105 : vector<2x16xi1>, vector<2x16xf32>
    %c0_59 = arith.constant 0 : index
    %c0_60 = arith.constant 0 : index
    %c0_61 = arith.constant 0 : index
    %107 = vector.load %arg16[%c0_59, %c0_60, %c0_61] : memref<1x2x16xf32, #tpu.memory_space<vmem>>, vector<1x2x16xf32>
    %108 = vector.shape_cast %107 : vector<1x2x16xf32> to vector<2x16xf32>
    %109 = vector.shape_cast %106 : vector<2x16xf32> to vector<1x2x16xf32>
    tpu.vector_store %arg16[%c0_59, %c0_60, %c0_61], %109 {strides = array<i32>} : memref<1x2x16xf32, #tpu.memory_space<vmem>>, vector<1x2x16xf32>,
    return
  }
  func.func @transform_0(%arg0: i32) -> (i32, i32) {
    %c0_i32 = arith.constant 0 : i32
    %c0_i32_0 = arith.constant 0 : i32
    %c0_i32_1 = arith.constant 0 : i32
    return %c0_i32, %c0_i32_0 : i32, i32
  }
  func.func @transform_1(%arg0: i32) -> (i32, i32, i32) {
    %c0_i32 = arith.constant 0 : i32
    %c0_i32_0 = arith.constant 0 : i32
    %c0_i32_1 = arith.constant 0 : i32
    %c0_i32_2 = arith.constant 0 : i32
    return %c0_i32, %c0_i32_0, %c0_i32_1 : i32, i32, i32
  }
  func.func @transform_2(%arg0: i32) -> (i32, i32, i32) {
    %c0_i32 = arith.constant 0 : i32
    %c0_i32_0 = arith.constant 0 : i32
    %c0_i32_1 = arith.constant 0 : i32
    %c0_i32_2 = arith.constant 0 : i32
    return %c0_i32, %c0_i32_0, %c0_i32_1 : i32, i32, i32
  }
  func.func @transform_3(%arg0: i32) -> (i32, i32, i32) {
    %c0_i32 = arith.constant 0 : i32
    %c0_i32_0 = arith.constant 0 : i32
    %c0_i32_1 = arith.constant 0 : i32
    return %arg0, %c0_i32, %c0_i32_0 : i32, i32, i32
  }
  func.func @transform_4(%arg0: i32) -> (i32, i32) {
    %c0_i32 = arith.constant 0 : i32
    %c0_i32_0 = arith.constant 0 : i32
    %c0_i32_1 = arith.constant 0 : i32
    return %c0_i32, %c0_i32_0 : i32, i32
  }
  func.func @transform_5(%arg0: i32) -> (i32, i32) {
    %c0_i32 = arith.constant 0 : i32
    %c0_i32_0 = arith.constant 0 : i32
    %c0_i32_1 = arith.constant 0 : i32
    return %c0_i32, %c0_i32_0 : i32, i32
  }
  func.func @transform_6(%arg0: i32) -> (i32, i32) {
    %c0_i32 = arith.constant 0 : i32
    %c0_i32_0 = arith.constant 0 : i32
    %c0_i32_1 = arith.constant 0 : i32
    return %c0_i32, %c0_i32_0 : i32, i32
  }
  func.func @transform_7(%arg0: i32) -> (i32, i32) {
    %c0_i32 = arith.constant 0 : i32
    %c0_i32_0 = arith.constant 0 : i32
    %c0_i32_1 = arith.constant 0 : i32
    return %c0_i32, %c0_i32_0 : i32, i32
  }
  func.func @transform_8(%arg0: i32) -> (i32, i32) {
    %c0_i32 = arith.constant 0 : i32
    %c0_i32_0 = arith.constant 0 : i32
    %c0_i32_1 = arith.constant 0 : i32
    return %c0_i32, %c0_i32_0 : i32, i32
  }
  func.func @transform_9(%arg0: i32) -> (i32, i32) {
    %c0_i32 = arith.constant 0 : i32
    %c0_i32_0 = arith.constant 0 : i32
    %c0_i32_1 = arith.constant 0 : i32
    return %c0_i32, %c0_i32_0 : i32, i32
  }
  func.func @transform_10(%arg0: i32) -> (i32, i32) {
    %c0_i32 = arith.constant 0 : i32
    %c0_i32_0 = arith.constant 0 : i32
    %c0_i32_1 = arith.constant 0 : i32
    return %c0_i32, %c0_i32_0 : i32, i32
  }
  func.func @transform_11(%arg0: i32) -> (i32, i32) {
    %c0_i32 = arith.constant 0 : i32
    %c0_i32_0 = arith.constant 0 : i32
    %c0_i32_1 = arith.constant 0 : i32
    return %c0_i32, %c0_i32_0 : i32, i32
  }
  func.func @transform_12(%arg0: i32) -> (i32, i32) {
    %c0_i32 = arith.constant 0 : i32
    %c0_i32_0 = arith.constant 0 : i32
    %c0_i32_1 = arith.constant 0 : i32
    return %c0_i32, %c0_i32_0 : i32, i32
  }
  func.func @transform_13(%arg0: i32) -> (i32, i32) {
    %c0_i32 = arith.constant 0 : i32
    %c0_i32_0 = arith.constant 0 : i32
    %c0_i32_1 = arith.constant 0 : i32
    return %c0_i32, %c0_i32_0 : i32, i32
  }
  func.func @transform_14(%arg0: i32) -> (i32, i32, i32) {
    %c0_i32 = arith.constant 0 : i32
    %c0_i32_0 = arith.constant 0 : i32
    %c0_i32_1 = arith.constant 0 : i32
    return %arg0, %c0_i32, %c0_i32_0 : i32, i32, i32
  }
  func.func @transform_15(%arg0: i32) -> (i32, i32, i32) {
    %c0_i32 = arith.constant 0 : i32
    %c0_i32_0 = arith.constant 0 : i32
    %c0_i32_1 = arith.constant 0 : i32
    return %arg0, %c0_i32, %c0_i32_0 : i32, i32, i32
  }
}

module attributes {stable_mosaic.version = 11 : i64} {
  func.func @_linear_kernel(%arg0: i32, %arg1: i32, %arg2: i32, %arg3: memref<16x256xf32, #tpu.memory_space<vmem>>, %arg4: memref<256x512xf32, #tpu.memory_space<vmem>>, %arg5: memref<1x512xf32, #tpu.memory_space<vmem>>, %arg6: memref<16x512xf32, #tpu.memory_space<vmem>>, %arg7: memref<16x512xf32, #tpu.memory_space<vmem>>) attributes {dimension_semantics = [#tpu.dimension_semantics<parallel>, #tpu.dimension_semantics<parallel>, #tpu.dimension_semantics<arbitrary>], iteration_bounds = array<i64: 1, 1, 1>, scalar_prefetch = 0 : i64, scratch_operands = 1 : i64, tpu.core_type = #tpu.core_type<tc>, window_params = [{transform_indices = @transform_0, window_bounds = array<i64: 16, 256>}, {transform_indices = @transform_1, window_bounds = array<i64: 256, 512>}, {transform_indices = @transform_2, window_bounds = array<i64: 1, 512>}, {transform_indices = @transform_3, window_bounds = array<i64: 16, 512>}]} {
    %c0_i32 = arith.constant 0 : i32
    %0 = arith.cmpi eq, %arg2, %c0_i32 : i32
    %1 = arith.extui %0 : i1 to i32
    %c0_i32_0 = arith.constant 0 : i32
    %2 = arith.cmpi ne, %1, %c0_i32_0 : i32
    scf.if %2 {
      %cst_10 = arith.constant 0.000000e+00 : f32
      %12 = vector.broadcast %cst_10 : f32 to vector<16x512xf32>
      %c0_11 = arith.constant 0 : index
      %c0_12 = arith.constant 0 : index
      %13 = vector.load %arg7[%c0_11, %c0_12] : memref<16x512xf32, #tpu.memory_space<vmem>>, vector<16x512xf32>
      tpu.vector_store %arg7[%c0_11, %c0_12], %12 {strides = array<i32>} : memref<16x512xf32, #tpu.memory_space<vmem>>, vector<16x512xf32>,
    } else {
    }
    %c0 = arith.constant 0 : index
    %c0_1 = arith.constant 0 : index
    %3 = vector.load %arg7[%c0, %c0_1] : memref<16x512xf32, #tpu.memory_space<vmem>>, vector<16x512xf32>
    %c0_2 = arith.constant 0 : index
    %c0_3 = arith.constant 0 : index
    %4 = vector.load %arg3[%c0_2, %c0_3] : memref<16x256xf32, #tpu.memory_space<vmem>>, vector<16x256xf32>
    %c0_4 = arith.constant 0 : index
    %c0_5 = arith.constant 0 : index
    %5 = vector.load %arg4[%c0_4, %c0_5] : memref<256x512xf32, #tpu.memory_space<vmem>>, vector<256x512xf32>
    %cst = arith.constant dense<0.000000e+00> : vector<16x512xf32>
    %6 = tpu.matmul %4, %5, %cst {dimension_numbers = #tpu.dot_dimension_numbers<[1], [0], [0], [1], [0, 0, 1, 1], [], []>} : vector<16x256xf32>, vector<256x512xf32>, vector<16x512xf32> -> vector<16x512xf32>
    %7 = arith.addf %3, %6 : vector<16x512xf32>
    %c0_6 = arith.constant 0 : index
    %c0_7 = arith.constant 0 : index
    %8 = vector.load %arg7[%c0_6, %c0_7] : memref<16x512xf32, #tpu.memory_space<vmem>>, vector<16x512xf32>
    tpu.vector_store %arg7[%c0_6, %c0_7], %7 {strides = array<i32>} : memref<16x512xf32, #tpu.memory_space<vmem>>, vector<16x512xf32>,
    %c0_i32_8 = arith.constant 0 : i32
    %9 = arith.cmpi eq, %arg2, %c0_i32_8 : i32
    %10 = arith.extui %9 : i1 to i32
    %c0_i32_9 = arith.constant 0 : i32
    %11 = arith.cmpi ne, %10, %c0_i32_9 : i32
    scf.if %11 {
      %c0_10 = arith.constant 0 : index
      %c0_11 = arith.constant 0 : index
      %12 = vector.load %arg7[%c0_10, %c0_11] : memref<16x512xf32, #tpu.memory_space<vmem>>, vector<16x512xf32>
      %c0_12 = arith.constant 0 : index
      %c0_13 = arith.constant 0 : index
      %13 = vector.load %arg5[%c0_12, %c0_13] : memref<1x512xf32, #tpu.memory_space<vmem>>, vector<1x512xf32>
      %14 = vector.broadcast %13 : vector<1x512xf32> to vector<16x512xf32>
      %15 = arith.addf %12, %14 : vector<16x512xf32>
      %c0_14 = arith.constant 0 : index
      %c0_15 = arith.constant 0 : index
      %16 = vector.load %arg6[%c0_14, %c0_15] : memref<16x512xf32, #tpu.memory_space<vmem>>, vector<16x512xf32>
      tpu.vector_store %arg6[%c0_14, %c0_15], %15 {strides = array<i32>} : memref<16x512xf32, #tpu.memory_space<vmem>>, vector<16x512xf32>,
    } else {
    }
    return
  }
  func.func @transform_0(%arg0: i32, %arg1: i32, %arg2: i32) -> (i32, i32) {
    %c0_i32 = arith.constant 0 : i32
    return %arg0, %arg2 : i32, i32
  }
  func.func @transform_1(%arg0: i32, %arg1: i32, %arg2: i32) -> (i32, i32) {
    %c0_i32 = arith.constant 0 : i32
    return %arg2, %arg1 : i32, i32
  }
  func.func @transform_2(%arg0: i32, %arg1: i32, %arg2: i32) -> (i32, i32) {
    %c0_i32 = arith.constant 0 : i32
    %c0_i32_0 = arith.constant 0 : i32
    return %c0_i32, %arg1 : i32, i32
  }
  func.func @transform_3(%arg0: i32, %arg1: i32, %arg2: i32) -> (i32, i32) {
    %c0_i32 = arith.constant 0 : i32
    return %arg0, %arg1 : i32, i32
  }
}

</mosaic_0001>

<llo_original>
// kernel: decoder_forward.6
$region0: #{decoder_forward.6}
  #allocation0 [shape = 'u32[]', space=smem, size = 0x4, offset = 0x4, fixed_abs, tag = 'smem constant byte address 0x4 - core index']
  #allocation1 [shape = 'u32[144,128]{1,0:T(1,128)}', space=vmem, size = 0x12000, scoped, tag = 'internal scratch']
  #allocation2 [shape = 'f32[32,128]{1,0:T(8,128)}', space=vmem, size = 0x4000, scoped, tag = 'scratch operand']
  %s0 = inlined_call_operand.vmem [shape: f32[32,256], index: 0, kind: input, shape index: {}]
  %s1 = inlined_call_operand.vmem [shape: f32[256,128], index: 1, kind: input, shape index: {}]
  %s2 = inlined_call_operand.vmem [shape: f32[1,128], index: 2, kind: input, shape index: {}]
  %s3 = inlined_call_operand.vmem [shape: f32[32,128], index: 3, kind: output, shape index: {}]
  %s4 = sld [smem:[#allocation0]]
  $region30: #{decoder_forward.6} parent=0
    _
  %s6 = ssub.s32 1, %s4
  %s7 = scalar_select 0, %s6, %s4
  // Predicated region
  $region2: #{decoder_forward.6} parent=0 // pred_check
    _
  $region3: #{decoder_forward.6} parent=0 // pred_check_branch
    %9 = sbr.rel (0) target = $region5
  $region4: #{decoder_forward.6} parent=0 // pred_region
    _
  $region5: #{decoder_forward.6} parent=0 // pred_fallthru
    _
  // Predicated region
  $region6: #{decoder_forward.6} parent=0 // pred_check
    _
  $region7: #{decoder_forward.6} parent=0 // pred_check_branch
    %11 = sbr.rel (0) target = $region9
  $region8: #{decoder_forward.6} parent=0 // pred_region
    _
  $region9: #{decoder_forward.6} parent=0 // pred_fallthru
    _
  // Predicated region
  $region10: #{decoder_forward.6} parent=0 // pred_check
    _
  $region11: #{decoder_forward.6} parent=0 // pred_check_branch
    %13 = sbr.rel (0) target = $region13
  $region12: #{decoder_forward.6} parent=0 // pred_region
    _
  $region13: #{decoder_forward.6} parent=0 // pred_fallthru
    _
  %p14 = scmp.eq.s32.totalorder 0, 0
  // Predicated region
  $region14: #{decoder_forward.6} parent=0 // pred_check
    %p15 = pneg %p14
  $region15: #{decoder_forward.6} parent=0 // pred_check_branch
    %17 = sbr.rel (%p15) target = $region17
  $region16: #{decoder_forward.6} parent=0 // pred_region
    %18 = vst [vmem:[#allocation2] sm:$0xff] 0.0
    %19 = vst [vmem:[#allocation2 + $0x8] sm:$0xff] 0.0
    %20 = vst [vmem:[#allocation2 + $0x10] sm:$0xff] 0.0
    %21 = vst [vmem:[#allocation2 + $0x18] sm:$0xff] 0.0
  $region17: #{decoder_forward.6} parent=0 // pred_fallthru
    _
  %v22 = vld [vmem:[#allocation2] sm:$0xff]
  %v23 = vld [vmem:[#allocation2 + $0x8] sm:$0xff]
  %v24 = vld [vmem:[#allocation2 + $0x10] sm:$0xff]
  %v25 = vld [vmem:[#allocation2 + $0x18] sm:$0xff]
  %v26 = vld [vmem:[%s0] sm:$0xff]
  %v27 = vld [vmem:[%s0 + $0x8] sm:$0xff]
  %v28 = vld [vmem:[%s0 + $0x10] sm:$0xff]
  %v29 = vld [vmem:[%s0 + $0x18] sm:$0xff]
  %v30 = vld [vmem:[%s0 + $0x20] sm:$0xff]
  %v31 = vld [vmem:[%s0 + $0x28] sm:$0xff]
  %v32 = vld [vmem:[%s0 + $0x30] sm:$0xff]
  %v33 = vld [vmem:[%s0 + $0x38] sm:$0xff]
  %v34 = vld [vmem:[%s1] sm:$0xff]
  %v35 = vld [vmem:[%s1 + $0x8] sm:$0xff]
  %v36 = vld [vmem:[%s1 + $0x10] sm:$0xff]
  %v37 = vld [vmem:[%s1 + $0x18] sm:$0xff]
  %v38 = vld [vmem:[%s1 + $0x20] sm:$0xff]
  %v39 = vld [vmem:[%s1 + $0x28] sm:$0xff]
  %v40 = vld [vmem:[%s1 + $0x30] sm:$0xff]
  %v41 = vld [vmem:[%s1 + $0x38] sm:$0xff]
  %v42 = vld [vmem:[%s1 + $0x40] sm:$0xff]
  %v43 = vld [vmem:[%s1 + $0x48] sm:$0xff]
  %v44 = vld [vmem:[%s1 + $0x50] sm:$0xff]
  %v45 = vld [vmem:[%s1 + $0x58] sm:$0xff]
  %v46 = vld [vmem:[%s1 + $0x60] sm:$0xff]
  %v47 = vld [vmem:[%s1 + $0x68] sm:$0xff]
  %v48 = vld [vmem:[%s1 + $0x70] sm:$0xff]
  %v49 = vld [vmem:[%s1 + $0x78] sm:$0xff]
  %v50 = vld [vmem:[%s1 + $0x80] sm:$0xff]
  %v51 = vld [vmem:[%s1 + $0x88] sm:$0xff]
  %v52 = vld [vmem:[%s1 + $0x90] sm:$0xff]
  %v53 = vld [vmem:[%s1 + $0x98] sm:$0xff]
  %v54 = vld [vmem:[%s1 + $0xa0] sm:$0xff]
  %v55 = vld [vmem:[%s1 + $0xa8] sm:$0xff]
  %v56 = vld [vmem:[%s1 + $0xb0] sm:$0xff]
  %v57 = vld [vmem:[%s1 + $0xb8] sm:$0xff]
  %v58 = vld [vmem:[%s1 + $0xc0] sm:$0xff]
  %v59 = vld [vmem:[%s1 + $0xc8] sm:$0xff]
  %v60 = vld [vmem:[%s1 + $0xd0] sm:$0xff]
  %v61 = vld [vmem:[%s1 + $0xd8] sm:$0xff]
  %v62 = vld [vmem:[%s1 + $0xe0] sm:$0xff]
  %v63 = vld [vmem:[%s1 + $0xe8] sm:$0xff]
  %v64 = vld [vmem:[%s1 + $0xf0] sm:$0xff]
  %v65 = vld [vmem:[%s1 + $0xf8] sm:$0xff]
  %66 = vmatprep.subr.mxu0 0.0
  %67 = vmatpush1.msra.mxu0 %v49
  %68 = vmatprep.subr.mxu0 0.0
  %69 = vmatpush1.msra.mxu0 %v48
  %70 = vmatprep.subr.mxu0 0.0
  %71 = vmatpush1.msra.mxu0 %v47
  %72 = vmatprep.subr.mxu0 0.0
  %73 = vmatpush1.msra.mxu0 %v46
  %74 = vmatprep.subr.mxu0 0.0
  %75 = vmatpush1.msra.mxu0 %v45
  %76 = vmatprep.subr.mxu0 0.0
  %77 = vmatpush1.msra.mxu0 %v44
  %78 = vmatprep.subr.mxu0 0.0
  %79 = vmatpush1.msra.mxu0 %v43
  %80 = vmatprep.subr.mxu0 0.0
  %81 = vmatpush1.msra.mxu0 %v42
  %82 = vmatprep.subr.mxu0 0.0
  %83 = vmatpush1.msra.mxu0 %v41
  %84 = vmatprep.subr.mxu0 0.0
  %85 = vmatpush1.msra.mxu0 %v40
  %86 = vmatprep.subr.mxu0 0.0
  %87 = vmatpush1.msra.mxu0 %v39
  %88 = vmatprep.subr.mxu0 0.0
  %89 = vmatpush1.msra.mxu0 %v38
  %90 = vmatprep.subr.mxu0 0.0
  %91 = vmatpush1.msra.mxu0 %v37
  %92 = vmatprep.subr.mxu0 0.0
  %93 = vmatpush1.msra.mxu0 %v36
  %94 = vmatprep.subr.mxu0 0.0
  %95 = vmatpush1.msra.mxu0 %v35
  %96 = vmatprep.subr.mxu0 0.0
  %97 = vmatpush1.msra.mxu0 %v34
  %98 = vmatprep.subr.mxu0 0.0
  %99 = vmatpush2.msra.mxu0 %v65
  %100 = vmatprep.subr.mxu0 0.0
  %101 = vmatpush2.msra.mxu0 %v64
  %102 = vmatprep.subr.mxu0 0.0
  %103 = vmatpush2.msra.mxu0 %v63
  %104 = vmatprep.subr.mxu0 0.0
  %105 = vmatpush2.msra.mxu0 %v62
  %106 = vmatprep.subr.mxu0 0.0
  %107 = vmatpush2.msra.mxu0 %v61
  %108 = vmatprep.subr.mxu0 0.0
  %109 = vmatpush2.msra.mxu0 %v60
  %110 = vmatprep.subr.mxu0 0.0
  %111 = vmatpush2.msra.mxu0 %v59
  %112 = vmatprep.subr.mxu0 0.0
  %113 = vmatpush2.msra.mxu0 %v58
  %114 = vmatprep.subr.mxu0 0.0
  %115 = vmatpush2.msra.mxu0 %v57
  %116 = vmatprep.subr.mxu0 0.0
  %117 = vmatpush2.msra.mxu0 %v56
  %118 = vmatprep.subr.mxu0 0.0
  %119 = vmatpush2.msra.mxu0 %v55
  %120 = vmatprep.subr.mxu0 0.0
  %121 = vmatpush2.msra.mxu0 %v54
  %122 = vmatprep.subr.mxu0 0.0
  %123 = vmatpush2.msra.mxu0 %v53
  %124 = vmatprep.subr.mxu0 0.0
  %125 = vmatpush2.msra.mxu0 %v52
  %126 = vmatprep.subr.mxu0 0.0
  %127 = vmatpush2.msra.mxu0 %v51
  %128 = vmatprep.subr.mxu0 0.0
  %129 = vmatpush2.msra.mxu0 %v50
  %130 = vmatprep.mubr.f32.mxu0 %v27
  %131 = vmatmul.mubr.f32.gmra.mxu0 %v26
  %v132 = vpop.f32.mrf.mxu0
  %v133 = vadd.f32 0.0, %v132
  %v134 = vpop.f32.mrf.mxu0
  %135 = vmatprep.mubr.f32.mxu0 %v29
  %136 = vmatmul.mubr.f32.gmra.mxu0 %v28
  %v137 = vpop.f32.mrf.mxu0
  %v138 = vadd.f32 0.0, %v137
  %v139 = vpop.f32.mrf.mxu0
  %140 = vmatprep.mubr.f32.mxu0 %v31
  %141 = vmatmul.mubr.f32.gmra.mxu0 %v30
  %v142 = vpop.f32.mrf.mxu0
  %v143 = vadd.f32 0.0, %v142
  %v144 = vpop.f32.mrf.mxu0
  %145 = vmatprep.mubr.f32.mxu0 %v33
  %146 = vmatmul.mubr.f32.gmra.mxu0 %v32
  %v147 = vpop.f32.mrf.mxu0
  %v148 = vadd.f32 0.0, %v147
  %v149 = vpop.f32.mrf.mxu0
  %150 = vdwg.mxu0
  %v151 = vadd.f32 %v22, %v133
  %v152 = vadd.f32 %v23, %v138
  %v153 = vadd.f32 %v24, %v143
  %v154 = vadd.f32 %v25, %v148
  %155 = vst [vmem:[#allocation2] sm:$0xff] %v151
  %156 = vst [vmem:[#allocation2 + $0x8] sm:$0xff] %v152
  %157 = vst [vmem:[#allocation2 + $0x10] sm:$0xff] %v153
  %158 = vst [vmem:[#allocation2 + $0x18] sm:$0xff] %v154
  // Predicated region
  $region18: #{decoder_forward.6} parent=0 // pred_check
    %p159 = pneg %p14
  $region19: #{decoder_forward.6} parent=0 // pred_check_branch
    %161 = sbr.rel (%p159) target = $region21
  $region20: #{decoder_forward.6} parent=0 // pred_region
    %v162 = vld [vmem:[#allocation2] sm:$0xff]
    %v163 = vld [vmem:[#allocation2 + $0x8] sm:$0xff]
    %v164 = vld [vmem:[#allocation2 + $0x10] sm:$0xff]
    %v165 = vld [vmem:[#allocation2 + $0x18] sm:$0xff]
    %v166 = vld [vmem:[%s2] sm:$0x1]
    %v168 = vlaneseq
    %v169 = vshrl.u32 %v168, 7
    %v170 = vsub.s32 0, %v169
    %v171 = vrot.slane %v166, %v170
    %v173 = vadd.f32 %v162, %v171
    %v174 = vadd.f32 %v163, %v171
    %v175 = vadd.f32 %v164, %v171
    %v176 = vadd.f32 %v165, %v171
    %177 = vst [vmem:[%s3] sm:$0xff] %v173
    %178 = vst [vmem:[%s3 + $0x8] sm:$0xff] %v174
    %179 = vst [vmem:[%s3 + $0x10] sm:$0xff] %v175
    %180 = vst [vmem:[%s3 + $0x18] sm:$0xff] %v176
  $region21: #{decoder_forward.6} parent=0 // pred_fallthru
    _
  // Predicated region
  $region22: #{decoder_forward.6} parent=0 // pred_check
    _
  $region23: #{decoder_forward.6} parent=0 // pred_check_branch
    %182 = sbr.rel (0) target = $region25
  $region24: #{decoder_forward.6} parent=0 // pred_region
    _
  $region25: #{decoder_forward.6} parent=0 // pred_fallthru
    _
  // Predicated region
  $region26: #{decoder_forward.6} parent=0 // pred_check
    _
  $region27: #{decoder_forward.6} parent=0 // pred_check_branch
    %184 = sbr.rel (0) target = $region29
  $region28: #{decoder_forward.6} parent=0 // pred_region
    _
  $region29: #{decoder_forward.6} parent=0 // pred_fallthru
    _

// kernel: decoder_forward.7
$region0: #{decoder_forward.7}
  #allocation0 [shape = 'u32[]', space=smem, size = 0x4, offset = 0x4, fixed_abs, tag = 'smem constant byte address 0x4 - core index']
  #allocation1 [shape = 'u32[144,128]{1,0:T(1,128)}', space=vmem, size = 0x12000, scoped, tag = 'internal scratch']
  #allocation2 [shape = 'f32[16,512]{1,0:T(8,128)}', space=vmem, size = 0x8000, scoped, tag = 'scratch operand']
  %s0 = inlined_call_operand.vmem [shape: f32[16,128], index: 0, kind: input, shape index: {}]
  %s1 = inlined_call_operand.vmem [shape: f32[128,1024], index: 1, kind: input, shape index: {}]
  %s2 = inlined_call_operand.vmem [shape: f32[1,1024], index: 2, kind: input, shape index: {}]
  %s3 = inlined_call_operand.vmem [shape: f32[16,1024], index: 3, kind: output, shape index: {}]
  %s4 = sld [smem:[#allocation0]]
  $region95: #{decoder_forward.7} parent=0
    _
  %s6 = ssub.s32 1, %s4
  %s7 = scalar_select 0, %s6, %s4
  $region1: #{decoder_forward.7} parent=0
    #allocation3 [shape = 'u8[524288]{0}', space=vmem, size = 0x80000, scoped, tag = 'input window, operand 1']
    #allocation4 [shape = 'u8[65536]{0}', space=vmem, size = 0x10000, scoped, tag = 'output window, operand 0']
    loop: start=0, step=1, limit=4
    $region2: #{decoder_forward.7} parent=1 // loop_pre_header
      _
    $region3: #{decoder_forward.7} parent=1 // loop_header
      %s9 = sphi 0, %s13
      %p10 = scmp.ge.s32.totalorder %s9, 4
      %s16 = sphi 0, %s35
      %s17 = sphi 0, %s31
      %s18 = sphi 0, %s27
      %s19 = sphi 0, %s16
      %s20 = sphi 0, %s17
      %s21 = sphi 0, %s18
      %s22 = sphi 0, %s19
      %s23 = sphi 0, %s20
      %s24 = sphi 0, %s21
      %s40 = sphi 0, %s42
      %s43 = sphi 0, %s40
      %s44 = sphi 0, %s43
      %s60 = sphi 0, %s44
      %s68 = sphi 0, %s70
      %s71 = sphi 0, %s68
      %s72 = sphi 0, %s71
      %s88 = sphi 0, %s72
      %s94 = sphi 0, %s96
      %s97 = sphi 0, %s94
      %s98 = sphi 0, %s97
      %s114 = sphi 0, %s98
      %s122 = sphi 0, %s124
      %s125 = sphi 0, %s122
      %s126 = sphi 0, %s125
      %s142 = sphi 0, %s126
    $region4: #{decoder_forward.7} parent=1 // loop_header_branch
      %12 = sbr.rel (%p10) target = $region8
    $region5: #{decoder_forward.7} parent=1 // loop_body
      %s14 = ssub.s32 %s9, 1
      %s15 = ssub.s32 %s9, 2
      %s25 = sadd.s32 1, %s18
      %p26 = scmp.ge.s32.totalorder %s25, 1
      %s27 = scalar_select %p26, 0, %s25
      %s28 = sadd.s32 1, %s17
      %s29 = scalar_select %p26, %s28, %s17
      %p30 = scmp.ge.s32.totalorder %s29, 2
      %s31 = scalar_select %p30, 0, %s29
      %s32 = sadd.s32 1, %s16
      %s33 = scalar_select %p30, %s32, %s16
      %p34 = scmp.ge.s32.totalorder %s33, 1
      %s35 = scalar_select %p34, 0, %s33
      %s36 = ssub.s32 %s16, %s35
      %s37 = ssub.s32 %s18, %s27
      %s38 = sor.u32 %s36, %s37
      %p39 = scmp.eq.s32.totalorder %s38, 0
      %s41 = sadd.s32 %s40, 1
      %s42 = scalar_select %p39, %s40, %s41
      %p45 = pneg %p39
      %p46 = scmp.eq.s32.totalorder %s9, 1
      %p47 = por %p45, %p46
      %p48 = scmp.ne.s32.totalorder %s40, %s43
      %p49 = scmp.eq.s32.totalorder %s9, 0
      %p50 = por %p48, %p49
      %p51 = scmp.ne.s32.totalorder %s40, %s43
      %p52 = scmp.eq.s32.totalorder %s14, 1
      %p53 = por %p51, %p52
      %p54 = scmp.ne.s32.totalorder %s43, %s44
      %p55 = scmp.eq.s32.totalorder %s14, 0
      %p56 = por %p54, %p55
      %p57 = scmp.ne.s32.totalorder %s43, %s44
      %p58 = scmp.eq.s32.totalorder %s15, 1
      %p59 = por %p57, %p58
      %p61 = scmp.ne.s32.totalorder %s44, %s60
      %p62 = scmp.eq.s32.totalorder %s15, 0
      %p63 = por %p61, %p62
      %s64 = ssub.s32 %s18, %s27
      %s65 = ssub.s32 %s17, %s31
      %s66 = sor.u32 %s64, %s65
      %p67 = scmp.eq.s32.totalorder %s66, 0
      %s69 = sadd.s32 %s68, 1
      %s70 = scalar_select %p67, %s68, %s69
      %p73 = pneg %p67
      %p74 = scmp.eq.s32.totalorder %s9, 1
      %p75 = por %p73, %p74
      %p76 = scmp.ne.s32.totalorder %s68, %s71
      %p77 = scmp.eq.s32.totalorder %s9, 0
      %p78 = por %p76, %p77
      %p79 = scmp.ne.s32.totalorder %s68, %s71
      %p80 = scmp.eq.s32.totalorder %s14, 1
      %p81 = por %p79, %p80
      %p82 = scmp.ne.s32.totalorder %s71, %s72
      %p83 = scmp.eq.s32.totalorder %s14, 0
      %p84 = por %p82, %p83
      %p85 = scmp.ne.s32.totalorder %s71, %s72
      %p86 = scmp.eq.s32.totalorder %s15, 1
      %p87 = por %p85, %p86
      %p89 = scmp.ne.s32.totalorder %s72, %s88
      %p90 = scmp.eq.s32.totalorder %s15, 0
      %p91 = por %p89, %p90
      %s92 = ssub.s32 %s17, %s31
      %p93 = scmp.eq.s32.totalorder %s92, 0
      %s95 = sadd.s32 %s94, 1
      %s96 = scalar_select %p93, %s94, %s95
      %p99 = pneg %p93
      %p100 = scmp.eq.s32.totalorder %s9, 1
      %p101 = por %p99, %p100
      %p102 = scmp.ne.s32.totalorder %s94, %s97
      %p103 = scmp.eq.s32.totalorder %s9, 0
      %p104 = por %p102, %p103
      %p105 = scmp.ne.s32.totalorder %s94, %s97
      %p106 = scmp.eq.s32.totalorder %s14, 1
      %p107 = por %p105, %p106
      %p108 = scmp.ne.s32.totalorder %s97, %s98
      %p109 = scmp.eq.s32.totalorder %s14, 0
      %p110 = por %p108, %p109
      %p111 = scmp.ne.s32.totalorder %s97, %s98
      %p112 = scmp.eq.s32.totalorder %s15, 1
      %p113 = por %p111, %p112
      %p115 = scmp.ne.s32.totalorder %s98, %s114
      %p116 = scmp.eq.s32.totalorder %s15, 0
      %p117 = por %p115, %p116
      %s118 = ssub.s32 %s16, %s35
      %s119 = ssub.s32 %s17, %s31
      %s120 = sor.u32 %s118, %s119
      %p121 = scmp.eq.s32.totalorder %s120, 0
      %s123 = sadd.s32 %s122, 1
      %s124 = scalar_select %p121, %s122, %s123
      %p127 = pneg %p121
      %p128 = scmp.eq.s32.totalorder %s9, 1
      %p129 = por %p127, %p128
      %p130 = scmp.ne.s32.totalorder %s122, %s125
      %p131 = scmp.eq.s32.totalorder %s9, 0
      %p132 = por %p130, %p131
      %p133 = scmp.ne.s32.totalorder %s122, %s125
      %p134 = scmp.eq.s32.totalorder %s14, 1
      %p135 = por %p133, %p134
      %p136 = scmp.ne.s32.totalorder %s125, %s126
      %p137 = scmp.eq.s32.totalorder %s14, 0
      %p138 = por %p136, %p137
      %p139 = scmp.ne.s32.totalorder %s125, %s126
      %p140 = scmp.eq.s32.totalorder %s15, 1
      %p141 = por %p139, %p140
      %p143 = scmp.ne.s32.totalorder %s126, %s142
      %p144 = scmp.eq.s32.totalorder %s15, 0
      %p145 = por %p143, %p144
      %p146 = scmp.le.s32.totalorder 1, %s9
      %p147 = scmp.lt.s32.totalorder %s9, 3
      %p148 = pnand %p146, %p147
      %p149 = pneg %p148
      // Predicated region
      $region9: #{decoder_forward.7} parent=5 // pred_check
        _
      $region10: #{decoder_forward.7} parent=5 // pred_check_branch
        %151 = sbr.rel (%p148) target = $region12
      $region11: #{decoder_forward.7} parent=5 // pred_region
        %s152 = ssub.s32 %s9, 1
        // Predicated region
        $region13: #{decoder_forward.7} parent=11 // pred_check
          %p153 = pneg %p56
        $region14: #{decoder_forward.7} parent=11 // pred_check_branch
          %155 = sbr.rel (%p153) target = $region16
        $region15: #{decoder_forward.7} parent=11 // pred_region
          %s156 = smul.u32 2, %s19
          %p157 = scmp.lt.s32.totalorder %s156, 1
          %s158 = scalar_select %p157, %s156, 1
          %p159 = scmp.lt.s32.totalorder %s21, 0
          %s160 = scalar_select %p159, %s21, 0
          %s161 = sadd.s32 %s160, %s158
          %s162 = smul.addr %s161, 8
          %s163 = scalar_lea.vmem %s0, %s162
          %s164 = smul.u32 2, %s19
        $region16: #{decoder_forward.7} parent=11 // pred_fallthru
          _
      $region12: #{decoder_forward.7} parent=5 // pred_fallthru
        _
      %p165 = scmp.lt.s32.totalorder %s9, 2
      // Predicated region
      $region17: #{decoder_forward.7} parent=5 // pred_check
        %p166 = pneg %p165
      $region18: #{decoder_forward.7} parent=5 // pred_check_branch
        %168 = sbr.rel (%p166) target = $region20
      $region19: #{decoder_forward.7} parent=5 // pred_region
        // Predicated region
        $region21: #{decoder_forward.7} parent=19 // pred_check
          %p169 = pneg %p78
        $region22: #{decoder_forward.7} parent=19 // pred_check_branch
          %171 = sbr.rel (%p169) target = $region24
        $region23: #{decoder_forward.7} parent=19 // pred_region
          %s172 = sand.u32 %s68, 1
          %s173 = sand.u32 %s68, 1
          %s174 = smul.addr %s173, 512
          %s175 = scalar_lea.vmem [#allocation3], %s174
          %s176 = smul.u32 16, %s18
          %s177 = smul.u32 4, %s17
          %s178 = smul.addr %s176, 8
          %s179 = sadd.s32 %s177, %s178
          %s180 = smul.addr %s179, 8
          %s181 = scalar_lea.vmem %s1, %s180
          // Predicated region
          $region25: #{decoder_forward.7} parent=23 // pred_check
            _
          $region26: #{decoder_forward.7} parent=23 // pred_check_branch
            %183 = sbr.rel (0) target = $region28
          $region27: #{decoder_forward.7} parent=23 // pred_region
            // Predicated region
            $region29: #{decoder_forward.7} parent=27 // pred_check
              _
            $region30: #{decoder_forward.7} parent=27 // pred_check_branch
              %185 = sbr.rel (0) target = $region32
            $region31: #{decoder_forward.7} parent=27 // pred_region
              loop: start=0, step=1, limit=1
              $region33: #{decoder_forward.7} parent=31 // loop_pre_header
                _
              $region34: #{decoder_forward.7} parent=31 // loop_header
                %s187 = sphi 0, %s191
                %p188 = scmp.ge.s32.totalorder %s187, 1
                %s192 = sphi %s181, %s181
                %s193 = sphi %s175, %s175
              $region35: #{decoder_forward.7} parent=31 // loop_header_branch
                %190 = sbr.rel (%p188) target = $region39
              $region36: #{decoder_forward.7} parent=31 // loop_body
                %v194 = vld [vmem:[%s192] sm:$0xff]
                %195 = vst [vmem:[%s193] sm:$0xff] %v194
                %v196 = vld [vmem:[%s192 + $0x8] sm:$0xff]
                %197 = vst [vmem:[%s193 + $0x8] sm:$0xff] %v196
                %v198 = vld [vmem:[%s192 + $0x10] sm:$0xff]
                %199 = vst [vmem:[%s193 + $0x10] sm:$0xff] %v198
                %v200 = vld [vmem:[%s192 + $0x18] sm:$0xff]
                %201 = vst [vmem:[%s193 + $0x18] sm:$0xff] %v200
                %v202 = vld [vmem:[%s192 + $0x40] sm:$0xff]
                %203 = vst [vmem:[%s193 + $0x20] sm:$0xff] %v202
                %v204 = vld [vmem:[%s192 + $0x48] sm:$0xff]
                %205 = vst [vmem:[%s193 + $0x28] sm:$0xff] %v204
                %v206 = vld [vmem:[%s192 + $0x50] sm:$0xff]
                %207 = vst [vmem:[%s193 + $0x30] sm:$0xff] %v206
                %v208 = vld [vmem:[%s192 + $0x58] sm:$0xff]
                %209 = vst [vmem:[%s193 + $0x38] sm:$0xff] %v208
                %v210 = vld [vmem:[%s192 + $0x80] sm:$0xff]
                %211 = vst [vmem:[%s193 + $0x40] sm:$0xff] %v210
                %v212 = vld [vmem:[%s192 + $0x88] sm:$0xff]
                %213 = vst [vmem:[%s193 + $0x48] sm:$0xff] %v212
                %v214 = vld [vmem:[%s192 + $0x90] sm:$0xff]
                %215 = vst [vmem:[%s193 + $0x50] sm:$0xff] %v214
                %v216 = vld [vmem:[%s192 + $0x98] sm:$0xff]
                %217 = vst [vmem:[%s193 + $0x58] sm:$0xff] %v216
                %v218 = vld [vmem:[%s192 + $0xc0] sm:$0xff]
                %219 = vst [vmem:[%s193 + $0x60] sm:$0xff] %v218
                %v220 = vld [vmem:[%s192 + $0xc8] sm:$0xff]
                %221 = vst [vmem:[%s193 + $0x68] sm:$0xff] %v220
                %v222 = vld [vmem:[%s192 + $0xd0] sm:$0xff]
                %223 = vst [vmem:[%s193 + $0x70] sm:$0xff] %v222
                %v224 = vld [vmem:[%s192 + $0xd8] sm:$0xff]
                %225 = vst [vmem:[%s193 + $0x78] sm:$0xff] %v224
                %v226 = vld [vmem:[%s192 + $0x100] sm:$0xff]
                %227 = vst [vmem:[%s193 + $0x80] sm:$0xff] %v226
                %v228 = vld [vmem:[%s192 + $0x108] sm:$0xff]
                %229 = vst [vmem:[%s193 + $0x88] sm:$0xff] %v228
                %v230 = vld [vmem:[%s192 + $0x110] sm:$0xff]
                %231 = vst [vmem:[%s193 + $0x90] sm:$0xff] %v230
                %v232 = vld [vmem:[%s192 + $0x118] sm:$0xff]
                %233 = vst [vmem:[%s193 + $0x98] sm:$0xff] %v232
                %v234 = vld [vmem:[%s192 + $0x140] sm:$0xff]
                %235 = vst [vmem:[%s193 + $0xa0] sm:$0xff] %v234
                %v236 = vld [vmem:[%s192 + $0x148] sm:$0xff]
                %237 = vst [vmem:[%s193 + $0xa8] sm:$0xff] %v236
                %v238 = vld [vmem:[%s192 + $0x150] sm:$0xff]
                %239 = vst [vmem:[%s193 + $0xb0] sm:$0xff] %v238
                %v240 = vld [vmem:[%s192 + $0x158] sm:$0xff]
                %241 = vst [vmem:[%s193 + $0xb8] sm:$0xff] %v240
                %v242 = vld [vmem:[%s192 + $0x180] sm:$0xff]
                %243 = vst [vmem:[%s193 + $0xc0] sm:$0xff] %v242
                %v244 = vld [vmem:[%s192 + $0x188] sm:$0xff]
                %245 = vst [vmem:[%s193 + $0xc8] sm:$0xff] %v244
                %v246 = vld [vmem:[%s192 + $0x190] sm:$0xff]
                %247 = vst [vmem:[%s193 + $0xd0] sm:$0xff] %v246
                %v248 = vld [vmem:[%s192 + $0x198] sm:$0xff]
                %249 = vst [vmem:[%s193 + $0xd8] sm:$0xff] %v248
                %v250 = vld [vmem:[%s192 + $0x1c0] sm:$0xff]
                %251 = vst [vmem:[%s193 + $0xe0] sm:$0xff] %v250
                %v252 = vld [vmem:[%s192 + $0x1c8] sm:$0xff]
                %253 = vst [vmem:[%s193 + $0xe8] sm:$0xff] %v252
                %v254 = vld [vmem:[%s192 + $0x1d0] sm:$0xff]
                %255 = vst [vmem:[%s193 + $0xf0] sm:$0xff] %v254
                %v256 = vld [vmem:[%s192 + $0x1d8] sm:$0xff]
                %257 = vst [vmem:[%s193 + $0xf8] sm:$0xff] %v256
                %v258 = vld [vmem:[%s192 + $0x200] sm:$0xff]
                %259 = vst [vmem:[%s193 + $0x100] sm:$0xff] %v258
                %v260 = vld [vmem:[%s192 + $0x208] sm:$0xff]
                %261 = vst [vmem:[%s193 + $0x108] sm:$0xff] %v260
                %v262 = vld [vmem:[%s192 + $0x210] sm:$0xff]
                %263 = vst [vmem:[%s193 + $0x110] sm:$0xff] %v262
                %v264 = vld [vmem:[%s192 + $0x218] sm:$0xff]
                %265 = vst [vmem:[%s193 + $0x118] sm:$0xff] %v264
                %v266 = vld [vmem:[%s192 + $0x240] sm:$0xff]
                %267 = vst [vmem:[%s193 + $0x120] sm:$0xff] %v266
                %v268 = vld [vmem:[%s192 + $0x248] sm:$0xff]
                %269 = vst [vmem:[%s193 + $0x128] sm:$0xff] %v268
                %v270 = vld [vmem:[%s192 + $0x250] sm:$0xff]
                %271 = vst [vmem:[%s193 + $0x130] sm:$0xff] %v270
                %v272 = vld [vmem:[%s192 + $0x258] sm:$0xff]
                %273 = vst [vmem:[%s193 + $0x138] sm:$0xff] %v272
                %v274 = vld [vmem:[%s192 + $0x280] sm:$0xff]
                %275 = vst [vmem:[%s193 + $0x140] sm:$0xff] %v274
                %v276 = vld [vmem:[%s192 + $0x288] sm:$0xff]
                %277 = vst [vmem:[%s193 + $0x148] sm:$0xff] %v276
                %v278 = vld [vmem:[%s192 + $0x290] sm:$0xff]
                %279 = vst [vmem:[%s193 + $0x150] sm:$0xff] %v278
                %v280 = vld [vmem:[%s192 + $0x298] sm:$0xff]
                %281 = vst [vmem:[%s193 + $0x158] sm:$0xff] %v280
                %v282 = vld [vmem:[%s192 + $0x2c0] sm:$0xff]
                %283 = vst [vmem:[%s193 + $0x160] sm:$0xff] %v282
                %v284 = vld [vmem:[%s192 + $0x2c8] sm:$0xff]
                %285 = vst [vmem:[%s193 + $0x168] sm:$0xff] %v284
                %v286 = vld [vmem:[%s192 + $0x2d0] sm:$0xff]
                %287 = vst [vmem:[%s193 + $0x170] sm:$0xff] %v286
                %v288 = vld [vmem:[%s192 + $0x2d8] sm:$0xff]
                %289 = vst [vmem:[%s193 + $0x178] sm:$0xff] %v288
                %v290 = vld [vmem:[%s192 + $0x300] sm:$0xff]
                %291 = vst [vmem:[%s193 + $0x180] sm:$0xff] %v290
                %v292 = vld [vmem:[%s192 + $0x308] sm:$0xff]
                %293 = vst [vmem:[%s193 + $0x188] sm:$0xff] %v292
                %v294 = vld [vmem:[%s192 + $0x310] sm:$0xff]
                %295 = vst [vmem:[%s193 + $0x190] sm:$0xff] %v294
                %v296 = vld [vmem:[%s192 + $0x318] sm:$0xff]
                %297 = vst [vmem:[%s193 + $0x198] sm:$0xff] %v296
                %v298 = vld [vmem:[%s192 + $0x340] sm:$0xff]
                %299 = vst [vmem:[%s193 + $0x1a0] sm:$0xff] %v298
                %v300 = vld [vmem:[%s192 + $0x348] sm:$0xff]
                %301 = vst [vmem:[%s193 + $0x1a8] sm:$0xff] %v300
                %v302 = vld [vmem:[%s192 + $0x350] sm:$0xff]
                %303 = vst [vmem:[%s193 + $0x1b0] sm:$0xff] %v302
                %v304 = vld [vmem:[%s192 + $0x358] sm:$0xff]
                %305 = vst [vmem:[%s193 + $0x1b8] sm:$0xff] %v304
                %v306 = vld [vmem:[%s192 + $0x380] sm:$0xff]
                %307 = vst [vmem:[%s193 + $0x1c0] sm:$0xff] %v306
                %v308 = vld [vmem:[%s192 + $0x388] sm:$0xff]
                %309 = vst [vmem:[%s193 + $0x1c8] sm:$0xff] %v308
                %v310 = vld [vmem:[%s192 + $0x390] sm:$0xff]
                %311 = vst [vmem:[%s193 + $0x1d0] sm:$0xff] %v310
                %v312 = vld [vmem:[%s192 + $0x398] sm:$0xff]
                %313 = vst [vmem:[%s193 + $0x1d8] sm:$0xff] %v312
                %v314 = vld [vmem:[%s192 + $0x3c0] sm:$0xff]
                %315 = vst [vmem:[%s193 + $0x1e0] sm:$0xff] %v314
                %v316 = vld [vmem:[%s192 + $0x3c8] sm:$0xff]
                %317 = vst [vmem:[%s193 + $0x1e8] sm:$0xff] %v316
                %v318 = vld [vmem:[%s192 + $0x3d0] sm:$0xff]
                %319 = vst [vmem:[%s193 + $0x1f0] sm:$0xff] %v318
                %v320 = vld [vmem:[%s192 + $0x3d8] sm:$0xff]
                %321 = vst [vmem:[%s193 + $0x1f8] sm:$0xff] %v320
              $region37: #{decoder_forward.7} parent=31 // loop_footer
                %s191 = sadd.s32 1, %s187
              $region38: #{decoder_forward.7} parent=31 // loop_footer_branch
                %186 = sbr.rel target = $region34
              $region39: #{decoder_forward.7} parent=31 // loop_exit
                _
            $region32: #{decoder_forward.7} parent=27 // pred_fallthru
              _
            // Predicated region
            $region40: #{decoder_forward.7} parent=27 // pred_check
              _
            $region41: #{decoder_forward.7} parent=27 // pred_check_branch
              %323 = sbr.rel target = $region43
            $region42: #{decoder_forward.7} parent=27 // pred_region
              _
            $region43: #{decoder_forward.7} parent=27 // pred_fallthru
              _
          $region28: #{decoder_forward.7} parent=23 // pred_fallthru
            _
          %324 = vnop
        $region24: #{decoder_forward.7} parent=19 // pred_fallthru
          _
        // Predicated region
        $region44: #{decoder_forward.7} parent=19 // pred_check
          %p325 = pneg %p104
        $region45: #{decoder_forward.7} parent=19 // pred_check_branch
          %327 = sbr.rel (%p325) target = $region47
        $region46: #{decoder_forward.7} parent=19 // pred_region
          %s328 = smul.u32 4, %s17
          %p329 = scmp.lt.s32.totalorder %s328, 7
          %s330 = scalar_select %p329, %s328, 7
          %s331 = scalar_lea.vmem %s2, %s330
          %s332 = smul.u32 4, %s17
        $region47: #{decoder_forward.7} parent=19 // pred_fallthru
          _
      $region20: #{decoder_forward.7} parent=5 // pred_fallthru
        _
      %p333 = scmp.le.s32.totalorder 1, %s9
      %p334 = scmp.lt.s32.totalorder %s9, 3
      %p335 = pnand %p333, %p334
      %p336 = pneg %p335
      // Predicated region
      $region48: #{decoder_forward.7} parent=5 // pred_check
        _
      $region49: #{decoder_forward.7} parent=5 // pred_check_branch
        %338 = sbr.rel (%p335) target = $region51
      $region50: #{decoder_forward.7} parent=5 // pred_region
        %s339 = ssub.s32 %s9, 1
        %s340 = sand.u32 %s71, 1
        %s341 = sand.u32 %s71, 1
        %s342 = smul.addr %s341, 512
        %s343 = scalar_lea.vmem [#allocation3], %s342
        // Predicated region
        $region52: #{decoder_forward.7} parent=50 // pred_check
          %p344 = pneg %p84
        $region53: #{decoder_forward.7} parent=50 // pred_check_branch
          %346 = sbr.rel (%p344) target = $region55
        $region54: #{decoder_forward.7} parent=50 // pred_region
          _
        $region55: #{decoder_forward.7} parent=50 // pred_fallthru
          _
        %s347 = smul.u32 2, %s19
        %p348 = scmp.lt.s32.totalorder %s347, 1
        %s349 = scalar_select %p348, %s347, 1
        %p350 = scmp.lt.s32.totalorder %s21, 0
        %s351 = scalar_select %p350, %s21, 0
        %s352 = sadd.s32 %s351, %s349
        %s353 = smul.addr %s352, 8
        %s354 = scalar_lea.vmem %s0, %s353
        %p355 = pneg %p56
        %p356 = pneg %p53
        %s357 = sand.u32 %s71, 1
        %s358 = sand.u32 %s71, 1
        %s359 = smul.addr %s358, 512
        %s360 = scalar_lea.vmem [#allocation3], %s359
        %p361 = pneg %p84
        %p362 = pneg %p81
        %s363 = smul.u32 4, %s20
        %p364 = scmp.lt.s32.totalorder %s363, 7
        %s365 = scalar_select %p364, %s363, 7
        %s366 = scalar_lea.vmem %s2, %s365
        %p367 = pneg %p110
        %p368 = pneg %p107
        %p369 = pneg %p138
        %p370 = pneg %p135
        %s371 = sand.u32 %s125, 1
        %s372 = sand.u32 %s125, 1
        %s373 = smul.addr %s372, 64
        %s374 = scalar_lea.vmem [#allocation4], %s373
        %s375 = smul.u32 2, %s19
        %p376 = scmp.lt.s32.totalorder %s375, 1
        %s377 = scalar_select %p376, %s375, 1
        %p378 = scmp.lt.s32.totalorder %s21, 0
        %s379 = scalar_select %p378, %s21, 0
        %s380 = sadd.s32 %s379, %s377
        %s381 = smul.addr %s380, 8
        %s382 = scalar_lea.vmem %s0, %s381
        %s383 = smul.u32 2, %s19
        %s384 = smul.u32 16, %s21
        %s385 = smul.u32 4, %s20
        %s386 = smul.u32 4, %s20
        %p387 = scmp.lt.s32.totalorder %s386, 7
        %s388 = scalar_select %p387, %s386, 7
        %s389 = scalar_lea.vmem %s2, %s388
        %s390 = smul.u32 4, %s20
        %s391 = smul.u32 2, %s19
        %s392 = smul.u32 4, %s20
        %p393 = scmp.eq.s32.totalorder %s21, 0
        // Predicated region
        $region56: #{decoder_forward.7} parent=50 // pred_check
          %p394 = pneg %p393
        $region57: #{decoder_forward.7} parent=50 // pred_check_branch
          %396 = sbr.rel (%p394) target = $region59
        $region58: #{decoder_forward.7} parent=50 // pred_region
          %397 = vst [vmem:[#allocation2] sm:$0xff] 0.0
          %398 = vst [vmem:[#allocation2 + $0x8] sm:$0xff] 0.0
          %399 = vst [vmem:[#allocation2 + $0x10] sm:$0xff] 0.0
          %400 = vst [vmem:[#allocation2 + $0x18] sm:$0xff] 0.0
          %401 = vst [vmem:[#allocation2 + $0x20] sm:$0xff] 0.0
          %402 = vst [vmem:[#allocation2 + $0x28] sm:$0xff] 0.0
          %403 = vst [vmem:[#allocation2 + $0x30] sm:$0xff] 0.0
          %404 = vst [vmem:[#allocation2 + $0x38] sm:$0xff] 0.0
        $region59: #{decoder_forward.7} parent=50 // pred_fallthru
          _
        %v405 = vld [vmem:[#allocation2] sm:$0xff]
        %v406 = vld [vmem:[#allocation2 + $0x8] sm:$0xff]
        %v407 = vld [vmem:[#allocation2 + $0x10] sm:$0xff]
        %v408 = vld [vmem:[#allocation2 + $0x18] sm:$0xff]
        %v409 = vld [vmem:[#allocation2 + $0x20] sm:$0xff]
        %v410 = vld [vmem:[#allocation2 + $0x28] sm:$0xff]
        %v411 = vld [vmem:[#allocation2 + $0x30] sm:$0xff]
        %v412 = vld [vmem:[#allocation2 + $0x38] sm:$0xff]
        %v413 = vld [vmem:[%s382] sm:$0xff]
        %v414 = vld [vmem:[%s382 + $0x8] sm:$0xff]
        %v415 = vld [vmem:[%s343] sm:$0xff]
        %v416 = vld [vmem:[%s343 + $0x8] sm:$0xff]
        %v417 = vld [vmem:[%s343 + $0x10] sm:$0xff]
        %v418 = vld [vmem:[%s343 + $0x18] sm:$0xff]
        %v419 = vld [vmem:[%s343 + $0x20] sm:$0xff]
        %v420 = vld [vmem:[%s343 + $0x28] sm:$0xff]
        %v421 = vld [vmem:[%s343 + $0x30] sm:$0xff]
        %v422 = vld [vmem:[%s343 + $0x38] sm:$0xff]
        %v423 = vld [vmem:[%s343 + $0x40] sm:$0xff]
        %v424 = vld [vmem:[%s343 + $0x48] sm:$0xff]
        %v425 = vld [vmem:[%s343 + $0x50] sm:$0xff]
        %v426 = vld [vmem:[%s343 + $0x58] sm:$0xff]
        %v427 = vld [vmem:[%s343 + $0x60] sm:$0xff]
        %v428 = vld [vmem:[%s343 + $0x68] sm:$0xff]
        %v429 = vld [vmem:[%s343 + $0x70] sm:$0xff]
        %v430 = vld [vmem:[%s343 + $0x78] sm:$0xff]
        %v431 = vld [vmem:[%s343 + $0x80] sm:$0xff]
        %v432 = vld [vmem:[%s343 + $0x88] sm:$0xff]
        %v433 = vld [vmem:[%s343 + $0x90] sm:$0xff]
        %v434 = vld [vmem:[%s343 + $0x98] sm:$0xff]
        %v435 = vld [vmem:[%s343 + $0xa0] sm:$0xff]
        %v436 = vld [vmem:[%s343 + $0xa8] sm:$0xff]
        %v437 = vld [vmem:[%s343 + $0xb0] sm:$0xff]
        %v438 = vld [vmem:[%s343 + $0xb8] sm:$0xff]
        %v439 = vld [vmem:[%s343 + $0xc0] sm:$0xff]
        %v440 = vld [vmem:[%s343 + $0xc8] sm:$0xff]
        %v441 = vld [vmem:[%s343 + $0xd0] sm:$0xff]
        %v442 = vld [vmem:[%s343 + $0xd8] sm:$0xff]
        %v443 = vld [vmem:[%s343 + $0xe0] sm:$0xff]
        %v444 = vld [vmem:[%s343 + $0xe8] sm:$0xff]
        %v445 = vld [vmem:[%s343 + $0xf0] sm:$0xff]
        %v446 = vld [vmem:[%s343 + $0xf8] sm:$0xff]
        %v447 = vld [vmem:[%s343 + $0x100] sm:$0xff]
        %v448 = vld [vmem:[%s343 + $0x108] sm:$0xff]
        %v449 = vld [vmem:[%s343 + $0x110] sm:$0xff]
        %v450 = vld [vmem:[%s343 + $0x118] sm:$0xff]
        %v451 = vld [vmem:[%s343 + $0x120] sm:$0xff]
        %v452 = vld [vmem:[%s343 + $0x128] sm:$0xff]
        %v453 = vld [vmem:[%s343 + $0x130] sm:$0xff]
        %v454 = vld [vmem:[%s343 + $0x138] sm:$0xff]
        %v455 = vld [vmem:[%s343 + $0x140] sm:$0xff]
        %v456 = vld [vmem:[%s343 + $0x148] sm:$0xff]
        %v457 = vld [vmem:[%s343 + $0x150] sm:$0xff]
        %v458 = vld [vmem:[%s343 + $0x158] sm:$0xff]
        %v459 = vld [vmem:[%s343 + $0x160] sm:$0xff]
        %v460 = vld [vmem:[%s343 + $0x168] sm:$0xff]
        %v461 = vld [vmem:[%s343 + $0x170] sm:$0xff]
        %v462 = vld [vmem:[%s343 + $0x178] sm:$0xff]
        %v463 = vld [vmem:[%s343 + $0x180] sm:$0xff]
        %v464 = vld [vmem:[%s343 + $0x188] sm:$0xff]
        %v465 = vld [vmem:[%s343 + $0x190] sm:$0xff]
        %v466 = vld [vmem:[%s343 + $0x198] sm:$0xff]
        %v467 = vld [vmem:[%s343 + $0x1a0] sm:$0xff]
        %v468 = vld [vmem:[%s343 + $0x1a8] sm:$0xff]
        %v469 = vld [vmem:[%s343 + $0x1b0] sm:$0xff]
        %v470 = vld [vmem:[%s343 + $0x1b8] sm:$0xff]
        %v471 = vld [vmem:[%s343 + $0x1c0] sm:$0xff]
        %v472 = vld [vmem:[%s343 + $0x1c8] sm:$0xff]
        %v473 = vld [vmem:[%s343 + $0x1d0] sm:$0xff]
        %v474 = vld [vmem:[%s343 + $0x1d8] sm:$0xff]
        %v475 = vld [vmem:[%s343 + $0x1e0] sm:$0xff]
        %v476 = vld [vmem:[%s343 + $0x1e8] sm:$0xff]
        %v477 = vld [vmem:[%s343 + $0x1f0] sm:$0xff]
        %v478 = vld [vmem:[%s343 + $0x1f8] sm:$0xff]
        %479 = vmatprep.subr.mxu0 %v476
        %480 = vmatpush1.msra.mxu0 %v475
        %481 = vmatprep.subr.mxu0 %v472
        %482 = vmatpush1.msra.mxu0 %v471
        %483 = vmatprep.subr.mxu0 %v468
        %484 = vmatpush1.msra.mxu0 %v467
        %485 = vmatprep.subr.mxu0 %v464
        %486 = vmatpush1.msra.mxu0 %v463
        %487 = vmatprep.subr.mxu0 %v460
        %488 = vmatpush1.msra.mxu0 %v459
        %489 = vmatprep.subr.mxu0 %v456
        %490 = vmatpush1.msra.mxu0 %v455
        %491 = vmatprep.subr.mxu0 %v452
        %492 = vmatpush1.msra.mxu0 %v451
        %493 = vmatprep.subr.mxu0 %v448
        %494 = vmatpush1.msra.mxu0 %v447
        %495 = vmatprep.subr.mxu0 %v444
        %496 = vmatpush1.msra.mxu0 %v443
        %497 = vmatprep.subr.mxu0 %v440
        %498 = vmatpush1.msra.mxu0 %v439
        %499 = vmatprep.subr.mxu0 %v436
        %500 = vmatpush1.msra.mxu0 %v435
        %501 = vmatprep.subr.mxu0 %v432
        %502 = vmatpush1.msra.mxu0 %v431
        %503 = vmatprep.subr.mxu0 %v428
        %504 = vmatpush1.msra.mxu0 %v427
        %505 = vmatprep.subr.mxu0 %v424
        %506 = vmatpush1.msra.mxu0 %v423
        %507 = vmatprep.subr.mxu0 %v420
        %508 = vmatpush1.msra.mxu0 %v419
        %509 = vmatprep.subr.mxu0 %v416
        %510 = vmatpush1.msra.mxu0 %v415
        %511 = vmatprep.subr.mxu0 0.0
        %512 = vmatpush2.msra.mxu0 0.0
        %513 = vmatprep.subr.mxu0 0.0
        %514 = vmatpush2.msra.mxu0 0.0
        %515 = vmatprep.subr.mxu0 0.0
        %516 = vmatpush2.msra.mxu0 0.0
        %517 = vmatprep.subr.mxu0 0.0
        %518 = vmatpush2.msra.mxu0 0.0
        %519 = vmatprep.subr.mxu0 0.0
        %520 = vmatpush2.msra.mxu0 0.0
        %521 = vmatprep.subr.mxu0 0.0
        %522 = vmatpush2.msra.mxu0 0.0
        %523 = vmatprep.subr.mxu0 0.0
        %524 = vmatpush2.msra.mxu0 0.0
        %525 = vmatprep.subr.mxu0 0.0
        %526 = vmatpush2.msra.mxu0 0.0
        %527 = vmatprep.subr.mxu0 0.0
        %528 = vmatpush2.msra.mxu0 0.0
        %529 = vmatprep.subr.mxu0 0.0
        %530 = vmatpush2.msra.mxu0 0.0
        %531 = vmatprep.subr.mxu0 0.0
        %532 = vmatpush2.msra.mxu0 0.0
        %533 = vmatprep.subr.mxu0 0.0
        %534 = vmatpush2.msra.mxu0 0.0
        %535 = vmatprep.subr.mxu0 0.0
        %536 = vmatpush2.msra.mxu0 0.0
        %537 = vmatprep.subr.mxu0 0.0
        %538 = vmatpush2.msra.mxu0 0.0
        %539 = vmatprep.subr.mxu0 0.0
        %540 = vmatpush2.msra.mxu0 0.0
        %541 = vmatprep.subr.mxu0 0.0
        %542 = vmatpush2.msra.mxu0 0.0
        %543 = vmatprep.mubr.f32.mxu0 0.0
        %544 = vmatmul.mubr.f32.gmra.mxu0 %v413
        %v545 = vpop.f32.mrf.mxu0
        %v546 = vadd.f32 0.0, %v545
        %v547 = vpop.f32.mrf.mxu0
        %v548 = vadd.f32 0.0, %v547
        %549 = vmatprep.mubr.f32.mxu0 0.0
        %550 = vmatmul.mubr.f32.gmra.mxu0 %v414
        %v551 = vpop.f32.mrf.mxu0
        %v552 = vadd.f32 0.0, %v551
        %v553 = vpop.f32.mrf.mxu0
        %v554 = vadd.f32 0.0, %v553
        %555 = vdwg.mxu0
        %556 = vmatprep.subr.mxu0 %v478
        %557 = vmatpush1.msra.mxu0 %v477
        %558 = vmatprep.subr.mxu0 %v474
        %559 = vmatpush1.msra.mxu0 %v473
        %560 = vmatprep.subr.mxu0 %v470
        %561 = vmatpush1.msra.mxu0 %v469
        %562 = vmatprep.subr.mxu0 %v466
        %563 = vmatpush1.msra.mxu0 %v465
        %564 = vmatprep.subr.mxu0 %v462
        %565 = vmatpush1.msra.mxu0 %v461
        %566 = vmatprep.subr.mxu0 %v458
        %567 = vmatpush1.msra.mxu0 %v457
        %568 = vmatprep.subr.mxu0 %v454
        %569 = vmatpush1.msra.mxu0 %v453
        %570 = vmatprep.subr.mxu0 %v450
        %571 = vmatpush1.msra.mxu0 %v449
        %572 = vmatprep.subr.mxu0 %v446
        %573 = vmatpush1.msra.mxu0 %v445
        %574 = vmatprep.subr.mxu0 %v442
        %575 = vmatpush1.msra.mxu0 %v441
        %576 = vmatprep.subr.mxu0 %v438
        %577 = vmatpush1.msra.mxu0 %v437
        %578 = vmatprep.subr.mxu0 %v434
        %579 = vmatpush1.msra.mxu0 %v433
        %580 = vmatprep.subr.mxu0 %v430
        %581 = vmatpush1.msra.mxu0 %v429
        %582 = vmatprep.subr.mxu0 %v426
        %583 = vmatpush1.msra.mxu0 %v425
        %584 = vmatprep.subr.mxu0 %v422
        %585 = vmatpush1.msra.mxu0 %v421
        %586 = vmatprep.subr.mxu0 %v418
        %587 = vmatpush1.msra.mxu0 %v417
        %588 = vmatprep.subr.mxu0 0.0
        %589 = vmatpush2.msra.mxu0 0.0
        %590 = vmatprep.subr.mxu0 0.0
        %591 = vmatpush2.msra.mxu0 0.0
        %592 = vmatprep.subr.mxu0 0.0
        %593 = vmatpush2.msra.mxu0 0.0
        %594 = vmatprep.subr.mxu0 0.0
        %595 = vmatpush2.msra.mxu0 0.0
        %596 = vmatprep.subr.mxu0 0.0
        %597 = vmatpush2.msra.mxu0 0.0
        %598 = vmatprep.subr.mxu0 0.0
        %599 = vmatpush2.msra.mxu0 0.0
        %600 = vmatprep.subr.mxu0 0.0
        %601 = vmatpush2.msra.mxu0 0.0
        %602 = vmatprep.subr.mxu0 0.0
        %603 = vmatpush2.msra.mxu0 0.0
        %604 = vmatprep.subr.mxu0 0.0
        %605 = vmatpush2.msra.mxu0 0.0
        %606 = vmatprep.subr.mxu0 0.0
        %607 = vmatpush2.msra.mxu0 0.0
        %608 = vmatprep.subr.mxu0 0.0
        %609 = vmatpush2.msra.mxu0 0.0
        %610 = vmatprep.subr.mxu0 0.0
        %611 = vmatpush2.msra.mxu0 0.0
        %612 = vmatprep.subr.mxu0 0.0
        %613 = vmatpush2.msra.mxu0 0.0
        %614 = vmatprep.subr.mxu0 0.0
        %615 = vmatpush2.msra.mxu0 0.0
        %616 = vmatprep.subr.mxu0 0.0
        %617 = vmatpush2.msra.mxu0 0.0
        %618 = vmatprep.subr.mxu0 0.0
        %619 = vmatpush2.msra.mxu0 0.0
        %620 = vmatprep.mubr.f32.mxu0 0.0
        %621 = vmatmul.mubr.f32.gmra.mxu0 %v413
        %v622 = vpop.f32.mrf.mxu0
        %v623 = vadd.f32 0.0, %v622
        %v624 = vpop.f32.mrf.mxu0
        %v625 = vadd.f32 0.0, %v624
        %626 = vmatprep.mubr.f32.mxu0 0.0
        %627 = vmatmul.mubr.f32.gmra.mxu0 %v414
        %v628 = vpop.f32.mrf.mxu0
        %v629 = vadd.f32 0.0, %v628
        %v630 = vpop.f32.mrf.mxu0
        %v631 = vadd.f32 0.0, %v630
        %632 = vdwg.mxu0
        %v633 = vadd.f32 %v405, %v546
        %v634 = vadd.f32 %v406, %v548
        %v635 = vadd.f32 %v407, %v623
        %v636 = vadd.f32 %v408, %v625
        %v637 = vadd.f32 %v409, %v552
        %v638 = vadd.f32 %v410, %v554
        %v639 = vadd.f32 %v411, %v629
        %v640 = vadd.f32 %v412, %v631
        %641 = vst [vmem:[#allocation2] sm:$0xff] %v633
        %642 = vst [vmem:[#allocation2 + $0x8] sm:$0xff] %v634
        %643 = vst [vmem:[#allocation2 + $0x10] sm:$0xff] %v635
        %644 = vst [vmem:[#allocation2 + $0x18] sm:$0xff] %v636
        %645 = vst [vmem:[#allocation2 + $0x20] sm:$0xff] %v637
        %646 = vst [vmem:[#allocation2 + $0x28] sm:$0xff] %v638
        %647 = vst [vmem:[#allocation2 + $0x30] sm:$0xff] %v639
        %648 = vst [vmem:[#allocation2 + $0x38] sm:$0xff] %v640
        // Predicated region
        $region60: #{decoder_forward.7} parent=50 // pred_check
          %p649 = pneg %p393
        $region61: #{decoder_forward.7} parent=50 // pred_check_branch
          %651 = sbr.rel (%p649) target = $region63
        $region62: #{decoder_forward.7} parent=50 // pred_region
          %v652 = vld [vmem:[#allocation2] sm:$0xff]
          %v653 = vld [vmem:[#allocation2 + $0x8] sm:$0xff]
          %v654 = vld [vmem:[#allocation2 + $0x10] sm:$0xff]
          %v655 = vld [vmem:[#allocation2 + $0x18] sm:$0xff]
          %v656 = vld [vmem:[#allocation2 + $0x20] sm:$0xff]
          %v657 = vld [vmem:[#allocation2 + $0x28] sm:$0xff]
          %v658 = vld [vmem:[#allocation2 + $0x30] sm:$0xff]
          %v659 = vld [vmem:[#allocation2 + $0x38] sm:$0xff]
          %v660 = vld [vmem:[%s389] sm:$0xf]
          %v662 = vlaneseq
          %v663 = vshrl.u32 %v662, 7
          %v664 = vsub.s32 0, %v663
          %v665 = vrot.slane %v660, %v664
          %v666 = vlaneseq
          %v667 = vshrl.u32 %v666, 7
          %v668 = vsub.s32 1, %v667
          %v669 = vrot.slane %v660, %v668
          %v670 = vlaneseq
          %v671 = vshrl.u32 %v670, 7
          %v672 = vsub.s32 2, %v671
          %v673 = vrot.slane %v660, %v672
          %v674 = vlaneseq
          %v675 = vshrl.u32 %v674, 7
          %v676 = vsub.s32 3, %v675
          %v677 = vrot.slane %v660, %v676
          %v682 = vadd.f32 %v652, %v665
          %v683 = vadd.f32 %v653, %v669
          %v684 = vadd.f32 %v654, %v673
          %v685 = vadd.f32 %v655, %v677
          %v686 = vadd.f32 %v656, %v665
          %v687 = vadd.f32 %v657, %v669
          %v688 = vadd.f32 %v658, %v673
          %v689 = vadd.f32 %v659, %v677
          %690 = vst [vmem:[%s374] sm:$0xff] %v682
          %691 = vst [vmem:[%s374 + $0x8] sm:$0xff] %v683
          %692 = vst [vmem:[%s374 + $0x10] sm:$0xff] %v684
          %693 = vst [vmem:[%s374 + $0x18] sm:$0xff] %v685
          %694 = vst [vmem:[%s374 + $0x20] sm:$0xff] %v686
          %695 = vst [vmem:[%s374 + $0x28] sm:$0xff] %v687
          %696 = vst [vmem:[%s374 + $0x30] sm:$0xff] %v688
          %697 = vst [vmem:[%s374 + $0x38] sm:$0xff] %v689
        $region63: #{decoder_forward.7} parent=50 // pred_fallthru
          _
        %s698 = sand.u32 %s125, 1
        %s699 = sand.u32 %s125, 1
        %s700 = smul.addr %s699, 64
        %s701 = scalar_lea.vmem [#allocation4], %s700
        // Predicated region
        $region64: #{decoder_forward.7} parent=50 // pred_check
          %p702 = pneg %p135
        $region65: #{decoder_forward.7} parent=50 // pred_check_branch
          %704 = sbr.rel (%p702) target = $region67
        $region66: #{decoder_forward.7} parent=50 // pred_region
          %s705 = smul.u32 2, %s19
          %s706 = smul.u32 4, %s20
          %s707 = smul.addr %s705, 8
          %s708 = sadd.s32 %s706, %s707
          %s709 = smul.addr %s708, 8
          %s710 = scalar_lea.vmem %s3, %s709
          // Predicated region
          $region68: #{decoder_forward.7} parent=66 // pred_check
            _
          $region69: #{decoder_forward.7} parent=66 // pred_check_branch
            %712 = sbr.rel (0) target = $region71
          $region70: #{decoder_forward.7} parent=66 // pred_region
            // Predicated region
            $region72: #{decoder_forward.7} parent=70 // pred_check
              _
            $region73: #{decoder_forward.7} parent=70 // pred_check_branch
              %714 = sbr.rel (0) target = $region75
            $region74: #{decoder_forward.7} parent=70 // pred_region
              loop: start=0, step=1, limit=1
              $region76: #{decoder_forward.7} parent=74 // loop_pre_header
                _
              $region77: #{decoder_forward.7} parent=74 // loop_header
                %s716 = sphi 0, %s720
                %p717 = scmp.ge.s32.totalorder %s716, 1
                %s721 = sphi %s701, %s701
                %s722 = sphi %s710, %s710
              $region78: #{decoder_forward.7} parent=74 // loop_header_branch
                %719 = sbr.rel (%p717) target = $region82
              $region79: #{decoder_forward.7} parent=74 // loop_body
                %v723 = vld [vmem:[%s721] sm:$0xff]
                %724 = vst [vmem:[%s722] sm:$0xff] %v723
                %v725 = vld [vmem:[%s721 + $0x8] sm:$0xff]
                %726 = vst [vmem:[%s722 + $0x8] sm:$0xff] %v725
                %v727 = vld [vmem:[%s721 + $0x10] sm:$0xff]
                %728 = vst [vmem:[%s722 + $0x10] sm:$0xff] %v727
                %v729 = vld [vmem:[%s721 + $0x18] sm:$0xff]
                %730 = vst [vmem:[%s722 + $0x18] sm:$0xff] %v729
                %v731 = vld [vmem:[%s721 + $0x20] sm:$0xff]
                %732 = vst [vmem:[%s722 + $0x40] sm:$0xff] %v731
                %v733 = vld [vmem:[%s721 + $0x28] sm:$0xff]
                %734 = vst [vmem:[%s722 + $0x48] sm:$0xff] %v733
                %v735 = vld [vmem:[%s721 + $0x30] sm:$0xff]
                %736 = vst [vmem:[%s722 + $0x50] sm:$0xff] %v735
                %v737 = vld [vmem:[%s721 + $0x38] sm:$0xff]
                %738 = vst [vmem:[%s722 + $0x58] sm:$0xff] %v737
              $region80: #{decoder_forward.7} parent=74 // loop_footer
                %s720 = sadd.s32 1, %s716
              $region81: #{decoder_forward.7} parent=74 // loop_footer_branch
                %715 = sbr.rel target = $region77
              $region82: #{decoder_forward.7} parent=74 // loop_exit
                _
            $region75: #{decoder_forward.7} parent=70 // pred_fallthru
              _
            // Predicated region
            $region83: #{decoder_forward.7} parent=70 // pred_check
              _
            $region84: #{decoder_forward.7} parent=70 // pred_check_branch
              %740 = sbr.rel target = $region86
            $region85: #{decoder_forward.7} parent=70 // pred_region
              _
            $region86: #{decoder_forward.7} parent=70 // pred_fallthru
              _
          $region71: #{decoder_forward.7} parent=66 // pred_fallthru
            _
          %741 = vnop
        $region67: #{decoder_forward.7} parent=50 // pred_fallthru
          _
      $region51: #{decoder_forward.7} parent=5 // pred_fallthru
        _
      %p742 = scmp.le.s32.totalorder 2, %s9
      // Predicated region
      $region87: #{decoder_forward.7} parent=5 // pred_check
        %p743 = pneg %p742
      $region88: #{decoder_forward.7} parent=5 // pred_check_branch
        %745 = sbr.rel (%p743) target = $region90
      $region89: #{decoder_forward.7} parent=5 // pred_region
        %s746 = ssub.s32 %s9, 2
        // Predicated region
        $region91: #{decoder_forward.7} parent=89 // pred_check
          %p747 = pneg %p141
        $region92: #{decoder_forward.7} parent=89 // pred_check_branch
          %749 = sbr.rel (%p747) target = $region94
        $region93: #{decoder_forward.7} parent=89 // pred_region
          %s750 = sand.u32 %s126, 1
          %s751 = sand.u32 %s126, 1
          %s752 = smul.addr %s751, 64
          %s753 = scalar_lea.vmem [#allocation4], %s752
        $region94: #{decoder_forward.7} parent=89 // pred_fallthru
          _
      $region90: #{decoder_forward.7} parent=5 // pred_fallthru
        _
    $region6: #{decoder_forward.7} parent=1 // loop_footer
      %s13 = sadd.s32 1, %s9
    $region7: #{decoder_forward.7} parent=1 // loop_footer_branch
      %8 = sbr.rel target = $region3
    $region8: #{decoder_forward.7} parent=1 // loop_exit
      _

// kernel: decoder_forward.5
$region0: #{decoder_forward.5}
  #allocation0 [shape = 'u32[]', space=smem, size = 0x4, offset = 0x4, fixed_abs, tag = 'smem constant byte address 0x4 - core index']
  #allocation1 [shape = 'u32[144,128]{1,0:T(1,128)}', space=vmem, size = 0x12000, scoped, tag = 'internal scratch']
  #allocation2 [shape = 'f32[8,512]{1,0:T(8,128)}', space=vmem, size = 0x4000, scoped, tag = 'scratch operand']
  %s0 = inlined_call_operand.vmem [shape: f32[8,256], index: 0, kind: input, shape index: {}]
  %s1 = inlined_call_operand.vmem [shape: f32[256,512], index: 1, kind: input, shape index: {}]
  %s2 = inlined_call_operand.vmem [shape: f32[1,512], index: 2, kind: input, shape index: {}]
  %s3 = inlined_call_operand.vmem [shape: f32[8,512], index: 3, kind: output, shape index: {}]
  %s4 = sld [smem:[#allocation0]]
  $region30: #{decoder_forward.5} parent=0
    _
  %s6 = ssub.s32 1, %s4
  %s7 = scalar_select 0, %s6, %s4
  // Predicated region
  $region2: #{decoder_forward.5} parent=0 // pred_check
    _
  $region3: #{decoder_forward.5} parent=0 // pred_check_branch
    %9 = sbr.rel (0) target = $region5
  $region4: #{decoder_forward.5} parent=0 // pred_region
    _
  $region5: #{decoder_forward.5} parent=0 // pred_fallthru
    _
  // Predicated region
  $region6: #{decoder_forward.5} parent=0 // pred_check
    _
  $region7: #{decoder_forward.5} parent=0 // pred_check_branch
    %11 = sbr.rel (0) target = $region9
  $region8: #{decoder_forward.5} parent=0 // pred_region
    _
  $region9: #{decoder_forward.5} parent=0 // pred_fallthru
    _
  // Predicated region
  $region10: #{decoder_forward.5} parent=0 // pred_check
    _
  $region11: #{decoder_forward.5} parent=0 // pred_check_branch
    %13 = sbr.rel (0) target = $region13
  $region12: #{decoder_forward.5} parent=0 // pred_region
    _
  $region13: #{decoder_forward.5} parent=0 // pred_fallthru
    _
  %p14 = scmp.eq.s32.totalorder 0, 0
  // Predicated region
  $region14: #{decoder_forward.5} parent=0 // pred_check
    %p15 = pneg %p14
  $region15: #{decoder_forward.5} parent=0 // pred_check_branch
    %17 = sbr.rel (%p15) target = $region17
  $region16: #{decoder_forward.5} parent=0 // pred_region
    %18 = vst [vmem:[#allocation2] sm:$0xff] 0.0
    %19 = vst [vmem:[#allocation2 + $0x8] sm:$0xff] 0.0
    %20 = vst [vmem:[#allocation2 + $0x10] sm:$0xff] 0.0
    %21 = vst [vmem:[#allocation2 + $0x18] sm:$0xff] 0.0
  $region17: #{decoder_forward.5} parent=0 // pred_fallthru
    _
  %v22 = vld [vmem:[#allocation2] sm:$0xff]
  %v23 = vld [vmem:[#allocation2 + $0x8] sm:$0xff]
  %v24 = vld [vmem:[#allocation2 + $0x10] sm:$0xff]
  %v25 = vld [vmem:[#allocation2 + $0x18] sm:$0xff]
  %v26 = vld [vmem:[%s0] sm:$0xff]
  %v27 = vld [vmem:[%s0 + $0x8] sm:$0xff]
  %v28 = vld [vmem:[%s1] sm:$0xff]
  %v29 = vld [vmem:[%s1 + $0x8] sm:$0xff]
  %v30 = vld [vmem:[%s1 + $0x10] sm:$0xff]
  %v31 = vld [vmem:[%s1 + $0x18] sm:$0xff]
  %v32 = vld [vmem:[%s1 + $0x20] sm:$0xff]
  %v33 = vld [vmem:[%s1 + $0x28] sm:$0xff]
  %v34 = vld [vmem:[%s1 + $0x30] sm:$0xff]
  %v35 = vld [vmem:[%s1 + $0x38] sm:$0xff]
  %v36 = vld [vmem:[%s1 + $0x40] sm:$0xff]
  %v37 = vld [vmem:[%s1 + $0x48] sm:$0xff]
  %v38 = vld [vmem:[%s1 + $0x50] sm:$0xff]
  %v39 = vld [vmem:[%s1 + $0x58] sm:$0xff]
  %v40 = vld [vmem:[%s1 + $0x60] sm:$0xff]
  %v41 = vld [vmem:[%s1 + $0x68] sm:$0xff]
  %v42 = vld [vmem:[%s1 + $0x70] sm:$0xff]
  %v43 = vld [vmem:[%s1 + $0x78] sm:$0xff]
  %v44 = vld [vmem:[%s1 + $0x80] sm:$0xff]
  %v45 = vld [vmem:[%s1 + $0x88] sm:$0xff]
  %v46 = vld [vmem:[%s1 + $0x90] sm:$0xff]
  %v47 = vld [vmem:[%s1 + $0x98] sm:$0xff]
  %v48 = vld [vmem:[%s1 + $0xa0] sm:$0xff]
  %v49 = vld [vmem:[%s1 + $0xa8] sm:$0xff]
  %v50 = vld [vmem:[%s1 + $0xb0] sm:$0xff]
  %v51 = vld [vmem:[%s1 + $0xb8] sm:$0xff]
  %v52 = vld [vmem:[%s1 + $0xc0] sm:$0xff]
  %v53 = vld [vmem:[%s1 + $0xc8] sm:$0xff]
  %v54 = vld [vmem:[%s1 + $0xd0] sm:$0xff]
  %v55 = vld [vmem:[%s1 + $0xd8] sm:$0xff]
  %v56 = vld [vmem:[%s1 + $0xe0] sm:$0xff]
  %v57 = vld [vmem:[%s1 + $0xe8] sm:$0xff]
  %v58 = vld [vmem:[%s1 + $0xf0] sm:$0xff]
  %v59 = vld [vmem:[%s1 + $0xf8] sm:$0xff]
  %v60 = vld [vmem:[%s1 + $0x100] sm:$0xff]
  %v61 = vld [vmem:[%s1 + $0x108] sm:$0xff]
  %v62 = vld [vmem:[%s1 + $0x110] sm:$0xff]
  %v63 = vld [vmem:[%s1 + $0x118] sm:$0xff]
  %v64 = vld [vmem:[%s1 + $0x120] sm:$0xff]
  %v65 = vld [vmem:[%s1 + $0x128] sm:$0xff]
  %v66 = vld [vmem:[%s1 + $0x130] sm:$0xff]
  %v67 = vld [vmem:[%s1 + $0x138] sm:$0xff]
  %v68 = vld [vmem:[%s1 + $0x140] sm:$0xff]
  %v69 = vld [vmem:[%s1 + $0x148] sm:$0xff]
  %v70 = vld [vmem:[%s1 + $0x150] sm:$0xff]
  %v71 = vld [vmem:[%s1 + $0x158] sm:$0xff]
  %v72 = vld [vmem:[%s1 + $0x160] sm:$0xff]
  %v73 = vld [vmem:[%s1 + $0x168] sm:$0xff]
  %v74 = vld [vmem:[%s1 + $0x170] sm:$0xff]
  %v75 = vld [vmem:[%s1 + $0x178] sm:$0xff]
  %v76 = vld [vmem:[%s1 + $0x180] sm:$0xff]
  %v77 = vld [vmem:[%s1 + $0x188] sm:$0xff]
  %v78 = vld [vmem:[%s1 + $0x190] sm:$0xff]
  %v79 = vld [vmem:[%s1 + $0x198] sm:$0xff]
  %v80 = vld [vmem:[%s1 + $0x1a0] sm:$0xff]
  %v81 = vld [vmem:[%s1 + $0x1a8] sm:$0xff]
  %v82 = vld [vmem:[%s1 + $0x1b0] sm:$0xff]
  %v83 = vld [vmem:[%s1 + $0x1b8] sm:$0xff]
  %v84 = vld [vmem:[%s1 + $0x1c0] sm:$0xff]
  %v85 = vld [vmem:[%s1 + $0x1c8] sm:$0xff]
  %v86 = vld [vmem:[%s1 + $0x1d0] sm:$0xff]
  %v87 = vld [vmem:[%s1 + $0x1d8] sm:$0xff]
  %v88 = vld [vmem:[%s1 + $0x1e0] sm:$0xff]
  %v89 = vld [vmem:[%s1 + $0x1e8] sm:$0xff]
  %v90 = vld [vmem:[%s1 + $0x1f0] sm:$0xff]
  %v91 = vld [vmem:[%s1 + $0x1f8] sm:$0xff]
  %v92 = vld [vmem:[%s1 + $0x200] sm:$0xff]
  %v93 = vld [vmem:[%s1 + $0x208] sm:$0xff]
  %v94 = vld [vmem:[%s1 + $0x210] sm:$0xff]
  %v95 = vld [vmem:[%s1 + $0x218] sm:$0xff]
  %v96 = vld [vmem:[%s1 + $0x220] sm:$0xff]
  %v97 = vld [vmem:[%s1 + $0x228] sm:$0xff]
  %v98 = vld [vmem:[%s1 + $0x230] sm:$0xff]
  %v99 = vld [vmem:[%s1 + $0x238] sm:$0xff]
  %v100 = vld [vmem:[%s1 + $0x240] sm:$0xff]
  %v101 = vld [vmem:[%s1 + $0x248] sm:$0xff]
  %v102 = vld [vmem:[%s1 + $0x250] sm:$0xff]
  %v103 = vld [vmem:[%s1 + $0x258] sm:$0xff]
  %v104 = vld [vmem:[%s1 + $0x260] sm:$0xff]
  %v105 = vld [vmem:[%s1 + $0x268] sm:$0xff]
  %v106 = vld [vmem:[%s1 + $0x270] sm:$0xff]
  %v107 = vld [vmem:[%s1 + $0x278] sm:$0xff]
  %v108 = vld [vmem:[%s1 + $0x280] sm:$0xff]
  %v109 = vld [vmem:[%s1 + $0x288] sm:$0xff]
  %v110 = vld [vmem:[%s1 + $0x290] sm:$0xff]
  %v111 = vld [vmem:[%s1 + $0x298] sm:$0xff]
  %v112 = vld [vmem:[%s1 + $0x2a0] sm:$0xff]
  %v113 = vld [vmem:[%s1 + $0x2a8] sm:$0xff]
  %v114 = vld [vmem:[%s1 + $0x2b0] sm:$0xff]
  %v115 = vld [vmem:[%s1 + $0x2b8] sm:$0xff]
  %v116 = vld [vmem:[%s1 + $0x2c0] sm:$0xff]
  %v117 = vld [vmem:[%s1 + $0x2c8] sm:$0xff]
  %v118 = vld [vmem:[%s1 + $0x2d0] sm:$0xff]
  %v119 = vld [vmem:[%s1 + $0x2d8] sm:$0xff]
  %v120 = vld [vmem:[%s1 + $0x2e0] sm:$0xff]
  %v121 = vld [vmem:[%s1 + $0x2e8] sm:$0xff]
  %v122 = vld [vmem:[%s1 + $0x2f0] sm:$0xff]
  %v123 = vld [vmem:[%s1 + $0x2f8] sm:$0xff]
  %v124 = vld [vmem:[%s1 + $0x300] sm:$0xff]
  %v125 = vld [vmem:[%s1 + $0x308] sm:$0xff]
  %v126 = vld [vmem:[%s1 + $0x310] sm:$0xff]
  %v127 = vld [vmem:[%s1 + $0x318] sm:$0xff]
  %v128 = vld [vmem:[%s1 + $0x320] sm:$0xff]
  %v129 = vld [vmem:[%s1 + $0x328] sm:$0xff]
  %v130 = vld [vmem:[%s1 + $0x330] sm:$0xff]
  %v131 = vld [vmem:[%s1 + $0x338] sm:$0xff]
  %v132 = vld [vmem:[%s1 + $0x340] sm:$0xff]
  %v133 = vld [vmem:[%s1 + $0x348] sm:$0xff]
  %v134 = vld [vmem:[%s1 + $0x350] sm:$0xff]
  %v135 = vld [vmem:[%s1 + $0x358] sm:$0xff]
  %v136 = vld [vmem:[%s1 + $0x360] sm:$0xff]
  %v137 = vld [vmem:[%s1 + $0x368] sm:$0xff]
  %v138 = vld [vmem:[%s1 + $0x370] sm:$0xff]
  %v139 = vld [vmem:[%s1 + $0x378] sm:$0xff]
  %v140 = vld [vmem:[%s1 + $0x380] sm:$0xff]
  %v141 = vld [vmem:[%s1 + $0x388] sm:$0xff]
  %v142 = vld [vmem:[%s1 + $0x390] sm:$0xff]
  %v143 = vld [vmem:[%s1 + $0x398] sm:$0xff]
  %v144 = vld [vmem:[%s1 + $0x3a0] sm:$0xff]
  %v145 = vld [vmem:[%s1 + $0x3a8] sm:$0xff]
  %v146 = vld [vmem:[%s1 + $0x3b0] sm:$0xff]
  %v147 = vld [vmem:[%s1 + $0x3b8] sm:$0xff]
  %v148 = vld [vmem:[%s1 + $0x3c0] sm:$0xff]
  %v149 = vld [vmem:[%s1 + $0x3c8] sm:$0xff]
  %v150 = vld [vmem:[%s1 + $0x3d0] sm:$0xff]
  %v151 = vld [vmem:[%s1 + $0x3d8] sm:$0xff]
  %v152 = vld [vmem:[%s1 + $0x3e0] sm:$0xff]
  %v153 = vld [vmem:[%s1 + $0x3e8] sm:$0xff]
  %v154 = vld [vmem:[%s1 + $0x3f0] sm:$0xff]
  %v155 = vld [vmem:[%s1 + $0x3f8] sm:$0xff]
  %156 = vmatprep.subr.mxu0 %v89
  %157 = vmatpush1.msra.mxu0 %v88
  %158 = vmatprep.subr.mxu0 %v85
  %159 = vmatpush1.msra.mxu0 %v84
  %160 = vmatprep.subr.mxu0 %v81
  %161 = vmatpush1.msra.mxu0 %v80
  %162 = vmatprep.subr.mxu0 %v77
  %163 = vmatpush1.msra.mxu0 %v76
  %164 = vmatprep.subr.mxu0 %v73
  %165 = vmatpush1.msra.mxu0 %v72
  %166 = vmatprep.subr.mxu0 %v69
  %167 = vmatpush1.msra.mxu0 %v68
  %168 = vmatprep.subr.mxu0 %v65
  %169 = vmatpush1.msra.mxu0 %v64
  %170 = vmatprep.subr.mxu0 %v61
  %171 = vmatpush1.msra.mxu0 %v60
  %172 = vmatprep.subr.mxu0 %v57
  %173 = vmatpush1.msra.mxu0 %v56
  %174 = vmatprep.subr.mxu0 %v53
  %175 = vmatpush1.msra.mxu0 %v52
  %176 = vmatprep.subr.mxu0 %v49
  %177 = vmatpush1.msra.mxu0 %v48
  %178 = vmatprep.subr.mxu0 %v45
  %179 = vmatpush1.msra.mxu0 %v44
  %180 = vmatprep.subr.mxu0 %v41
  %181 = vmatpush1.msra.mxu0 %v40
  %182 = vmatprep.subr.mxu0 %v37
  %183 = vmatpush1.msra.mxu0 %v36
  %184 = vmatprep.subr.mxu0 %v33
  %185 = vmatpush1.msra.mxu0 %v32
  %186 = vmatprep.subr.mxu0 %v29
  %187 = vmatpush1.msra.mxu0 %v28
  %188 = vmatprep.subr.mxu0 %v153
  %189 = vmatpush2.msra.mxu0 %v152
  %190 = vmatprep.subr.mxu0 %v149
  %191 = vmatpush2.msra.mxu0 %v148
  %192 = vmatprep.subr.mxu0 %v145
  %193 = vmatpush2.msra.mxu0 %v144
  %194 = vmatprep.subr.mxu0 %v141
  %195 = vmatpush2.msra.mxu0 %v140
  %196 = vmatprep.subr.mxu0 %v137
  %197 = vmatpush2.msra.mxu0 %v136
  %198 = vmatprep.subr.mxu0 %v133
  %199 = vmatpush2.msra.mxu0 %v132
  %200 = vmatprep.subr.mxu0 %v129
  %201 = vmatpush2.msra.mxu0 %v128
  %202 = vmatprep.subr.mxu0 %v125
  %203 = vmatpush2.msra.mxu0 %v124
  %204 = vmatprep.subr.mxu0 %v121
  %205 = vmatpush2.msra.mxu0 %v120
  %206 = vmatprep.subr.mxu0 %v117
  %207 = vmatpush2.msra.mxu0 %v116
  %208 = vmatprep.subr.mxu0 %v113
  %209 = vmatpush2.msra.mxu0 %v112
  %210 = vmatprep.subr.mxu0 %v109
  %211 = vmatpush2.msra.mxu0 %v108
  %212 = vmatprep.subr.mxu0 %v105
  %213 = vmatpush2.msra.mxu0 %v104
  %214 = vmatprep.subr.mxu0 %v101
  %215 = vmatpush2.msra.mxu0 %v100
  %216 = vmatprep.subr.mxu0 %v97
  %217 = vmatpush2.msra.mxu0 %v96
  %218 = vmatprep.subr.mxu0 %v93
  %219 = vmatpush2.msra.mxu0 %v92
  %220 = vmatprep.mubr.f32.mxu0 %v27
  %221 = vmatmul.mubr.f32.gmra.mxu0 %v26
  %v222 = vpop.f32.mrf.mxu0
  %v223 = vadd.f32 0.0, %v222
  %v224 = vpop.f32.mrf.mxu0
  %v225 = vadd.f32 0.0, %v224
  %226 = vdwg.mxu0
  %227 = vmatprep.subr.mxu0 %v91
  %228 = vmatpush1.msra.mxu0 %v90
  %229 = vmatprep.subr.mxu0 %v87
  %230 = vmatpush1.msra.mxu0 %v86
  %231 = vmatprep.subr.mxu0 %v83
  %232 = vmatpush1.msra.mxu0 %v82
  %233 = vmatprep.subr.mxu0 %v79
  %234 = vmatpush1.msra.mxu0 %v78
  %235 = vmatprep.subr.mxu0 %v75
  %236 = vmatpush1.msra.mxu0 %v74
  %237 = vmatprep.subr.mxu0 %v71
  %238 = vmatpush1.msra.mxu0 %v70
  %239 = vmatprep.subr.mxu0 %v67
  %240 = vmatpush1.msra.mxu0 %v66
  %241 = vmatprep.subr.mxu0 %v63
  %242 = vmatpush1.msra.mxu0 %v62
  %243 = vmatprep.subr.mxu0 %v59
  %244 = vmatpush1.msra.mxu0 %v58
  %245 = vmatprep.subr.mxu0 %v55
  %246 = vmatpush1.msra.mxu0 %v54
  %247 = vmatprep.subr.mxu0 %v51
  %248 = vmatpush1.msra.mxu0 %v50
  %249 = vmatprep.subr.mxu0 %v47
  %250 = vmatpush1.msra.mxu0 %v46
  %251 = vmatprep.subr.mxu0 %v43
  %252 = vmatpush1.msra.mxu0 %v42
  %253 = vmatprep.subr.mxu0 %v39
  %254 = vmatpush1.msra.mxu0 %v38
  %255 = vmatprep.subr.mxu0 %v35
  %256 = vmatpush1.msra.mxu0 %v34
  %257 = vmatprep.subr.mxu0 %v31
  %258 = vmatpush1.msra.mxu0 %v30
  %259 = vmatprep.subr.mxu0 %v155
  %260 = vmatpush2.msra.mxu0 %v154
  %261 = vmatprep.subr.mxu0 %v151
  %262 = vmatpush2.msra.mxu0 %v150
  %263 = vmatprep.subr.mxu0 %v147
  %264 = vmatpush2.msra.mxu0 %v146
  %265 = vmatprep.subr.mxu0 %v143
  %266 = vmatpush2.msra.mxu0 %v142
  %267 = vmatprep.subr.mxu0 %v139
  %268 = vmatpush2.msra.mxu0 %v138
  %269 = vmatprep.subr.mxu0 %v135
  %270 = vmatpush2.msra.mxu0 %v134
  %271 = vmatprep.subr.mxu0 %v131
  %272 = vmatpush2.msra.mxu0 %v130
  %273 = vmatprep.subr.mxu0 %v127
  %274 = vmatpush2.msra.mxu0 %v126
  %275 = vmatprep.subr.mxu0 %v123
  %276 = vmatpush2.msra.mxu0 %v122
  %277 = vmatprep.subr.mxu0 %v119
  %278 = vmatpush2.msra.mxu0 %v118
  %279 = vmatprep.subr.mxu0 %v115
  %280 = vmatpush2.msra.mxu0 %v114
  %281 = vmatprep.subr.mxu0 %v111
  %282 = vmatpush2.msra.mxu0 %v110
  %283 = vmatprep.subr.mxu0 %v107
  %284 = vmatpush2.msra.mxu0 %v106
  %285 = vmatprep.subr.mxu0 %v103
  %286 = vmatpush2.msra.mxu0 %v102
  %287 = vmatprep.subr.mxu0 %v99
  %288 = vmatpush2.msra.mxu0 %v98
  %289 = vmatprep.subr.mxu0 %v95
  %290 = vmatpush2.msra.mxu0 %v94
  %291 = vmatprep.mubr.f32.mxu0 %v27
  %292 = vmatmul.mubr.f32.gmra.mxu0 %v26
  %v293 = vpop.f32.mrf.mxu0
  %v294 = vadd.f32 0.0, %v293
  %v295 = vpop.f32.mrf.mxu0
  %v296 = vadd.f32 0.0, %v295
  %297 = vdwg.mxu0
  %v298 = vadd.f32 %v22, %v223
  %v299 = vadd.f32 %v23, %v225
  %v300 = vadd.f32 %v24, %v294
  %v301 = vadd.f32 %v25, %v296
  %302 = vst [vmem:[#allocation2] sm:$0xff] %v298
  %303 = vst [vmem:[#allocation2 + $0x8] sm:$0xff] %v299
  %304 = vst [vmem:[#allocation2 + $0x10] sm:$0xff] %v300
  %305 = vst [vmem:[#allocation2 + $0x18] sm:$0xff] %v301
  // Predicated region
  $region18: #{decoder_forward.5} parent=0 // pred_check
    %p306 = pneg %p14
  $region19: #{decoder_forward.5} parent=0 // pred_check_branch
    %308 = sbr.rel (%p306) target = $region21
  $region20: #{decoder_forward.5} parent=0 // pred_region
    %v309 = vld [vmem:[#allocation2] sm:$0xff]
    %v310 = vld [vmem:[#allocation2 + $0x8] sm:$0xff]
    %v311 = vld [vmem:[#allocation2 + $0x10] sm:$0xff]
    %v312 = vld [vmem:[#allocation2 + $0x18] sm:$0xff]
    %v313 = vld [vmem:[%s2] sm:$0xf]
    %v315 = vlaneseq
    %v316 = vshrl.u32 %v315, 7
    %v317 = vsub.s32 0, %v316
    %v318 = vrot.slane %v313, %v317
    %v319 = vlaneseq
    %v320 = vshrl.u32 %v319, 7
    %v321 = vsub.s32 1, %v320
    %v322 = vrot.slane %v313, %v321
    %v323 = vlaneseq
    %v324 = vshrl.u32 %v323, 7
    %v325 = vsub.s32 2, %v324
    %v326 = vrot.slane %v313, %v325
    %v327 = vlaneseq
    %v328 = vshrl.u32 %v327, 7
    %v329 = vsub.s32 3, %v328
    %v330 = vrot.slane %v313, %v329
    %v335 = vadd.f32 %v309, %v318
    %v336 = vadd.f32 %v310, %v322
    %v337 = vadd.f32 %v311, %v326
    %v338 = vadd.f32 %v312, %v330
    %339 = vst [vmem:[%s3] sm:$0xff] %v335
    %340 = vst [vmem:[%s3 + $0x8] sm:$0xff] %v336
    %341 = vst [vmem:[%s3 + $0x10] sm:$0xff] %v337
    %342 = vst [vmem:[%s3 + $0x18] sm:$0xff] %v338
  $region21: #{decoder_forward.5} parent=0 // pred_fallthru
    _
  // Predicated region
  $region22: #{decoder_forward.5} parent=0 // pred_check
    _
  $region23: #{decoder_forward.5} parent=0 // pred_check_branch
    %344 = sbr.rel (0) target = $region25
  $region24: #{decoder_forward.5} parent=0 // pred_region
    _
  $region25: #{decoder_forward.5} parent=0 // pred_fallthru
    _
  // Predicated region
  $region26: #{decoder_forward.5} parent=0 // pred_check
    _
  $region27: #{decoder_forward.5} parent=0 // pred_check_branch
    %346 = sbr.rel (0) target = $region29
  $region28: #{decoder_forward.5} parent=0 // pred_region
    _
  $region29: #{decoder_forward.5} parent=0 // pred_fallthru
    _

// kernel: decoder_forward.9
$region0: #{decoder_forward.9}
  #allocation0 [shape = 'u32[]', space=smem, size = 0x4, offset = 0x4, fixed_abs, tag = 'smem constant byte address 0x4 - core index']
  #allocation1 [shape = 'u32[144,128]{1,0:T(1,128)}', space=vmem, size = 0x12000, scoped, tag = 'internal scratch']
  #allocation2 [shape = 'f32[16,512]{1,0:T(8,128)}', space=vmem, size = 0x8000, scoped, tag = 'scratch operand']
  %s0 = inlined_call_operand.vmem [shape: f32[16,256], index: 0, kind: input, shape index: {}]
  %s1 = inlined_call_operand.vmem [shape: f32[256,512], index: 1, kind: input, shape index: {}]
  %s2 = inlined_call_operand.vmem [shape: f32[1,512], index: 2, kind: input, shape index: {}]
  %s3 = inlined_call_operand.vmem [shape: f32[16,512], index: 3, kind: output, shape index: {}]
  %s4 = sld [smem:[#allocation0]]
  $region30: #{decoder_forward.9} parent=0
    _
  %s6 = ssub.s32 1, %s4
  %s7 = scalar_select 0, %s6, %s4
  // Predicated region
  $region2: #{decoder_forward.9} parent=0 // pred_check
    _
  $region3: #{decoder_forward.9} parent=0 // pred_check_branch
    %9 = sbr.rel (0) target = $region5
  $region4: #{decoder_forward.9} parent=0 // pred_region
    _
  $region5: #{decoder_forward.9} parent=0 // pred_fallthru
    _
  // Predicated region
  $region6: #{decoder_forward.9} parent=0 // pred_check
    _
  $region7: #{decoder_forward.9} parent=0 // pred_check_branch
    %11 = sbr.rel (0) target = $region9
  $region8: #{decoder_forward.9} parent=0 // pred_region
    _
  $region9: #{decoder_forward.9} parent=0 // pred_fallthru
    _
  // Predicated region
  $region10: #{decoder_forward.9} parent=0 // pred_check
    _
  $region11: #{decoder_forward.9} parent=0 // pred_check_branch
    %13 = sbr.rel (0) target = $region13
  $region12: #{decoder_forward.9} parent=0 // pred_region
    _
  $region13: #{decoder_forward.9} parent=0 // pred_fallthru
    _
  %p14 = scmp.eq.s32.totalorder 0, 0
  // Predicated region
  $region14: #{decoder_forward.9} parent=0 // pred_check
    %p15 = pneg %p14
  $region15: #{decoder_forward.9} parent=0 // pred_check_branch
    %17 = sbr.rel (%p15) target = $region17
  $region16: #{decoder_forward.9} parent=0 // pred_region
    %18 = vst [vmem:[#allocation2] sm:$0xff] 0.0
    %19 = vst [vmem:[#allocation2 + $0x8] sm:$0xff] 0.0
    %20 = vst [vmem:[#allocation2 + $0x10] sm:$0xff] 0.0
    %21 = vst [vmem:[#allocation2 + $0x18] sm:$0xff] 0.0
    %22 = vst [vmem:[#allocation2 + $0x20] sm:$0xff] 0.0
    %23 = vst [vmem:[#allocation2 + $0x28] sm:$0xff] 0.0
    %24 = vst [vmem:[#allocation2 + $0x30] sm:$0xff] 0.0
    %25 = vst [vmem:[#allocation2 + $0x38] sm:$0xff] 0.0
  $region17: #{decoder_forward.9} parent=0 // pred_fallthru
    _
  %v26 = vld [vmem:[#allocation2] sm:$0xff]
  %v27 = vld [vmem:[#allocation2 + $0x8] sm:$0xff]
  %v28 = vld [vmem:[#allocation2 + $0x10] sm:$0xff]
  %v29 = vld [vmem:[#allocation2 + $0x18] sm:$0xff]
  %v30 = vld [vmem:[#allocation2 + $0x20] sm:$0xff]
  %v31 = vld [vmem:[#allocation2 + $0x28] sm:$0xff]
  %v32 = vld [vmem:[#allocation2 + $0x30] sm:$0xff]
  %v33 = vld [vmem:[#allocation2 + $0x38] sm:$0xff]
  %v34 = vld [vmem:[%s0] sm:$0xff]
  %v35 = vld [vmem:[%s0 + $0x8] sm:$0xff]
  %v36 = vld [vmem:[%s0 + $0x10] sm:$0xff]
  %v37 = vld [vmem:[%s0 + $0x18] sm:$0xff]
  %v38 = vld [vmem:[%s1] sm:$0xff]
  %v39 = vld [vmem:[%s1 + $0x8] sm:$0xff]
  %v40 = vld [vmem:[%s1 + $0x10] sm:$0xff]
  %v41 = vld [vmem:[%s1 + $0x18] sm:$0xff]
  %v42 = vld [vmem:[%s1 + $0x20] sm:$0xff]
  %v43 = vld [vmem:[%s1 + $0x28] sm:$0xff]
  %v44 = vld [vmem:[%s1 + $0x30] sm:$0xff]
  %v45 = vld [vmem:[%s1 + $0x38] sm:$0xff]
  %v46 = vld [vmem:[%s1 + $0x40] sm:$0xff]
  %v47 = vld [vmem:[%s1 + $0x48] sm:$0xff]
  %v48 = vld [vmem:[%s1 + $0x50] sm:$0xff]
  %v49 = vld [vmem:[%s1 + $0x58] sm:$0xff]
  %v50 = vld [vmem:[%s1 + $0x60] sm:$0xff]
  %v51 = vld [vmem:[%s1 + $0x68] sm:$0xff]
  %v52 = vld [vmem:[%s1 + $0x70] sm:$0xff]
  %v53 = vld [vmem:[%s1 + $0x78] sm:$0xff]
  %v54 = vld [vmem:[%s1 + $0x80] sm:$0xff]
  %v55 = vld [vmem:[%s1 + $0x88] sm:$0xff]
  %v56 = vld [vmem:[%s1 + $0x90] sm:$0xff]
  %v57 = vld [vmem:[%s1 + $0x98] sm:$0xff]
  %v58 = vld [vmem:[%s1 + $0xa0] sm:$0xff]
  %v59 = vld [vmem:[%s1 + $0xa8] sm:$0xff]
  %v60 = vld [vmem:[%s1 + $0xb0] sm:$0xff]
  %v61 = vld [vmem:[%s1 + $0xb8] sm:$0xff]
  %v62 = vld [vmem:[%s1 + $0xc0] sm:$0xff]
  %v63 = vld [vmem:[%s1 + $0xc8] sm:$0xff]
  %v64 = vld [vmem:[%s1 + $0xd0] sm:$0xff]
  %v65 = vld [vmem:[%s1 + $0xd8] sm:$0xff]
  %v66 = vld [vmem:[%s1 + $0xe0] sm:$0xff]
  %v67 = vld [vmem:[%s1 + $0xe8] sm:$0xff]
  %v68 = vld [vmem:[%s1 + $0xf0] sm:$0xff]
  %v69 = vld [vmem:[%s1 + $0xf8] sm:$0xff]
  %v70 = vld [vmem:[%s1 + $0x100] sm:$0xff]
  %v71 = vld [vmem:[%s1 + $0x108] sm:$0xff]
  %v72 = vld [vmem:[%s1 + $0x110] sm:$0xff]
  %v73 = vld [vmem:[%s1 + $0x118] sm:$0xff]
  %v74 = vld [vmem:[%s1 + $0x120] sm:$0xff]
  %v75 = vld [vmem:[%s1 + $0x128] sm:$0xff]
  %v76 = vld [vmem:[%s1 + $0x130] sm:$0xff]
  %v77 = vld [vmem:[%s1 + $0x138] sm:$0xff]
  %v78 = vld [vmem:[%s1 + $0x140] sm:$0xff]
  %v79 = vld [vmem:[%s1 + $0x148] sm:$0xff]
  %v80 = vld [vmem:[%s1 + $0x150] sm:$0xff]
  %v81 = vld [vmem:[%s1 + $0x158] sm:$0xff]
  %v82 = vld [vmem:[%s1 + $0x160] sm:$0xff]
  %v83 = vld [vmem:[%s1 + $0x168] sm:$0xff]
  %v84 = vld [vmem:[%s1 + $0x170] sm:$0xff]
  %v85 = vld [vmem:[%s1 + $0x178] sm:$0xff]
  %v86 = vld [vmem:[%s1 + $0x180] sm:$0xff]
  %v87 = vld [vmem:[%s1 + $0x188] sm:$0xff]
  %v88 = vld [vmem:[%s1 + $0x190] sm:$0xff]
  %v89 = vld [vmem:[%s1 + $0x198] sm:$0xff]
  %v90 = vld [vmem:[%s1 + $0x1a0] sm:$0xff]
  %v91 = vld [vmem:[%s1 + $0x1a8] sm:$0xff]
  %v92 = vld [vmem:[%s1 + $0x1b0] sm:$0xff]
  %v93 = vld [vmem:[%s1 + $0x1b8] sm:$0xff]
  %v94 = vld [vmem:[%s1 + $0x1c0] sm:$0xff]
  %v95 = vld [vmem:[%s1 + $0x1c8] sm:$0xff]
  %v96 = vld [vmem:[%s1 + $0x1d0] sm:$0xff]
  %v97 = vld [vmem:[%s1 + $0x1d8] sm:$0xff]
  %v98 = vld [vmem:[%s1 + $0x1e0] sm:$0xff]
  %v99 = vld [vmem:[%s1 + $0x1e8] sm:$0xff]
  %v100 = vld [vmem:[%s1 + $0x1f0] sm:$0xff]
  %v101 = vld [vmem:[%s1 + $0x1f8] sm:$0xff]
  %v102 = vld [vmem:[%s1 + $0x200] sm:$0xff]
  %v103 = vld [vmem:[%s1 + $0x208] sm:$0xff]
  %v104 = vld [vmem:[%s1 + $0x210] sm:$0xff]
  %v105 = vld [vmem:[%s1 + $0x218] sm:$0xff]
  %v106 = vld [vmem:[%s1 + $0x220] sm:$0xff]
  %v107 = vld [vmem:[%s1 + $0x228] sm:$0xff]
  %v108 = vld [vmem:[%s1 + $0x230] sm:$0xff]
  %v109 = vld [vmem:[%s1 + $0x238] sm:$0xff]
  %v110 = vld [vmem:[%s1 + $0x240] sm:$0xff]
  %v111 = vld [vmem:[%s1 + $0x248] sm:$0xff]
  %v112 = vld [vmem:[%s1 + $0x250] sm:$0xff]
  %v113 = vld [vmem:[%s1 + $0x258] sm:$0xff]
  %v114 = vld [vmem:[%s1 + $0x260] sm:$0xff]
  %v115 = vld [vmem:[%s1 + $0x268] sm:$0xff]
  %v116 = vld [vmem:[%s1 + $0x270] sm:$0xff]
  %v117 = vld [vmem:[%s1 + $0x278] sm:$0xff]
  %v118 = vld [vmem:[%s1 + $0x280] sm:$0xff]
  %v119 = vld [vmem:[%s1 + $0x288] sm:$0xff]
  %v120 = vld [vmem:[%s1 + $0x290] sm:$0xff]
  %v121 = vld [vmem:[%s1 + $0x298] sm:$0xff]
  %v122 = vld [vmem:[%s1 + $0x2a0] sm:$0xff]
  %v123 = vld [vmem:[%s1 + $0x2a8] sm:$0xff]
  %v124 = vld [vmem:[%s1 + $0x2b0] sm:$0xff]
  %v125 = vld [vmem:[%s1 + $0x2b8] sm:$0xff]
  %v126 = vld [vmem:[%s1 + $0x2c0] sm:$0xff]
  %v127 = vld [vmem:[%s1 + $0x2c8] sm:$0xff]
  %v128 = vld [vmem:[%s1 + $0x2d0] sm:$0xff]
  %v129 = vld [vmem:[%s1 + $0x2d8] sm:$0xff]
  %v130 = vld [vmem:[%s1 + $0x2e0] sm:$0xff]
  %v131 = vld [vmem:[%s1 + $0x2e8] sm:$0xff]
  %v132 = vld [vmem:[%s1 + $0x2f0] sm:$0xff]
  %v133 = vld [vmem:[%s1 + $0x2f8] sm:$0xff]
  %v134 = vld [vmem:[%s1 + $0x300] sm:$0xff]
  %v135 = vld [vmem:[%s1 + $0x308] sm:$0xff]
  %v136 = vld [vmem:[%s1 + $0x310] sm:$0xff]
  %v137 = vld [vmem:[%s1 + $0x318] sm:$0xff]
  %v138 = vld [vmem:[%s1 + $0x320] sm:$0xff]
  %v139 = vld [vmem:[%s1 + $0x328] sm:$0xff]
  %v140 = vld [vmem:[%s1 + $0x330] sm:$0xff]
  %v141 = vld [vmem:[%s1 + $0x338] sm:$0xff]
  %v142 = vld [vmem:[%s1 + $0x340] sm:$0xff]
  %v143 = vld [vmem:[%s1 + $0x348] sm:$0xff]
  %v144 = vld [vmem:[%s1 + $0x350] sm:$0xff]
  %v145 = vld [vmem:[%s1 + $0x358] sm:$0xff]
  %v146 = vld [vmem:[%s1 + $0x360] sm:$0xff]
  %v147 = vld [vmem:[%s1 + $0x368] sm:$0xff]
  %v148 = vld [vmem:[%s1 + $0x370] sm:$0xff]
  %v149 = vld [vmem:[%s1 + $0x378] sm:$0xff]
  %v150 = vld [vmem:[%s1 + $0x380] sm:$0xff]
  %v151 = vld [vmem:[%s1 + $0x388] sm:$0xff]
  %v152 = vld [vmem:[%s1 + $0x390] sm:$0xff]
  %v153 = vld [vmem:[%s1 + $0x398] sm:$0xff]
  %v154 = vld [vmem:[%s1 + $0x3a0] sm:$0xff]
  %v155 = vld [vmem:[%s1 + $0x3a8] sm:$0xff]
  %v156 = vld [vmem:[%s1 + $0x3b0] sm:$0xff]
  %v157 = vld [vmem:[%s1 + $0x3b8] sm:$0xff]
  %v158 = vld [vmem:[%s1 + $0x3c0] sm:$0xff]
  %v159 = vld [vmem:[%s1 + $0x3c8] sm:$0xff]
  %v160 = vld [vmem:[%s1 + $0x3d0] sm:$0xff]
  %v161 = vld [vmem:[%s1 + $0x3d8] sm:$0xff]
  %v162 = vld [vmem:[%s1 + $0x3e0] sm:$0xff]
  %v163 = vld [vmem:[%s1 + $0x3e8] sm:$0xff]
  %v164 = vld [vmem:[%s1 + $0x3f0] sm:$0xff]
  %v165 = vld [vmem:[%s1 + $0x3f8] sm:$0xff]
  %166 = vmatprep.subr.mxu0 %v99
  %167 = vmatpush1.msra.mxu0 %v98
  %168 = vmatprep.subr.mxu0 %v95
  %169 = vmatpush1.msra.mxu0 %v94
  %170 = vmatprep.subr.mxu0 %v91
  %171 = vmatpush1.msra.mxu0 %v90
  %172 = vmatprep.subr.mxu0 %v87
  %173 = vmatpush1.msra.mxu0 %v86
  %174 = vmatprep.subr.mxu0 %v83
  %175 = vmatpush1.msra.mxu0 %v82
  %176 = vmatprep.subr.mxu0 %v79
  %177 = vmatpush1.msra.mxu0 %v78
  %178 = vmatprep.subr.mxu0 %v75
  %179 = vmatpush1.msra.mxu0 %v74
  %180 = vmatprep.subr.mxu0 %v71
  %181 = vmatpush1.msra.mxu0 %v70
  %182 = vmatprep.subr.mxu0 %v67
  %183 = vmatpush1.msra.mxu0 %v66
  %184 = vmatprep.subr.mxu0 %v63
  %185 = vmatpush1.msra.mxu0 %v62
  %186 = vmatprep.subr.mxu0 %v59
  %187 = vmatpush1.msra.mxu0 %v58
  %188 = vmatprep.subr.mxu0 %v55
  %189 = vmatpush1.msra.mxu0 %v54
  %190 = vmatprep.subr.mxu0 %v51
  %191 = vmatpush1.msra.mxu0 %v50
  %192 = vmatprep.subr.mxu0 %v47
  %193 = vmatpush1.msra.mxu0 %v46
  %194 = vmatprep.subr.mxu0 %v43
  %195 = vmatpush1.msra.mxu0 %v42
  %196 = vmatprep.subr.mxu0 %v39
  %197 = vmatpush1.msra.mxu0 %v38
  %198 = vmatprep.subr.mxu0 %v163
  %199 = vmatpush2.msra.mxu0 %v162
  %200 = vmatprep.subr.mxu0 %v159
  %201 = vmatpush2.msra.mxu0 %v158
  %202 = vmatprep.subr.mxu0 %v155
  %203 = vmatpush2.msra.mxu0 %v154
  %204 = vmatprep.subr.mxu0 %v151
  %205 = vmatpush2.msra.mxu0 %v150
  %206 = vmatprep.subr.mxu0 %v147
  %207 = vmatpush2.msra.mxu0 %v146
  %208 = vmatprep.subr.mxu0 %v143
  %209 = vmatpush2.msra.mxu0 %v142
  %210 = vmatprep.subr.mxu0 %v139
  %211 = vmatpush2.msra.mxu0 %v138
  %212 = vmatprep.subr.mxu0 %v135
  %213 = vmatpush2.msra.mxu0 %v134
  %214 = vmatprep.subr.mxu0 %v131
  %215 = vmatpush2.msra.mxu0 %v130
  %216 = vmatprep.subr.mxu0 %v127
  %217 = vmatpush2.msra.mxu0 %v126
  %218 = vmatprep.subr.mxu0 %v123
  %219 = vmatpush2.msra.mxu0 %v122
  %220 = vmatprep.subr.mxu0 %v119
  %221 = vmatpush2.msra.mxu0 %v118
  %222 = vmatprep.subr.mxu0 %v115
  %223 = vmatpush2.msra.mxu0 %v114
  %224 = vmatprep.subr.mxu0 %v111
  %225 = vmatpush2.msra.mxu0 %v110
  %226 = vmatprep.subr.mxu0 %v107
  %227 = vmatpush2.msra.mxu0 %v106
  %228 = vmatprep.subr.mxu0 %v103
  %229 = vmatpush2.msra.mxu0 %v102
  %230 = vmatprep.mubr.f32.mxu0 %v35
  %231 = vmatmul.mubr.f32.gmra.mxu0 %v34
  %v232 = vpop.f32.mrf.mxu0
  %v233 = vadd.f32 0.0, %v232
  %v234 = vpop.f32.mrf.mxu0
  %v235 = vadd.f32 0.0, %v234
  %236 = vmatprep.mubr.f32.mxu0 %v37
  %237 = vmatmul.mubr.f32.gmra.mxu0 %v36
  %v238 = vpop.f32.mrf.mxu0
  %v239 = vadd.f32 0.0, %v238
  %v240 = vpop.f32.mrf.mxu0
  %v241 = vadd.f32 0.0, %v240
  %242 = vdwg.mxu0
  %243 = vmatprep.subr.mxu0 %v101
  %244 = vmatpush1.msra.mxu0 %v100
  %245 = vmatprep.subr.mxu0 %v97
  %246 = vmatpush1.msra.mxu0 %v96
  %247 = vmatprep.subr.mxu0 %v93
  %248 = vmatpush1.msra.mxu0 %v92
  %249 = vmatprep.subr.mxu0 %v89
  %250 = vmatpush1.msra.mxu0 %v88
  %251 = vmatprep.subr.mxu0 %v85
  %252 = vmatpush1.msra.mxu0 %v84
  %253 = vmatprep.subr.mxu0 %v81
  %254 = vmatpush1.msra.mxu0 %v80
  %255 = vmatprep.subr.mxu0 %v77
  %256 = vmatpush1.msra.mxu0 %v76
  %257 = vmatprep.subr.mxu0 %v73
  %258 = vmatpush1.msra.mxu0 %v72
  %259 = vmatprep.subr.mxu0 %v69
  %260 = vmatpush1.msra.mxu0 %v68
  %261 = vmatprep.subr.mxu0 %v65
  %262 = vmatpush1.msra.mxu0 %v64
  %263 = vmatprep.subr.mxu0 %v61
  %264 = vmatpush1.msra.mxu0 %v60
  %265 = vmatprep.subr.mxu0 %v57
  %266 = vmatpush1.msra.mxu0 %v56
  %267 = vmatprep.subr.mxu0 %v53
  %268 = vmatpush1.msra.mxu0 %v52
  %269 = vmatprep.subr.mxu0 %v49
  %270 = vmatpush1.msra.mxu0 %v48
  %271 = vmatprep.subr.mxu0 %v45
  %272 = vmatpush1.msra.mxu0 %v44
  %273 = vmatprep.subr.mxu0 %v41
  %274 = vmatpush1.msra.mxu0 %v40
  %275 = vmatprep.subr.mxu0 %v165
  %276 = vmatpush2.msra.mxu0 %v164
  %277 = vmatprep.subr.mxu0 %v161
  %278 = vmatpush2.msra.mxu0 %v160
  %279 = vmatprep.subr.mxu0 %v157
  %280 = vmatpush2.msra.mxu0 %v156
  %281 = vmatprep.subr.mxu0 %v153
  %282 = vmatpush2.msra.mxu0 %v152
  %283 = vmatprep.subr.mxu0 %v149
  %284 = vmatpush2.msra.mxu0 %v148
  %285 = vmatprep.subr.mxu0 %v145
  %286 = vmatpush2.msra.mxu0 %v144
  %287 = vmatprep.subr.mxu0 %v141
  %288 = vmatpush2.msra.mxu0 %v140
  %289 = vmatprep.subr.mxu0 %v137
  %290 = vmatpush2.msra.mxu0 %v136
  %291 = vmatprep.subr.mxu0 %v133
  %292 = vmatpush2.msra.mxu0 %v132
  %293 = vmatprep.subr.mxu0 %v129
  %294 = vmatpush2.msra.mxu0 %v128
  %295 = vmatprep.subr.mxu0 %v125
  %296 = vmatpush2.msra.mxu0 %v124
  %297 = vmatprep.subr.mxu0 %v121
  %298 = vmatpush2.msra.mxu0 %v120
  %299 = vmatprep.subr.mxu0 %v117
  %300 = vmatpush2.msra.mxu0 %v116
  %301 = vmatprep.subr.mxu0 %v113
  %302 = vmatpush2.msra.mxu0 %v112
  %303 = vmatprep.subr.mxu0 %v109
  %304 = vmatpush2.msra.mxu0 %v108
  %305 = vmatprep.subr.mxu0 %v105
  %306 = vmatpush2.msra.mxu0 %v104
  %307 = vmatprep.mubr.f32.mxu0 %v35
  %308 = vmatmul.mubr.f32.gmra.mxu0 %v34
  %v309 = vpop.f32.mrf.mxu0
  %v310 = vadd.f32 0.0, %v309
  %v311 = vpop.f32.mrf.mxu0
  %v312 = vadd.f32 0.0, %v311
  %313 = vmatprep.mubr.f32.mxu0 %v37
  %314 = vmatmul.mubr.f32.gmra.mxu0 %v36
  %v315 = vpop.f32.mrf.mxu0
  %v316 = vadd.f32 0.0, %v315
  %v317 = vpop.f32.mrf.mxu0
  %v318 = vadd.f32 0.0, %v317
  %319 = vdwg.mxu0
  %v320 = vadd.f32 %v26, %v233
  %v321 = vadd.f32 %v27, %v235
  %v322 = vadd.f32 %v28, %v310
  %v323 = vadd.f32 %v29, %v312
  %v324 = vadd.f32 %v30, %v239
  %v325 = vadd.f32 %v31, %v241
  %v326 = vadd.f32 %v32, %v316
  %v327 = vadd.f32 %v33, %v318
  %328 = vst [vmem:[#allocation2] sm:$0xff] %v320
  %329 = vst [vmem:[#allocation2 + $0x8] sm:$0xff] %v321
  %330 = vst [vmem:[#allocation2 + $0x10] sm:$0xff] %v322
  %331 = vst [vmem:[#allocation2 + $0x18] sm:$0xff] %v323
  %332 = vst [vmem:[#allocation2 + $0x20] sm:$0xff] %v324
  %333 = vst [vmem:[#allocation2 + $0x28] sm:$0xff] %v325
  %334 = vst [vmem:[#allocation2 + $0x30] sm:$0xff] %v326
  %335 = vst [vmem:[#allocation2 + $0x38] sm:$0xff] %v327
  // Predicated region
  $region18: #{decoder_forward.9} parent=0 // pred_check
    %p336 = pneg %p14
  $region19: #{decoder_forward.9} parent=0 // pred_check_branch
    %338 = sbr.rel (%p336) target = $region21
  $region20: #{decoder_forward.9} parent=0 // pred_region
    %v339 = vld [vmem:[#allocation2] sm:$0xff]
    %v340 = vld [vmem:[#allocation2 + $0x8] sm:$0xff]
    %v341 = vld [vmem:[#allocation2 + $0x10] sm:$0xff]
    %v342 = vld [vmem:[#allocation2 + $0x18] sm:$0xff]
    %v343 = vld [vmem:[#allocation2 + $0x20] sm:$0xff]
    %v344 = vld [vmem:[#allocation2 + $0x28] sm:$0xff]
    %v345 = vld [vmem:[#allocation2 + $0x30] sm:$0xff]
    %v346 = vld [vmem:[#allocation2 + $0x38] sm:$0xff]
    %v347 = vld [vmem:[%s2] sm:$0xf]
    %v349 = vlaneseq
    %v350 = vshrl.u32 %v349, 7
    %v351 = vsub.s32 0, %v350
    %v352 = vrot.slane %v347, %v351
    %v353 = vlaneseq
    %v354 = vshrl.u32 %v353, 7
    %v355 = vsub.s32 1, %v354
    %v356 = vrot.slane %v347, %v355
    %v357 = vlaneseq
    %v358 = vshrl.u32 %v357, 7
    %v359 = vsub.s32 2, %v358
    %v360 = vrot.slane %v347, %v359
    %v361 = vlaneseq
    %v362 = vshrl.u32 %v361, 7
    %v363 = vsub.s32 3, %v362
    %v364 = vrot.slane %v347, %v363
    %v369 = vadd.f32 %v339, %v352
    %v370 = vadd.f32 %v340, %v356
    %v371 = vadd.f32 %v341, %v360
    %v372 = vadd.f32 %v342, %v364
    %v373 = vadd.f32 %v343, %v352
    %v374 = vadd.f32 %v344, %v356
    %v375 = vadd.f32 %v345, %v360
    %v376 = vadd.f32 %v346, %v364
    %377 = vst [vmem:[%s3] sm:$0xff] %v369
    %378 = vst [vmem:[%s3 + $0x8] sm:$0xff] %v370
    %379 = vst [vmem:[%s3 + $0x10] sm:$0xff] %v371
    %380 = vst [vmem:[%s3 + $0x18] sm:$0xff] %v372
    %381 = vst [vmem:[%s3 + $0x20] sm:$0xff] %v373
    %382 = vst [vmem:[%s3 + $0x28] sm:$0xff] %v374
    %383 = vst [vmem:[%s3 + $0x30] sm:$0xff] %v375
    %384 = vst [vmem:[%s3 + $0x38] sm:$0xff] %v376
  $region21: #{decoder_forward.9} parent=0 // pred_fallthru
    _
  // Predicated region
  $region22: #{decoder_forward.9} parent=0 // pred_check
    _
  $region23: #{decoder_forward.9} parent=0 // pred_check_branch
    %386 = sbr.rel (0) target = $region25
  $region24: #{decoder_forward.9} parent=0 // pred_region
    _
  $region25: #{decoder_forward.9} parent=0 // pred_fallthru
    _
  // Predicated region
  $region26: #{decoder_forward.9} parent=0 // pred_check
    _
  $region27: #{decoder_forward.9} parent=0 // pred_check_branch
    %388 = sbr.rel (0) target = $region29
  $region28: #{decoder_forward.9} parent=0 // pred_region
    _
  $region29: #{decoder_forward.9} parent=0 // pred_fallthru
    _

// kernel: decoder_forward.8
$region0: #{decoder_forward.8}
  #allocation0 [shape = 'u32[]', space=smem, size = 0x4, offset = 0x4, fixed_abs, tag = 'smem constant byte address 0x4 - core index']
  #allocation1 [shape = 'u32[144,128]{1,0:T(1,128)}', space=vmem, size = 0x12000, scoped, tag = 'internal scratch']
  #allocation2 [shape = 'f32[2,256]{1,0:T(2,128)}', space=vmem, size = 0x800, scoped, tag = 'scratch operand']
  #allocation3 [shape = 'f32[2,256]{1,0:T(2,128)}', space=vmem, size = 0x800, scoped, tag = 'scratch operand']
  #allocation4 [shape = 'f32[1,1]{1,0:T(1,128)S(1)}', space=vmem, size = 0x200, scoped, tag = 'scoped memory for decoder_forward.8']
  %s0 = inlined_call_operand.vmem [shape: s32[2,1], index: 0, kind: input, shape index: {}]
  %s1 = inlined_call_operand.vmem [shape: f32[2,16,128], index: 1, kind: input, shape index: {}]
  %s2 = inlined_call_operand.vmem [shape: f32[2,16,256], index: 2, kind: input, shape index: {}]
  %s3 = inlined_call_operand.vmem [shape: f32[7,2,1024], index: 3, kind: input, shape index: {}]
  %s4 = inlined_call_operand.vmem [shape: f32[2,256], index: 4, kind: input, shape index: {}]
  %s5 = inlined_call_operand.vmem [shape: f32[2,256], index: 5, kind: input, shape index: {}]
  %s6 = inlined_call_operand.vmem [shape: f32[256,128], index: 6, kind: input, shape index: {}]
  %s7 = inlined_call_operand.vmem [shape: f32[1,128], index: 7, kind: input, shape index: {}]
  %s8 = inlined_call_operand.vmem [shape: f32[1,128], index: 8, kind: input, shape index: {}]
  %s9 = inlined_call_operand.<no memory space> [shape: f32[1,1], index: 9, kind: input, shape index: {}]
  %s10 = inlined_call_operand.vmem [shape: f32[256,256], index: 10, kind: input, shape index: {}]
  %s11 = inlined_call_operand.vmem [shape: f32[1,256], index: 11, kind: input, shape index: {}]
  %s12 = inlined_call_operand.vmem [shape: f32[256,1024], index: 12, kind: input, shape index: {}]
  %s13 = inlined_call_operand.vmem [shape: f32[256,1024], index: 13, kind: input, shape index: {}]
  %s14 = inlined_call_operand.vmem [shape: f32[7,2,256], index: 14, kind: output, shape index: {0}]
  %s15 = inlined_call_operand.hbm [shape: f32[7,2,16], index: 15, kind: output, shape index: {1}]
  %16 = xla_tuple %s14, %s15
  %s17 = sld [smem:[#allocation0]]
  $region101: #{decoder_forward.8} parent=0
    _
  %s19 = ssub.s32 1, %s17
  %s20 = scalar_select 0, %s19, %s17
  %v21 = vstv %s9
  %22 = vst [vmem:[#allocation4] sm:$0x1] %v21
  $region1: #{decoder_forward.8} parent=0
    #allocation5 [shape = 'u8[2048]{0}', space=vmem, size = 0x800, scoped, tag = 'output window, operand 1']
    #allocation6 [shape = 's32[2]{0}', space=sflag, size = 0x8, scoped, tag = 'scoped memory for decoder_forward.8']
    %23 = vsyncpa [#allocation6], 0
    %s24 = scalar_lea.sflag [#allocation6], 1
    %25 = vsyncpa %s24, 0
    loop: start=0, step=1, limit=9
    $region2: #{decoder_forward.8} parent=1 // loop_pre_header
      _
    $region3: #{decoder_forward.8} parent=1 // loop_header
      %s27 = sphi 0, %s31
      %p28 = scmp.ge.s32.totalorder %s27, 9
      %s35 = sphi 0, %s35
      %s37 = sphi 0, %s35
      %s38 = sphi 0, %s37
      %s52 = sphi 0, %s38
      %s56 = sphi 0, %s56
      %s58 = sphi 0, %s56
      %s59 = sphi 0, %s58
      %s73 = sphi 0, %s59
      %s77 = sphi 0, %s77
      %s79 = sphi 0, %s77
      %s80 = sphi 0, %s79
      %s94 = sphi 0, %s80
      %s100 = sphi 0, %s102
      %s103 = sphi 0, %s100
      %s104 = sphi 0, %s103
      %s120 = sphi 0, %s104
      %s124 = sphi 0, %s124
      %s126 = sphi 0, %s124
      %s127 = sphi 0, %s126
      %s141 = sphi 0, %s127
      %s145 = sphi 0, %s145
      %s147 = sphi 0, %s145
      %s148 = sphi 0, %s147
      %s162 = sphi 0, %s148
      %s166 = sphi 0, %s166
      %s168 = sphi 0, %s166
      %s169 = sphi 0, %s168
      %s183 = sphi 0, %s169
      %s187 = sphi 0, %s187
      %s189 = sphi 0, %s187
      %s190 = sphi 0, %s189
      %s204 = sphi 0, %s190
      %s208 = sphi 0, %s208
      %s210 = sphi 0, %s208
      %s211 = sphi 0, %s210
      %s225 = sphi 0, %s211
      %s229 = sphi 0, %s229
      %s231 = sphi 0, %s229
      %s232 = sphi 0, %s231
      %s246 = sphi 0, %s232
      %s250 = sphi 0, %s250
      %s252 = sphi 0, %s250
      %s253 = sphi 0, %s252
      %s267 = sphi 0, %s253
      %s271 = sphi 0, %s271
      %s273 = sphi 0, %s271
      %s274 = sphi 0, %s273
      %s288 = sphi 0, %s274
      %s292 = sphi 0, %s292
      %s294 = sphi 0, %s292
      %s295 = sphi 0, %s294
      %s309 = sphi 0, %s295
      %s313 = sphi 0, %s313
      %s315 = sphi 0, %s313
      %s316 = sphi 0, %s315
      %s330 = sphi 0, %s316
      %s336 = sphi 0, %s338
      %s339 = sphi 0, %s336
      %s340 = sphi 0, %s339
      %s356 = sphi 0, %s340
      %s362 = sphi 0, %s364
      %s365 = sphi 0, %s362
      %s366 = sphi 0, %s365
      %s382 = sphi 0, %s366
    $region4: #{decoder_forward.8} parent=1 // loop_header_branch
      %30 = sbr.rel (%p28) target = $region8
    $region5: #{decoder_forward.8} parent=1 // loop_body
      %s32 = ssub.s32 %s27, 1
      %s33 = ssub.s32 %s27, 2
      %s34 = sadd.s32 %s27, 1
      %s36 = sadd.s32 %s35, 1
      %p39 = scmp.eq.s32.totalorder %s27, 6
      %p40 = scmp.ne.s32.totalorder %s35, %s37
      %p41 = scmp.eq.s32.totalorder %s27, 0
      %p42 = por %p40, %p41
      %p43 = scmp.ne.s32.totalorder %s35, %s37
      %p44 = scmp.eq.s32.totalorder %s32, 6
      %p45 = por %p43, %p44
      %p46 = scmp.ne.s32.totalorder %s37, %s38
      %p47 = scmp.eq.s32.totalorder %s32, 0
      %p48 = por %p46, %p47
      %p49 = scmp.ne.s32.totalorder %s37, %s38
      %p50 = scmp.eq.s32.totalorder %s33, 6
      %p51 = por %p49, %p50
      %p53 = scmp.ne.s32.totalorder %s38, %s52
      %p54 = scmp.eq.s32.totalorder %s33, 0
      %p55 = por %p53, %p54
      %s57 = sadd.s32 %s56, 1
      %p60 = scmp.eq.s32.totalorder %s27, 6
      %p61 = scmp.ne.s32.totalorder %s56, %s58
      %p62 = scmp.eq.s32.totalorder %s27, 0
      %p63 = por %p61, %p62
      %p64 = scmp.ne.s32.totalorder %s56, %s58
      %p65 = scmp.eq.s32.totalorder %s32, 6
      %p66 = por %p64, %p65
      %p67 = scmp.ne.s32.totalorder %s58, %s59
      %p68 = scmp.eq.s32.totalorder %s32, 0
      %p69 = por %p67, %p68
      %p70 = scmp.ne.s32.totalorder %s58, %s59
      %p71 = scmp.eq.s32.totalorder %s33, 6
      %p72 = por %p70, %p71
      %p74 = scmp.ne.s32.totalorder %s59, %s73
      %p75 = scmp.eq.s32.totalorder %s33, 0
      %p76 = por %p74, %p75
      %s78 = sadd.s32 %s77, 1
      %p81 = scmp.eq.s32.totalorder %s27, 6
      %p82 = scmp.ne.s32.totalorder %s77, %s79
      %p83 = scmp.eq.s32.totalorder %s27, 0
      %p84 = por %p82, %p83
      %p85 = scmp.ne.s32.totalorder %s77, %s79
      %p86 = scmp.eq.s32.totalorder %s32, 6
      %p87 = por %p85, %p86
      %p88 = scmp.ne.s32.totalorder %s79, %s80
      %p89 = scmp.eq.s32.totalorder %s32, 0
      %p90 = por %p88, %p89
      %p91 = scmp.ne.s32.totalorder %s79, %s80
      %p92 = scmp.eq.s32.totalorder %s33, 6
      %p93 = por %p91, %p92
      %p95 = scmp.ne.s32.totalorder %s80, %s94
      %p96 = scmp.eq.s32.totalorder %s33, 0
      %p97 = por %p95, %p96
      %s98 = ssub.s32 %s27, %s34
      %p99 = scmp.eq.s32.totalorder %s98, 0
      %s101 = sadd.s32 %s100, 1
      %s102 = scalar_select %p99, %s100, %s101
      %p105 = pneg %p99
      %p106 = scmp.eq.s32.totalorder %s27, 6
      %p107 = por %p105, %p106
      %p108 = scmp.ne.s32.totalorder %s100, %s103
      %p109 = scmp.eq.s32.totalorder %s27, 0
      %p110 = por %p108, %p109
      %p111 = scmp.ne.s32.totalorder %s100, %s103
      %p112 = scmp.eq.s32.totalorder %s32, 6
      %p113 = por %p111, %p112
      %p114 = scmp.ne.s32.totalorder %s103, %s104
      %p115 = scmp.eq.s32.totalorder %s32, 0
      %p116 = por %p114, %p115
      %p117 = scmp.ne.s32.totalorder %s103, %s104
      %p118 = scmp.eq.s32.totalorder %s33, 6
      %p119 = por %p117, %p118
      %p121 = scmp.ne.s32.totalorder %s104, %s120
      %p122 = scmp.eq.s32.totalorder %s33, 0
      %p123 = por %p121, %p122
      %s125 = sadd.s32 %s124, 1
      %p128 = scmp.eq.s32.totalorder %s27, 6
      %p129 = scmp.ne.s32.totalorder %s124, %s126
      %p130 = scmp.eq.s32.totalorder %s27, 0
      %p131 = por %p129, %p130
      %p132 = scmp.ne.s32.totalorder %s124, %s126
      %p133 = scmp.eq.s32.totalorder %s32, 6
      %p134 = por %p132, %p133
      %p135 = scmp.ne.s32.totalorder %s126, %s127
      %p136 = scmp.eq.s32.totalorder %s32, 0
      %p137 = por %p135, %p136
      %p138 = scmp.ne.s32.totalorder %s126, %s127
      %p139 = scmp.eq.s32.totalorder %s33, 6
      %p140 = por %p138, %p139
      %p142 = scmp.ne.s32.totalorder %s127, %s141
      %p143 = scmp.eq.s32.totalorder %s33, 0
      %p144 = por %p142, %p143
      %s146 = sadd.s32 %s145, 1
      %p149 = scmp.eq.s32.totalorder %s27, 6
      %p150 = scmp.ne.s32.totalorder %s145, %s147
      %p151 = scmp.eq.s32.totalorder %s27, 0
      %p152 = por %p150, %p151
      %p153 = scmp.ne.s32.totalorder %s145, %s147
      %p154 = scmp.eq.s32.totalorder %s32, 6
      %p155 = por %p153, %p154
      %p156 = scmp.ne.s32.totalorder %s147, %s148
      %p157 = scmp.eq.s32.totalorder %s32, 0
      %p158 = por %p156, %p157
      %p159 = scmp.ne.s32.totalorder %s147, %s148
      %p160 = scmp.eq.s32.totalorder %s33, 6
      %p161 = por %p159, %p160
      %p163 = scmp.ne.s32.totalorder %s148, %s162
      %p164 = scmp.eq.s32.totalorder %s33, 0
      %p165 = por %p163, %p164
      %s167 = sadd.s32 %s166, 1
      %p170 = scmp.eq.s32.totalorder %s27, 6
      %p171 = scmp.ne.s32.totalorder %s166, %s168
      %p172 = scmp.eq.s32.totalorder %s27, 0
      %p173 = por %p171, %p172
      %p174 = scmp.ne.s32.totalorder %s166, %s168
      %p175 = scmp.eq.s32.totalorder %s32, 6
      %p176 = por %p174, %p175
      %p177 = scmp.ne.s32.totalorder %s168, %s169
      %p178 = scmp.eq.s32.totalorder %s32, 0
      %p179 = por %p177, %p178
      %p180 = scmp.ne.s32.totalorder %s168, %s169
      %p181 = scmp.eq.s32.totalorder %s33, 6
      %p182 = por %p180, %p181
      %p184 = scmp.ne.s32.totalorder %s169, %s183
      %p185 = scmp.eq.s32.totalorder %s33, 0
      %p186 = por %p184, %p185
      %s188 = sadd.s32 %s187, 1
      %p191 = scmp.eq.s32.totalorder %s27, 6
      %p192 = scmp.ne.s32.totalorder %s187, %s189
      %p193 = scmp.eq.s32.totalorder %s27, 0
      %p194 = por %p192, %p193
      %p195 = scmp.ne.s32.totalorder %s187, %s189
      %p196 = scmp.eq.s32.totalorder %s32, 6
      %p197 = por %p195, %p196
      %p198 = scmp.ne.s32.totalorder %s189, %s190
      %p199 = scmp.eq.s32.totalorder %s32, 0
      %p200 = por %p198, %p199
      %p201 = scmp.ne.s32.totalorder %s189, %s190
      %p202 = scmp.eq.s32.totalorder %s33, 6
      %p203 = por %p201, %p202
      %p205 = scmp.ne.s32.totalorder %s190, %s204
      %p206 = scmp.eq.s32.totalorder %s33, 0
      %p207 = por %p205, %p206
      %s209 = sadd.s32 %s208, 1
      %p212 = scmp.eq.s32.totalorder %s27, 6
      %p213 = scmp.ne.s32.totalorder %s208, %s210
      %p214 = scmp.eq.s32.totalorder %s27, 0
      %p215 = por %p213, %p214
      %p216 = scmp.ne.s32.totalorder %s208, %s210
      %p217 = scmp.eq.s32.totalorder %s32, 6
      %p218 = por %p216, %p217
      %p219 = scmp.ne.s32.totalorder %s210, %s211
      %p220 = scmp.eq.s32.totalorder %s32, 0
      %p221 = por %p219, %p220
      %p222 = scmp.ne.s32.totalorder %s210, %s211
      %p223 = scmp.eq.s32.totalorder %s33, 6
      %p224 = por %p222, %p223
      %p226 = scmp.ne.s32.totalorder %s211, %s225
      %p227 = scmp.eq.s32.totalorder %s33, 0
      %p228 = por %p226, %p227
      %s230 = sadd.s32 %s229, 1
      %p233 = scmp.eq.s32.totalorder %s27, 6
      %p234 = scmp.ne.s32.totalorder %s229, %s231
      %p235 = scmp.eq.s32.totalorder %s27, 0
      %p236 = por %p234, %p235
      %p237 = scmp.ne.s32.totalorder %s229, %s231
      %p238 = scmp.eq.s32.totalorder %s32, 6
      %p239 = por %p237, %p238
      %p240 = scmp.ne.s32.totalorder %s231, %s232
      %p241 = scmp.eq.s32.totalorder %s32, 0
      %p242 = por %p240, %p241
      %p243 = scmp.ne.s32.totalorder %s231, %s232
      %p244 = scmp.eq.s32.totalorder %s33, 6
      %p245 = por %p243, %p244
      %p247 = scmp.ne.s32.totalorder %s232, %s246
      %p248 = scmp.eq.s32.totalorder %s33, 0
      %p249 = por %p247, %p248
      %s251 = sadd.s32 %s250, 1
      %p254 = scmp.eq.s32.totalorder %s27, 6
      %p255 = scmp.ne.s32.totalorder %s250, %s252
      %p256 = scmp.eq.s32.totalorder %s27, 0
      %p257 = por %p255, %p256
      %p258 = scmp.ne.s32.totalorder %s250, %s252
      %p259 = scmp.eq.s32.totalorder %s32, 6
      %p260 = por %p258, %p259
      %p261 = scmp.ne.s32.totalorder %s252, %s253
      %p262 = scmp.eq.s32.totalorder %s32, 0
      %p263 = por %p261, %p262
      %p264 = scmp.ne.s32.totalorder %s252, %s253
      %p265 = scmp.eq.s32.totalorder %s33, 6
      %p266 = por %p264, %p265
      %p268 = scmp.ne.s32.totalorder %s253, %s267
      %p269 = scmp.eq.s32.totalorder %s33, 0
      %p270 = por %p268, %p269
      %s272 = sadd.s32 %s271, 1
      %p275 = scmp.eq.s32.totalorder %s27, 6
      %p276 = scmp.ne.s32.totalorder %s271, %s273
      %p277 = scmp.eq.s32.totalorder %s27, 0
      %p278 = por %p276, %p277
      %p279 = scmp.ne.s32.totalorder %s271, %s273
      %p280 = scmp.eq.s32.totalorder %s32, 6
      %p281 = por %p279, %p280
      %p282 = scmp.ne.s32.totalorder %s273, %s274
      %p283 = scmp.eq.s32.totalorder %s32, 0
      %p284 = por %p282, %p283
      %p285 = scmp.ne.s32.totalorder %s273, %s274
      %p286 = scmp.eq.s32.totalorder %s33, 6
      %p287 = por %p285, %p286
      %p289 = scmp.ne.s32.totalorder %s274, %s288
      %p290 = scmp.eq.s32.totalorder %s33, 0
      %p291 = por %p289, %p290
      %s293 = sadd.s32 %s292, 1
      %p296 = scmp.eq.s32.totalorder %s27, 6
      %p297 = scmp.ne.s32.totalorder %s292, %s294
      %p298 = scmp.eq.s32.totalorder %s27, 0
      %p299 = por %p297, %p298
      %p300 = scmp.ne.s32.totalorder %s292, %s294
      %p301 = scmp.eq.s32.totalorder %s32, 6
      %p302 = por %p300, %p301
      %p303 = scmp.ne.s32.totalorder %s294, %s295
      %p304 = scmp.eq.s32.totalorder %s32, 0
      %p305 = por %p303, %p304
      %p306 = scmp.ne.s32.totalorder %s294, %s295
      %p307 = scmp.eq.s32.totalorder %s33, 6
      %p308 = por %p306, %p307
      %p310 = scmp.ne.s32.totalorder %s295, %s309
      %p311 = scmp.eq.s32.totalorder %s33, 0
      %p312 = por %p310, %p311
      %s314 = sadd.s32 %s313, 1
      %p317 = scmp.eq.s32.totalorder %s27, 6
      %p318 = scmp.ne.s32.totalorder %s313, %s315
      %p319 = scmp.eq.s32.totalorder %s27, 0
      %p320 = por %p318, %p319
      %p321 = scmp.ne.s32.totalorder %s313, %s315
      %p322 = scmp.eq.s32.totalorder %s32, 6
      %p323 = por %p321, %p322
      %p324 = scmp.ne.s32.totalorder %s315, %s316
      %p325 = scmp.eq.s32.totalorder %s32, 0
      %p326 = por %p324, %p325
      %p327 = scmp.ne.s32.totalorder %s315, %s316
      %p328 = scmp.eq.s32.totalorder %s33, 6
      %p329 = por %p327, %p328
      %p331 = scmp.ne.s32.totalorder %s316, %s330
      %p332 = scmp.eq.s32.totalorder %s33, 0
      %p333 = por %p331, %p332
      %s334 = ssub.s32 %s27, %s34
      %p335 = scmp.eq.s32.totalorder %s334, 0
      %s337 = sadd.s32 %s336, 1
      %s338 = scalar_select %p335, %s336, %s337
      %p341 = pneg %p335
      %p342 = scmp.eq.s32.totalorder %s27, 6
      %p343 = por %p341, %p342
      %p344 = scmp.ne.s32.totalorder %s336, %s339
      %p345 = scmp.eq.s32.totalorder %s27, 0
      %p346 = por %p344, %p345
      %p347 = scmp.ne.s32.totalorder %s336, %s339
      %p348 = scmp.eq.s32.totalorder %s32, 6
      %p349 = por %p347, %p348
      %p350 = scmp.ne.s32.totalorder %s339, %s340
      %p351 = scmp.eq.s32.totalorder %s32, 0
      %p352 = por %p350, %p351
      %p353 = scmp.ne.s32.totalorder %s339, %s340
      %p354 = scmp.eq.s32.totalorder %s33, 6
      %p355 = por %p353, %p354
      %p357 = scmp.ne.s32.totalorder %s340, %s356
      %p358 = scmp.eq.s32.totalorder %s33, 0
      %p359 = por %p357, %p358
      %s360 = ssub.s32 %s27, %s34
      %p361 = scmp.eq.s32.totalorder %s360, 0
      %s363 = sadd.s32 %s362, 1
      %s364 = scalar_select %p361, %s362, %s363
      %p367 = pneg %p361
      %p368 = scmp.eq.s32.totalorder %s27, 6
      %p369 = por %p367, %p368
      %p370 = scmp.ne.s32.totalorder %s362, %s365
      %p371 = scmp.eq.s32.totalorder %s27, 0
      %p372 = por %p370, %p371
      %p373 = scmp.ne.s32.totalorder %s362, %s365
      %p374 = scmp.eq.s32.totalorder %s32, 6
      %p375 = por %p373, %p374
      %p376 = scmp.ne.s32.totalorder %s365, %s366
      %p377 = scmp.eq.s32.totalorder %s32, 0
      %p378 = por %p376, %p377
      %p379 = scmp.ne.s32.totalorder %s365, %s366
      %p380 = scmp.eq.s32.totalorder %s33, 6
      %p381 = por %p379, %p380
      %p383 = scmp.ne.s32.totalorder %s366, %s382
      %p384 = scmp.eq.s32.totalorder %s33, 0
      %p385 = por %p383, %p384
      %p386 = scmp.le.s32.totalorder 1, %s27
      %p387 = scmp.lt.s32.totalorder %s27, 8
      %p388 = pnand %p386, %p387
      %p389 = pneg %p388
      // Predicated region
      $region9: #{decoder_forward.8} parent=5 // pred_check
        _
      $region10: #{decoder_forward.8} parent=5 // pred_check_branch
        %391 = sbr.rel (%p388) target = $region12
      $region11: #{decoder_forward.8} parent=5 // pred_region
        %s392 = ssub.s32 %s27, 1
        // Predicated region
        $region13: #{decoder_forward.8} parent=11 // pred_check
          %p393 = pneg %p48
        $region14: #{decoder_forward.8} parent=11 // pred_check_branch
          %395 = sbr.rel (%p393) target = $region16
        $region15: #{decoder_forward.8} parent=11 // pred_region
          _
        $region16: #{decoder_forward.8} parent=11 // pred_fallthru
          _
        // Predicated region
        $region17: #{decoder_forward.8} parent=11 // pred_check
          %p396 = pneg %p69
        $region18: #{decoder_forward.8} parent=11 // pred_check_branch
          %398 = sbr.rel (%p396) target = $region20
        $region19: #{decoder_forward.8} parent=11 // pred_region
          _
        $region20: #{decoder_forward.8} parent=11 // pred_fallthru
          _
        // Predicated region
        $region21: #{decoder_forward.8} parent=11 // pred_check
          %p399 = pneg %p90
        $region22: #{decoder_forward.8} parent=11 // pred_check_branch
          %401 = sbr.rel (%p399) target = $region24
        $region23: #{decoder_forward.8} parent=11 // pred_region
          _
        $region24: #{decoder_forward.8} parent=11 // pred_fallthru
          _
        // Predicated region
        $region25: #{decoder_forward.8} parent=11 // pred_check
          %p402 = pneg %p137
        $region26: #{decoder_forward.8} parent=11 // pred_check_branch
          %404 = sbr.rel (%p402) target = $region28
        $region27: #{decoder_forward.8} parent=11 // pred_region
          _
        $region28: #{decoder_forward.8} parent=11 // pred_fallthru
          _
        // Predicated region
        $region29: #{decoder_forward.8} parent=11 // pred_check
          %p405 = pneg %p158
        $region30: #{decoder_forward.8} parent=11 // pred_check_branch
          %407 = sbr.rel (%p405) target = $region32
        $region31: #{decoder_forward.8} parent=11 // pred_region
          _
        $region32: #{decoder_forward.8} parent=11 // pred_fallthru
          _
        // Predicated region
        $region33: #{decoder_forward.8} parent=11 // pred_check
          %p408 = pneg %p179
        $region34: #{decoder_forward.8} parent=11 // pred_check_branch
          %410 = sbr.rel (%p408) target = $region36
        $region35: #{decoder_forward.8} parent=11 // pred_region
          _
        $region36: #{decoder_forward.8} parent=11 // pred_fallthru
          _
        // Predicated region
        $region37: #{decoder_forward.8} parent=11 // pred_check
          %p411 = pneg %p200
        $region38: #{decoder_forward.8} parent=11 // pred_check_branch
          %413 = sbr.rel (%p411) target = $region40
        $region39: #{decoder_forward.8} parent=11 // pred_region
          _
        $region40: #{decoder_forward.8} parent=11 // pred_fallthru
          _
        // Predicated region
        $region41: #{decoder_forward.8} parent=11 // pred_check
          %p414 = pneg %p221
        $region42: #{decoder_forward.8} parent=11 // pred_check_branch
          %416 = sbr.rel (%p414) target = $region44
        $region43: #{decoder_forward.8} parent=11 // pred_region
          _
        $region44: #{decoder_forward.8} parent=11 // pred_fallthru
          _
        // Predicated region
        $region45: #{decoder_forward.8} parent=11 // pred_check
          %p417 = pneg %p242
        $region46: #{decoder_forward.8} parent=11 // pred_check_branch
          %419 = sbr.rel (%p417) target = $region48
        $region47: #{decoder_forward.8} parent=11 // pred_region
          _
        $region48: #{decoder_forward.8} parent=11 // pred_fallthru
          _
        // Predicated region
        $region49: #{decoder_forward.8} parent=11 // pred_check
          %p420 = pneg %p263
        $region50: #{decoder_forward.8} parent=11 // pred_check_branch
          %422 = sbr.rel (%p420) target = $region52
        $region51: #{decoder_forward.8} parent=11 // pred_region
          _
        $region52: #{decoder_forward.8} parent=11 // pred_fallthru
          _
        // Predicated region
        $region53: #{decoder_forward.8} parent=11 // pred_check
          %p423 = pneg %p284
        $region54: #{decoder_forward.8} parent=11 // pred_check_branch
          %425 = sbr.rel (%p423) target = $region56
        $region55: #{decoder_forward.8} parent=11 // pred_region
          _
        $region56: #{decoder_forward.8} parent=11 // pred_fallthru
          _
        // Predicated region
        $region57: #{decoder_forward.8} parent=11 // pred_check
          %p426 = pneg %p305
        $region58: #{decoder_forward.8} parent=11 // pred_check_branch
          %428 = sbr.rel (%p426) target = $region60
        $region59: #{decoder_forward.8} parent=11 // pred_region
          _
        $region60: #{decoder_forward.8} parent=11 // pred_fallthru
          _
        // Predicated region
        $region61: #{decoder_forward.8} parent=11 // pred_check
          %p429 = pneg %p326
        $region62: #{decoder_forward.8} parent=11 // pred_check_branch
          %431 = sbr.rel (%p429) target = $region64
        $region63: #{decoder_forward.8} parent=11 // pred_region
          _
        $region64: #{decoder_forward.8} parent=11 // pred_fallthru
          _
      $region12: #{decoder_forward.8} parent=5 // pred_fallthru
        _
      %p432 = scmp.lt.s32.totalorder %s27, 7
      // Predicated region
      $region65: #{decoder_forward.8} parent=5 // pred_check
        %p433 = pneg %p432
      $region66: #{decoder_forward.8} parent=5 // pred_check_branch
        %435 = sbr.rel (%p433) target = $region68
      $region67: #{decoder_forward.8} parent=5 // pred_region
        // Predicated region
        $region69: #{decoder_forward.8} parent=67 // pred_check
          %p436 = pneg %p110
        $region70: #{decoder_forward.8} parent=67 // pred_check_branch
          %438 = sbr.rel (%p436) target = $region72
        $region71: #{decoder_forward.8} parent=67 // pred_region
          %p439 = scmp.lt.s32.totalorder %s27, 6
          %s440 = scalar_select %p439, %s27, 6
          %s441 = smul.addr %s440, 8
          %s442 = smul.addr %s441, 2
          %s443 = scalar_lea.vmem %s3, %s442
        $region72: #{decoder_forward.8} parent=67 // pred_fallthru
          _
      $region68: #{decoder_forward.8} parent=5 // pred_fallthru
        _
      %p444 = scmp.le.s32.totalorder 1, %s27
      %p445 = scmp.lt.s32.totalorder %s27, 8
      %p446 = pnand %p444, %p445
      %p447 = pneg %p446
      // Predicated region
      $region73: #{decoder_forward.8} parent=5 // pred_check
        _
      $region74: #{decoder_forward.8} parent=5 // pred_check_branch
        %449 = sbr.rel (%p446) target = $region76
      $region75: #{decoder_forward.8} parent=5 // pred_region
        %s450 = ssub.s32 %s27, 1
        %p451 = pneg %p48
        %p452 = pneg %p45
        %p453 = pneg %p69
        %p454 = pneg %p66
        %p455 = pneg %p90
        %p456 = pneg %p87
        %p457 = scmp.lt.s32.totalorder %s32, 6
        %s458 = scalar_select %p457, %s32, 6
        %s459 = smul.addr %s458, 8
        %s460 = smul.addr %s459, 2
        %s461 = scalar_lea.vmem %s3, %s460
        %p462 = pneg %p116
        %p463 = pneg %p113
        %p464 = pneg %p137
        %p465 = pneg %p134
        %p466 = pneg %p158
        %p467 = pneg %p155
        %p468 = pneg %p179
        %p469 = pneg %p176
        %p470 = pneg %p200
        %p471 = pneg %p197
        %p472 = pneg %p221
        %p473 = pneg %p218
        %p474 = pneg %p242
        %p475 = pneg %p239
        %p476 = pneg %p263
        %p477 = pneg %p260
        %p478 = pneg %p284
        %p479 = pneg %p281
        %p480 = pneg %p305
        %p481 = pneg %p302
        %p482 = pneg %p326
        %p483 = pneg %p323
        %p484 = pneg %p352
        %p485 = pneg %p349
        %p486 = scmp.lt.s32.totalorder %s32, 6
        %s487 = scalar_select %p486, %s32, 6
        %s488 = smul.addr %s487, 2
        %s489 = smul.addr %s488, 2
        %s490 = scalar_lea.vmem %s14, %s489
        %p491 = pneg %p378
        %p492 = pneg %p375
        %s493 = sand.u32 %s365, 1
        %s494 = scalar_lea.sflag [#allocation6], %s493
        %s495 = sand.u32 %s365, 1
        %s496 = smul.addr %s495, 2
        %s497 = scalar_lea.vmem [#allocation5], %s496
        %p498 = scmp.lt.s32.totalorder %s32, 6
        %s499 = scalar_select %p498, %s32, 6
        %s500 = smul.addr %s499, 8
        %s501 = smul.addr %s500, 2
        %s502 = scalar_lea.vmem %s3, %s501
        %p503 = scmp.lt.s32.totalorder %s32, 6
        %s504 = scalar_select %p503, %s32, 6
        %s505 = smul.addr %s504, 2
        %s506 = smul.addr %s505, 2
        %s507 = scalar_lea.vmem %s14, %s506
        %p508 = scmp.eq.s32.totalorder %s32, 0
        // Predicated region
        $region77: #{decoder_forward.8} parent=75 // pred_check
          %p509 = pneg %p508
        $region78: #{decoder_forward.8} parent=75 // pred_check_branch
          %511 = sbr.rel (%p509) target = $region80
        $region79: #{decoder_forward.8} parent=75 // pred_region
          %v512 = vld [vmem:[%s4] sm:$0xf]
          %513 = vst [vmem:[#allocation2] sm:$0xf] %v512
          %v514 = vld [vmem:[%s5] sm:$0xf]
          %515 = vst [vmem:[#allocation3] sm:$0xf] %v514
        $region80: #{decoder_forward.8} parent=75 // pred_fallthru
          _
        %v516 = vld [vmem:[#allocation2] sm:$0xf]
        %v517 = vld [vmem:[#allocation3] sm:$0xf]
        %v518 = vld [vmem:[%s6] sm:$0xff]
        %v519 = vld [vmem:[%s6 + $0x8] sm:$0xff]
        %v520 = vld [vmem:[%s6 + $0x10] sm:$0xff]
        %v521 = vld [vmem:[%s6 + $0x18] sm:$0xff]
        %v522 = vld [vmem:[%s6 + $0x20] sm:$0xff]
        %v523 = vld [vmem:[%s6 + $0x28] sm:$0xff]
        %v524 = vld [vmem:[%s6 + $0x30] sm:$0xff]
        %v525 = vld [vmem:[%s6 + $0x38] sm:$0xff]
        %v526 = vld [vmem:[%s6 + $0x40] sm:$0xff]
        %v527 = vld [vmem:[%s6 + $0x48] sm:$0xff]
        %v528 = vld [vmem:[%s6 + $0x50] sm:$0xff]
        %v529 = vld [vmem:[%s6 + $0x58] sm:$0xff]
        %v530 = vld [vmem:[%s6 + $0x60] sm:$0xff]
        %v531 = vld [vmem:[%s6 + $0x68] sm:$0xff]
        %v532 = vld [vmem:[%s6 + $0x70] sm:$0xff]
        %v533 = vld [vmem:[%s6 + $0x78] sm:$0xff]
        %v534 = vld [vmem:[%s6 + $0x80] sm:$0xff]
        %v535 = vld [vmem:[%s6 + $0x88] sm:$0xff]
        %v536 = vld [vmem:[%s6 + $0x90] sm:$0xff]
        %v537 = vld [vmem:[%s6 + $0x98] sm:$0xff]
        %v538 = vld [vmem:[%s6 + $0xa0] sm:$0xff]
        %v539 = vld [vmem:[%s6 + $0xa8] sm:$0xff]
        %v540 = vld [vmem:[%s6 + $0xb0] sm:$0xff]
        %v541 = vld [vmem:[%s6 + $0xb8] sm:$0xff]
        %v542 = vld [vmem:[%s6 + $0xc0] sm:$0xff]
        %v543 = vld [vmem:[%s6 + $0xc8] sm:$0xff]
        %v544 = vld [vmem:[%s6 + $0xd0] sm:$0xff]
        %v545 = vld [vmem:[%s6 + $0xd8] sm:$0xff]
        %v546 = vld [vmem:[%s6 + $0xe0] sm:$0xff]
        %v547 = vld [vmem:[%s6 + $0xe8] sm:$0xff]
        %v548 = vld [vmem:[%s6 + $0xf0] sm:$0xff]
        %v549 = vld [vmem:[%s6 + $0xf8] sm:$0xff]
        %v550 = vld [vmem:[%s7] sm:$0x1]
        %v552 = vlaneseq
        %v553 = vshrl.u32 %v552, 7
        %v554 = vsub.s32 0, %v553
        %v555 = vrot.slane %v550, %v554
        %v559 = vunpack.c.l.s4 1983009808
        %v560 = vunpack.c.0.s8 %v559
        %v561 = vlaneseq
        %v562 = vshrl.u32 %v561, 7
        %v563 = vsub.s32 %v560, %v562
        %v564 = vrot.slane %v516, %v563
        %v565 = vcombine.high %v564, %v564
        %568 = vmatprep.subr.mxu0 0.0
        %569 = vmatpush1.msra.mxu0 %v533
        %570 = vmatprep.subr.mxu0 0.0
        %571 = vmatpush1.msra.mxu0 %v532
        %572 = vmatprep.subr.mxu0 0.0
        %573 = vmatpush1.msra.mxu0 %v531
        %574 = vmatprep.subr.mxu0 0.0
        %575 = vmatpush1.msra.mxu0 %v530
        %576 = vmatprep.subr.mxu0 0.0
        %577 = vmatpush1.msra.mxu0 %v529
        %578 = vmatprep.subr.mxu0 0.0
        %579 = vmatpush1.msra.mxu0 %v528
        %580 = vmatprep.subr.mxu0 0.0
        %581 = vmatpush1.msra.mxu0 %v527
        %582 = vmatprep.subr.mxu0 0.0
        %583 = vmatpush1.msra.mxu0 %v526
        %584 = vmatprep.subr.mxu0 0.0
        %585 = vmatpush1.msra.mxu0 %v525
        %586 = vmatprep.subr.mxu0 0.0
        %587 = vmatpush1.msra.mxu0 %v524
        %588 = vmatprep.subr.mxu0 0.0
        %589 = vmatpush1.msra.mxu0 %v523
        %590 = vmatprep.subr.mxu0 0.0
        %591 = vmatpush1.msra.mxu0 %v522
        %592 = vmatprep.subr.mxu0 0.0
        %593 = vmatpush1.msra.mxu0 %v521
        %594 = vmatprep.subr.mxu0 0.0
        %595 = vmatpush1.msra.mxu0 %v520
        %596 = vmatprep.subr.mxu0 0.0
        %597 = vmatpush1.msra.mxu0 %v519
        %598 = vmatprep.subr.mxu0 0.0
        %599 = vmatpush1.msra.mxu0 %v518
        %600 = vmatprep.subr.mxu0 0.0
        %601 = vmatpush2.msra.mxu0 %v549
        %602 = vmatprep.subr.mxu0 0.0
        %603 = vmatpush2.msra.mxu0 %v548
        %604 = vmatprep.subr.mxu0 0.0
        %605 = vmatpush2.msra.mxu0 %v547
        %606 = vmatprep.subr.mxu0 0.0
        %607 = vmatpush2.msra.mxu0 %v546
        %608 = vmatprep.subr.mxu0 0.0
        %609 = vmatpush2.msra.mxu0 %v545
        %610 = vmatprep.subr.mxu0 0.0
        %611 = vmatpush2.msra.mxu0 %v544
        %612 = vmatprep.subr.mxu0 0.0
        %613 = vmatpush2.msra.mxu0 %v543
        %614 = vmatprep.subr.mxu0 0.0
        %615 = vmatpush2.msra.mxu0 %v542
        %616 = vmatprep.subr.mxu0 0.0
        %617 = vmatpush2.msra.mxu0 %v541
        %618 = vmatprep.subr.mxu0 0.0
        %619 = vmatpush2.msra.mxu0 %v540
        %620 = vmatprep.subr.mxu0 0.0
        %621 = vmatpush2.msra.mxu0 %v539
        %622 = vmatprep.subr.mxu0 0.0
        %623 = vmatpush2.msra.mxu0 %v538
        %624 = vmatprep.subr.mxu0 0.0
        %625 = vmatpush2.msra.mxu0 %v537
        %626 = vmatprep.subr.mxu0 0.0
        %627 = vmatpush2.msra.mxu0 %v536
        %628 = vmatprep.subr.mxu0 0.0
        %629 = vmatpush2.msra.mxu0 %v535
        %630 = vmatprep.subr.mxu0 0.0
        %631 = vmatpush2.msra.mxu0 %v534
        %632 = vmatprep.mubr.f32.mxu0 %v565
        %633 = vmatmul.mubr.f32.gmra.mxu0 %v564
        %v634 = vpop.f32.mrf.mxu0
        %v635 = vadd.f32 %v555, %v634
        %v636 = vpop.f32.mrf.mxu0
        %637 = vdwg.mxu0
        %v638 = vld [vmem:[%s1] sm:$0xff]
        %v639 = vld [vmem:[%s1 + $0x8] sm:$0xff]
        %v640 = vld [vmem:[%s1 + $0x10] sm:$0xff]
        %v641 = vld [vmem:[%s1 + $0x18] sm:$0xff]
        %v644 = vunpack.c.l.s4 1966171168
        %v645 = vunpack.c.0.s8 %v644
        %v646 = vlaneseq
        %v647 = vshrl.u32 %v646, 7
        %v648 = vsub.s32 %v645, %v647
        %v649 = vrot.slane %v635, %v648
        %v650 = vcombine.high %v649, %v649
        %v652 = vunpack.c.l.s4 1966171168
        %v653 = vunpack.c.0.s8 %v652
        %v654 = vlaneseq
        %v655 = vshrl.u32 %v654, 7
        %v656 = vsub.s32 %v653, %v655
        %v657 = vrot.slane %v649, %v656
        %v659 = vunpack.c.l.s4 1966171168
        %v660 = vunpack.c.0.s8 %v659
        %v661 = vlaneseq
        %v662 = vshrl.u32 %v661, 7
        %v663 = vsub.s32 %v660, %v662
        %v664 = vrot.slane %v650, %v663
        %v665 = vlaneseq
        %v666 = vshrl.u32 %v665, 7
        %v667 = vsub.s32 0, %v666
        %v668 = vrot.slane %v657, %v667
        %v669 = vlaneseq
        %v670 = vshrl.u32 %v669, 7
        %v671 = vsub.s32 0, %v670
        %v672 = vrot.slane %v664, %v671
        %v675 = vadd.f32 %v638, %v668
        %v676 = vadd.f32 %v639, %v668
        %v677 = vadd.f32 %v640, %v672
        %v678 = vadd.f32 %v641, %v672
        %v679 = vmax.f32 %v675, 0.0
        %v680 = vmax.f32 %v676, 0.0
        %v681 = vmax.f32 %v677, 0.0
        %v682 = vmax.f32 %v678, 0.0
        %v683 = vld [vmem:[%s8] sm:$0x1]
        %v685 = vlaneseq
        %v686 = vshrl.u32 %v685, 7
        %v687 = vsub.s32 0, %v686
        %v688 = vrot.slane %v683, %v687
        %v690 = vmul.f32 %v679, %v688
        %v691 = vmul.f32 %v680, %v688
        %v692 = vmul.f32 %v681, %v688
        %v693 = vmul.f32 %v682, %v688
        %694 = vadd.xlane.f32.xlu0 %v690
        %v695 = vpop.xlane.xlu0 %694
        %696 = vadd.xlane.f32.xlu0 %v691
        %v697 = vpop.xlane.xlu0 %696
        %698 = vadd.xlane.f32.xlu0 %v692
        %v699 = vpop.xlane.xlu0 %698
        %700 = vadd.xlane.f32.xlu0 %v693
        %v701 = vpop.xlane.xlu0 %700
        %v702 = vld [vmem:[#allocation4] sm:$0x1]
        %v704 = vlaneseq
        %v705 = vshrl.u32 %v704, 7
        %v706 = vsub.s32 0, %v705
        %v707 = vrot.slane %v702, %v706
        %708 = vset.pattern.permute.xlu0 0
        %709 = vperm.xlu0 %708, %v707
        %v710 = vpop.permute.xlu0 %709
        %v712 = vadd.f32 %v695, %v710
        %v713 = vadd.f32 %v697, %v710
        %v714 = vadd.f32 %v699, %v710
        %v715 = vadd.f32 %v701, %v710
        %v720 = vlaneseq
        %v721 = vand.u32 %v720, 127
        %v722 = vlaneseq
        %v723 = vshrl.u32 %v722, 7
        %v724 = vsub.s32 %v721, %v723
        %v725 = vrot.slane %v712, %v724
        %v726 = vadd.s32 %v721, 4294967288
        %v727 = vlaneseq
        %v728 = vshrl.u32 %v727, 7
        %v729 = vsub.s32 %v726, %v728
        %v730 = vrot.slane %v713, %v729
        %vm731 = vcmask 130112
        %v732 = vsel %vm731, %v730, %v725
        %v733 = vlaneseq
        %v734 = vshrl.u32 %v733, 7
        %v735 = vsub.s32 %v721, %v734
        %v736 = vrot.slane %v714, %v735
        %v737 = vlaneseq
        %v738 = vshrl.u32 %v737, 7
        %v739 = vsub.s32 %v726, %v738
        %v740 = vrot.slane %v715, %v739
        %v741 = vsel %vm731, %v740, %v736
        %vm742 = vcmask 1041409
        %v743 = vsel %vm742, %v741, %v732
        %vm745 = vcmask 123904
        %v746 = vsel %vm745, %v743, -inf
        %747 = vmax.xlane.f32.xlu0 %v746
        %v748 = vpop.xlane.xlu0 %747
        %v750 = vlaneseq
        %v751 = vshrl.u32 %v750, 7
        %v752 = vsub.s32 0, %v751
        %v753 = vrot.slane %v748, %v752
        %v754 = vlaneseq
        %v755 = vshrl.u32 %v754, 7
        %v756 = vsub.s32 1, %v755
        %v757 = vrot.slane %v748, %v756
        %v760 = vsub.f32 %v712, %v753
        %v761 = vsub.f32 %v713, %v753
        %v762 = vsub.f32 %v714, %v757
        %v763 = vsub.f32 %v715, %v757
        %v764 = vmul.f32 %v760, 1.442695
        %v765 = vpow.pop %v764
        %v766 = vmul.f32 %v761, 1.442695
        %v767 = vpow.pop %v766
        %v768 = vmul.f32 %v762, 1.442695
        %v769 = vpow.pop %v768
        %v770 = vmul.f32 %v763, 1.442695
        %v771 = vpow.pop %v770
        %776 = vset.pattern.permute.xlu0 0
        %777 = vperm.xlu0 %776, %v765
        %v778 = vpop.permute.xlu0 %777
        %779 = vset.pattern.permute.xlu0 0
        %780 = vperm.xlu0 %779, %v767
        %v781 = vpop.permute.xlu0 %780
        %782 = vset.pattern.permute.xlu0 0
        %783 = vperm.xlu0 %782, %v769
        %v784 = vpop.permute.xlu0 %783
        %785 = vset.pattern.permute.xlu0 0
        %786 = vperm.xlu0 %785, %v771
        %v787 = vpop.permute.xlu0 %786
        %v788 = vlaneseq
        %v789 = vshrl.u32 %v788, 7
        %v790 = vsub.s32 %v721, %v789
        %v791 = vrot.slane %v778, %v790
        %v792 = vlaneseq
        %v793 = vshrl.u32 %v792, 7
        %v794 = vsub.s32 %v726, %v793
        %v795 = vrot.slane %v781, %v794
        %v796 = vsel %vm731, %v795, %v791
        %v797 = vlaneseq
        %v798 = vshrl.u32 %v797, 7
        %v799 = vsub.s32 %v721, %v798
        %v800 = vrot.slane %v784, %v799
        %v801 = vlaneseq
        %v802 = vshrl.u32 %v801, 7
        %v803 = vsub.s32 %v726, %v802
        %v804 = vrot.slane %v787, %v803
        %v805 = vsel %vm731, %v804, %v800
        %v806 = vsel %vm742, %v805, %v796
        %v808 = vsel %vm745, %v806, 0.0
        %809 = vadd.xlane.f32.xlu0 %v808
        %v810 = vpop.xlane.xlu0 %809
        %v812 = vlaneseq
        %v813 = vshrl.u32 %v812, 7
        %v814 = vsub.s32 0, %v813
        %v815 = vrot.slane %v810, %v814
        %v816 = vlaneseq
        %v817 = vshrl.u32 %v816, 7
        %v818 = vsub.s32 1, %v817
        %v819 = vrot.slane %v810, %v818
        %v822 = vrcp.pop %v815
        %v823 = vmul.f32 %v765, %v822
        %v824 = vmul.f32 %v767, %v822
        %v825 = vrcp.pop %v819
        %v826 = vmul.f32 %v769, %v825
        %v827 = vmul.f32 %v771, %v825
        %v828 = vld [vmem:[%s2] sm:$0xff]
        %v829 = vld [vmem:[%s2 + $0x8] sm:$0xff]
        %v830 = vld [vmem:[%s2 + $0x10] sm:$0xff]
        %v831 = vld [vmem:[%s2 + $0x18] sm:$0xff]
        %v832 = vld [vmem:[%s2 + $0x20] sm:$0xff]
        %v833 = vld [vmem:[%s2 + $0x28] sm:$0xff]
        %v834 = vld [vmem:[%s2 + $0x30] sm:$0xff]
        %v835 = vld [vmem:[%s2 + $0x38] sm:$0xff]
        %838 = vset.pattern.permute.xlu0 0
        %839 = vperm.xlu0 %838, %v823
        %v840 = vpop.permute.xlu0 %839
        %841 = vset.pattern.permute.xlu0 0
        %842 = vperm.xlu0 %841, %v824
        %v843 = vpop.permute.xlu0 %842
        %v844 = vlaneseq
        %v845 = vshrl.u32 %v844, 7
        %v846 = vsub.s32 %v721, %v845
        %v847 = vrot.slane %v840, %v846
        %v848 = vlaneseq
        %v849 = vshrl.u32 %v848, 7
        %v850 = vsub.s32 %v726, %v849
        %v851 = vrot.slane %v843, %v850
        %v852 = vsel %vm731, %v851, %v847
        %vm853 = vcmask 130048
        %v854 = vsel %vm853, %v852, 0
        %856 = vmatprep.subr.mxu0 0.0
        %857 = vmatpush1.msra.mxu0 0.0
        %858 = vmatprep.subr.mxu0 0.0
        %859 = vmatpush1.msra.mxu0 0.0
        %860 = vmatprep.subr.mxu0 0.0
        %861 = vmatpush1.msra.mxu0 0.0
        %862 = vmatprep.subr.mxu0 0.0
        %863 = vmatpush1.msra.mxu0 0.0
        %864 = vmatprep.subr.mxu0 0.0
        %865 = vmatpush1.msra.mxu0 0.0
        %866 = vmatprep.subr.mxu0 0.0
        %867 = vmatpush1.msra.mxu0 0.0
        %868 = vmatprep.subr.mxu0 0.0
        %869 = vmatpush1.msra.mxu0 0.0
        %870 = vmatprep.subr.mxu0 0.0
        %871 = vmatpush1.msra.mxu0 0.0
        %872 = vmatprep.subr.mxu0 0.0
        %873 = vmatpush1.msra.mxu0 0.0
        %874 = vmatprep.subr.mxu0 0.0
        %875 = vmatpush1.msra.mxu0 0.0
        %876 = vmatprep.subr.mxu0 0.0
        %877 = vmatpush1.msra.mxu0 0.0
        %878 = vmatprep.subr.mxu0 0.0
        %879 = vmatpush1.msra.mxu0 0.0
        %880 = vmatprep.subr.mxu0 0.0
        %881 = vmatpush1.msra.mxu0 0.0
        %882 = vmatprep.subr.mxu0 0.0
        %883 = vmatpush1.msra.mxu0 0.0
        %884 = vmatprep.subr.mxu0 %v831
        %885 = vmatpush1.msra.mxu0 %v830
        %886 = vmatprep.subr.mxu0 %v829
        %887 = vmatpush1.msra.mxu0 %v828
        %888 = vmatprep.subr.mxu0 0.0
        %889 = vmatpush2.msra.mxu0 0.0
        %890 = vmatprep.subr.mxu0 0.0
        %891 = vmatpush2.msra.mxu0 0.0
        %892 = vmatprep.subr.mxu0 0.0
        %893 = vmatpush2.msra.mxu0 0.0
        %894 = vmatprep.subr.mxu0 0.0
        %895 = vmatpush2.msra.mxu0 0.0
        %896 = vmatprep.subr.mxu0 0.0
        %897 = vmatpush2.msra.mxu0 0.0
        %898 = vmatprep.subr.mxu0 0.0
        %899 = vmatpush2.msra.mxu0 0.0
        %900 = vmatprep.subr.mxu0 0.0
        %901 = vmatpush2.msra.mxu0 0.0
        %902 = vmatprep.subr.mxu0 0.0
        %903 = vmatpush2.msra.mxu0 0.0
        %904 = vmatprep.subr.mxu0 0.0
        %905 = vmatpush2.msra.mxu0 0.0
        %906 = vmatprep.subr.mxu0 0.0
        %907 = vmatpush2.msra.mxu0 0.0
        %908 = vmatprep.subr.mxu0 0.0
        %909 = vmatpush2.msra.mxu0 0.0
        %910 = vmatprep.subr.mxu0 0.0
        %911 = vmatpush2.msra.mxu0 0.0
        %912 = vmatprep.subr.mxu0 0.0
        %913 = vmatpush2.msra.mxu0 0.0
        %914 = vmatprep.subr.mxu0 0.0
        %915 = vmatpush2.msra.mxu0 0.0
        %916 = vmatprep.subr.mxu0 0.0
        %917 = vmatpush2.msra.mxu0 0.0
        %918 = vmatprep.subr.mxu0 0.0
        %919 = vmatpush2.msra.mxu0 0.0
        %920 = vmatprep.mubr.f32.mxu0 0.0
        %921 = vmatmul.mubr.f32.gmra.mxu0 %v854
        %v922 = vpop.f32.mrf.mxu0
        %v923 = vadd.f32 0.0, %v922
        %v924 = vpop.f32.mrf.mxu0
        %v925 = vadd.f32 0.0, %v924
        %926 = vdwg.mxu0
        %929 = vset.pattern.permute.xlu0 0
        %930 = vperm.xlu0 %929, %v826
        %v931 = vpop.permute.xlu0 %930
        %932 = vset.pattern.permute.xlu0 0
        %933 = vperm.xlu0 %932, %v827
        %v934 = vpop.permute.xlu0 %933
        %v935 = vlaneseq
        %v936 = vshrl.u32 %v935, 7
        %v937 = vsub.s32 %v721, %v936
        %v938 = vrot.slane %v931, %v937
        %v939 = vlaneseq
        %v940 = vshrl.u32 %v939, 7
        %v941 = vsub.s32 %v726, %v940
        %v942 = vrot.slane %v934, %v941
        %v943 = vsel %vm731, %v942, %v938
        %v944 = vsel %vm853, %v943, 0
        %946 = vmatprep.subr.mxu0 0.0
        %947 = vmatpush1.msra.mxu0 0.0
        %948 = vmatprep.subr.mxu0 0.0
        %949 = vmatpush1.msra.mxu0 0.0
        %950 = vmatprep.subr.mxu0 0.0
        %951 = vmatpush1.msra.mxu0 0.0
        %952 = vmatprep.subr.mxu0 0.0
        %953 = vmatpush1.msra.mxu0 0.0
        %954 = vmatprep.subr.mxu0 0.0
        %955 = vmatpush1.msra.mxu0 0.0
        %956 = vmatprep.subr.mxu0 0.0
        %957 = vmatpush1.msra.mxu0 0.0
        %958 = vmatprep.subr.mxu0 0.0
        %959 = vmatpush1.msra.mxu0 0.0
        %960 = vmatprep.subr.mxu0 0.0
        %961 = vmatpush1.msra.mxu0 0.0
        %962 = vmatprep.subr.mxu0 0.0
        %963 = vmatpush1.msra.mxu0 0.0
        %964 = vmatprep.subr.mxu0 0.0
        %965 = vmatpush1.msra.mxu0 0.0
        %966 = vmatprep.subr.mxu0 0.0
        %967 = vmatpush1.msra.mxu0 0.0
        %968 = vmatprep.subr.mxu0 0.0
        %969 = vmatpush1.msra.mxu0 0.0
        %970 = vmatprep.subr.mxu0 0.0
        %971 = vmatpush1.msra.mxu0 0.0
        %972 = vmatprep.subr.mxu0 0.0
        %973 = vmatpush1.msra.mxu0 0.0
        %974 = vmatprep.subr.mxu0 %v835
        %975 = vmatpush1.msra.mxu0 %v834
        %976 = vmatprep.subr.mxu0 %v833
        %977 = vmatpush1.msra.mxu0 %v832
        %978 = vmatprep.subr.mxu0 0.0
        %979 = vmatpush2.msra.mxu0 0.0
        %980 = vmatprep.subr.mxu0 0.0
        %981 = vmatpush2.msra.mxu0 0.0
        %982 = vmatprep.subr.mxu0 0.0
        %983 = vmatpush2.msra.mxu0 0.0
        %984 = vmatprep.subr.mxu0 0.0
        %985 = vmatpush2.msra.mxu0 0.0
        %986 = vmatprep.subr.mxu0 0.0
        %987 = vmatpush2.msra.mxu0 0.0
        %988 = vmatprep.subr.mxu0 0.0
        %989 = vmatpush2.msra.mxu0 0.0
        %990 = vmatprep.subr.mxu0 0.0
        %991 = vmatpush2.msra.mxu0 0.0
        %992 = vmatprep.subr.mxu0 0.0
        %993 = vmatpush2.msra.mxu0 0.0
        %994 = vmatprep.subr.mxu0 0.0
        %995 = vmatpush2.msra.mxu0 0.0
        %996 = vmatprep.subr.mxu0 0.0
        %997 = vmatpush2.msra.mxu0 0.0
        %998 = vmatprep.subr.mxu0 0.0
        %999 = vmatpush2.msra.mxu0 0.0
        %1000 = vmatprep.subr.mxu0 0.0
        %1001 = vmatpush2.msra.mxu0 0.0
        %1002 = vmatprep.subr.mxu0 0.0
        %1003 = vmatpush2.msra.mxu0 0.0
        %1004 = vmatprep.subr.mxu0 0.0
        %1005 = vmatpush2.msra.mxu0 0.0
        %1006 = vmatprep.subr.mxu0 0.0
        %1007 = vmatpush2.msra.mxu0 0.0
        %1008 = vmatprep.subr.mxu0 0.0
        %1009 = vmatpush2.msra.mxu0 0.0
        %1010 = vmatprep.mubr.f32.mxu0 0.0
        %1011 = vmatmul.mubr.f32.gmra.mxu0 %v944
        %v1012 = vpop.f32.mrf.mxu0
        %v1013 = vadd.f32 0.0, %v1012
        %v1014 = vpop.f32.mrf.mxu0
        %v1015 = vadd.f32 0.0, %v1014
        %1016 = vdwg.mxu0
        %v1017 = vld [vmem:[%s10] sm:$0xff]
        %v1018 = vld [vmem:[%s10 + $0x8] sm:$0xff]
        %v1019 = vld [vmem:[%s10 + $0x10] sm:$0xff]
        %v1020 = vld [vmem:[%s10 + $0x18] sm:$0xff]
        %v1021 = vld [vmem:[%s10 + $0x20] sm:$0xff]
        %v1022 = vld [vmem:[%s10 + $0x28] sm:$0xff]
        %v1023 = vld [vmem:[%s10 + $0x30] sm:$0xff]
        %v1024 = vld [vmem:[%s10 + $0x38] sm:$0xff]
        %v1025 = vld [vmem:[%s10 + $0x40] sm:$0xff]
        %v1026 = vld [vmem:[%s10 + $0x48] sm:$0xff]
        %v1027 = vld [vmem:[%s10 + $0x50] sm:$0xff]
        %v1028 = vld [vmem:[%s10 + $0x58] sm:$0xff]
        %v1029 = vld [vmem:[%s10 + $0x60] sm:$0xff]
        %v1030 = vld [vmem:[%s10 + $0x68] sm:$0xff]
        %v1031 = vld [vmem:[%s10 + $0x70] sm:$0xff]
        %v1032 = vld [vmem:[%s10 + $0x78] sm:$0xff]
        %v1033 = vld [vmem:[%s10 + $0x80] sm:$0xff]
        %v1034 = vld [vmem:[%s10 + $0x88] sm:$0xff]
        %v1035 = vld [vmem:[%s10 + $0x90] sm:$0xff]
        %v1036 = vld [vmem:[%s10 + $0x98] sm:$0xff]
        %v1037 = vld [vmem:[%s10 + $0xa0] sm:$0xff]
        %v1038 = vld [vmem:[%s10 + $0xa8] sm:$0xff]
        %v1039 = vld [vmem:[%s10 + $0xb0] sm:$0xff]
        %v1040 = vld [vmem:[%s10 + $0xb8] sm:$0xff]
        %v1041 = vld [vmem:[%s10 + $0xc0] sm:$0xff]
        %v1042 = vld [vmem:[%s10 + $0xc8] sm:$0xff]
        %v1043 = vld [vmem:[%s10 + $0xd0] sm:$0xff]
        %v1044 = vld [vmem:[%s10 + $0xd8] sm:$0xff]
        %v1045 = vld [vmem:[%s10 + $0xe0] sm:$0xff]
        %v1046 = vld [vmem:[%s10 + $0xe8] sm:$0xff]
        %v1047 = vld [vmem:[%s10 + $0xf0] sm:$0xff]
        %v1048 = vld [vmem:[%s10 + $0xf8] sm:$0xff]
        %v1049 = vld [vmem:[%s10 + $0x100] sm:$0xff]
        %v1050 = vld [vmem:[%s10 + $0x108] sm:$0xff]
        %v1051 = vld [vmem:[%s10 + $0x110] sm:$0xff]
        %v1052 = vld [vmem:[%s10 + $0x118] sm:$0xff]
        %v1053 = vld [vmem:[%s10 + $0x120] sm:$0xff]
        %v1054 = vld [vmem:[%s10 + $0x128] sm:$0xff]
        %v1055 = vld [vmem:[%s10 + $0x130] sm:$0xff]
        %v1056 = vld [vmem:[%s10 + $0x138] sm:$0xff]
        %v1057 = vld [vmem:[%s10 + $0x140] sm:$0xff]
        %v1058 = vld [vmem:[%s10 + $0x148] sm:$0xff]
        %v1059 = vld [vmem:[%s10 + $0x150] sm:$0xff]
        %v1060 = vld [vmem:[%s10 + $0x158] sm:$0xff]
        %v1061 = vld [vmem:[%s10 + $0x160] sm:$0xff]
        %v1062 = vld [vmem:[%s10 + $0x168] sm:$0xff]
        %v1063 = vld [vmem:[%s10 + $0x170] sm:$0xff]
        %v1064 = vld [vmem:[%s10 + $0x178] sm:$0xff]
        %v1065 = vld [vmem:[%s10 + $0x180] sm:$0xff]
        %v1066 = vld [vmem:[%s10 + $0x188] sm:$0xff]
        %v1067 = vld [vmem:[%s10 + $0x190] sm:$0xff]
        %v1068 = vld [vmem:[%s10 + $0x198] sm:$0xff]
        %v1069 = vld [vmem:[%s10 + $0x1a0] sm:$0xff]
        %v1070 = vld [vmem:[%s10 + $0x1a8] sm:$0xff]
        %v1071 = vld [vmem:[%s10 + $0x1b0] sm:$0xff]
        %v1072 = vld [vmem:[%s10 + $0x1b8] sm:$0xff]
        %v1073 = vld [vmem:[%s10 + $0x1c0] sm:$0xff]
        %v1074 = vld [vmem:[%s10 + $0x1c8] sm:$0xff]
        %v1075 = vld [vmem:[%s10 + $0x1d0] sm:$0xff]
        %v1076 = vld [vmem:[%s10 + $0x1d8] sm:$0xff]
        %v1077 = vld [vmem:[%s10 + $0x1e0] sm:$0xff]
        %v1078 = vld [vmem:[%s10 + $0x1e8] sm:$0xff]
        %v1079 = vld [vmem:[%s10 + $0x1f0] sm:$0xff]
        %v1080 = vld [vmem:[%s10 + $0x1f8] sm:$0xff]
        %v1081 = vld [vmem:[%s11] sm:$0x3]
        %v1083 = vlaneseq
        %v1084 = vshrl.u32 %v1083, 7
        %v1085 = vsub.s32 0, %v1084
        %v1086 = vrot.slane %v1081, %v1085
        %v1087 = vlaneseq
        %v1088 = vshrl.u32 %v1087, 7
        %v1089 = vsub.s32 1, %v1088
        %v1090 = vrot.slane %v1081, %v1089
        %1093 = vmatprep.subr.mxu0 %v1048
        %1094 = vmatpush1.msra.mxu0 %v1047
        %1095 = vmatprep.subr.mxu0 %v1046
        %1096 = vmatpush1.msra.mxu0 %v1045
        %1097 = vmatprep.subr.mxu0 %v1044
        %1098 = vmatpush1.msra.mxu0 %v1043
        %1099 = vmatprep.subr.mxu0 %v1042
        %1100 = vmatpush1.msra.mxu0 %v1041
        %1101 = vmatprep.subr.mxu0 %v1040
        %1102 = vmatpush1.msra.mxu0 %v1039
        %1103 = vmatprep.subr.mxu0 %v1038
        %1104 = vmatpush1.msra.mxu0 %v1037
        %1105 = vmatprep.subr.mxu0 %v1036
        %1106 = vmatpush1.msra.mxu0 %v1035
        %1107 = vmatprep.subr.mxu0 %v1034
        %1108 = vmatpush1.msra.mxu0 %v1033
        %1109 = vmatprep.subr.mxu0 %v1032
        %1110 = vmatpush1.msra.mxu0 %v1031
        %1111 = vmatprep.subr.mxu0 %v1030
        %1112 = vmatpush1.msra.mxu0 %v1029
        %1113 = vmatprep.subr.mxu0 %v1028
        %1114 = vmatpush1.msra.mxu0 %v1027
        %1115 = vmatprep.subr.mxu0 %v1026
        %1116 = vmatpush1.msra.mxu0 %v1025
        %1117 = vmatprep.subr.mxu0 %v1024
        %1118 = vmatpush1.msra.mxu0 %v1023
        %1119 = vmatprep.subr.mxu0 %v1022
        %1120 = vmatpush1.msra.mxu0 %v1021
        %1121 = vmatprep.subr.mxu0 %v1020
        %1122 = vmatpush1.msra.mxu0 %v1019
        %1123 = vmatprep.subr.mxu0 %v1018
        %1124 = vmatpush1.msra.mxu0 %v1017
        %1125 = vmatprep.subr.mxu0 %v1080
        %1126 = vmatpush2.msra.mxu0 %v1079
        %1127 = vmatprep.subr.mxu0 %v1078
        %1128 = vmatpush2.msra.mxu0 %v1077
        %1129 = vmatprep.subr.mxu0 %v1076
        %1130 = vmatpush2.msra.mxu0 %v1075
        %1131 = vmatprep.subr.mxu0 %v1074
        %1132 = vmatpush2.msra.mxu0 %v1073
        %1133 = vmatprep.subr.mxu0 %v1072
        %1134 = vmatpush2.msra.mxu0 %v1071
        %1135 = vmatprep.subr.mxu0 %v1070
        %1136 = vmatpush2.msra.mxu0 %v1069
        %1137 = vmatprep.subr.mxu0 %v1068
        %1138 = vmatpush2.msra.mxu0 %v1067
        %1139 = vmatprep.subr.mxu0 %v1066
        %1140 = vmatpush2.msra.mxu0 %v1065
        %1141 = vmatprep.subr.mxu0 %v1064
        %1142 = vmatpush2.msra.mxu0 %v1063
        %1143 = vmatprep.subr.mxu0 %v1062
        %1144 = vmatpush2.msra.mxu0 %v1061
        %1145 = vmatprep.subr.mxu0 %v1060
        %1146 = vmatpush2.msra.mxu0 %v1059
        %1147 = vmatprep.subr.mxu0 %v1058
        %1148 = vmatpush2.msra.mxu0 %v1057
        %1149 = vmatprep.subr.mxu0 %v1056
        %1150 = vmatpush2.msra.mxu0 %v1055
        %1151 = vmatprep.subr.mxu0 %v1054
        %1152 = vmatpush2.msra.mxu0 %v1053
        %1153 = vmatprep.subr.mxu0 %v1052
        %1154 = vmatpush2.msra.mxu0 %v1051
        %1155 = vmatprep.subr.mxu0 %v1050
        %1156 = vmatpush2.msra.mxu0 %v1049
        %1157 = vmatprep.mubr.f32.mxu0 %v565
        %1158 = vmatmul.mubr.f32.gmra.mxu0 %v564
        %v1159 = vpop.f32.mrf.mxu0
        %v1160 = vadd.f32 %v1086, %v1159
        %v1161 = vpop.f32.mrf.mxu0
        %v1162 = vadd.f32 %v1090, %v1161
        %1163 = vdwg.mxu0
        %v1164 = vsub.f32 0.0, %v1160
        %v1165 = vsub.f32 0.0, %v1162
        %v1166 = vmul.f32 %v1164, 1.442695
        %v1167 = vpow.pop %v1166
        %v1168 = vmul.f32 %v1165, 1.442695
        %v1169 = vpow.pop %v1168
        %v1170 = vadd.f32 %v1167, 1.0
        %v1171 = vadd.f32 %v1169, 1.0
        %v1172 = vrcp.pop %v1170
        %v1173 = vmul.f32 1.0, %v1172
        %v1174 = vrcp.pop %v1171
        %v1175 = vmul.f32 1.0, %v1174
        %v1180 = vrot.slane %v1013, 7
        %v1181 = vsel %vm742, %v1180, %v923
        %v1182 = vrot.slane %v1015, 7
        %v1183 = vsel %vm742, %v1182, %v925
        %v1186 = vmul.f32 %v1173, %v1181
        %v1187 = vmul.f32 %v1175, %v1183
        %v1188 = vld [vmem:[%s502] sm:$0xff]
        %v1189 = vld [vmem:[%s502 + $0x8] sm:$0xff]
        %v1190 = vld [vmem:[%s12] sm:$0xff]
        %v1191 = vld [vmem:[%s12 + $0x8] sm:$0xff]
        %v1192 = vld [vmem:[%s12 + $0x10] sm:$0xff]
        %v1193 = vld [vmem:[%s12 + $0x18] sm:$0xff]
        %v1194 = vld [vmem:[%s12 + $0x20] sm:$0xff]
        %v1195 = vld [vmem:[%s12 + $0x28] sm:$0xff]
        %v1196 = vld [vmem:[%s12 + $0x30] sm:$0xff]
        %v1197 = vld [vmem:[%s12 + $0x38] sm:$0xff]
        %v1198 = vld [vmem:[%s12 + $0x40] sm:$0xff]
        %v1199 = vld [vmem:[%s12 + $0x48] sm:$0xff]
        %v1200 = vld [vmem:[%s12 + $0x50] sm:$0xff]
        %v1201 = vld [vmem:[%s12 + $0x58] sm:$0xff]
        %v1202 = vld [vmem:[%s12 + $0x60] sm:$0xff]
        %v1203 = vld [vmem:[%s12 + $0x68] sm:$0xff]
        %v1204 = vld [vmem:[%s12 + $0x70] sm:$0xff]
        %v1205 = vld [vmem:[%s12 + $0x78] sm:$0xff]
        %v1206 = vld [vmem:[%s12 + $0x80] sm:$0xff]
        %v1207 = vld [vmem:[%s12 + $0x88] sm:$0xff]
        %v1208 = vld [vmem:[%s12 + $0x90] sm:$0xff]
        %v1209 = vld [vmem:[%s12 + $0x98] sm:$0xff]
        %v1210 = vld [vmem:[%s12 + $0xa0] sm:$0xff]
        %v1211 = vld [vmem:[%s12 + $0xa8] sm:$0xff]
        %v1212 = vld [vmem:[%s12 + $0xb0] sm:$0xff]
        %v1213 = vld [vmem:[%s12 + $0xb8] sm:$0xff]
        %v1214 = vld [vmem:[%s12 + $0xc0] sm:$0xff]
        %v1215 = vld [vmem:[%s12 + $0xc8] sm:$0xff]
        %v1216 = vld [vmem:[%s12 + $0xd0] sm:$0xff]
        %v1217 = vld [vmem:[%s12 + $0xd8] sm:$0xff]
        %v1218 = vld [vmem:[%s12 + $0xe0] sm:$0xff]
        %v1219 = vld [vmem:[%s12 + $0xe8] sm:$0xff]
        %v1220 = vld [vmem:[%s12 + $0xf0] sm:$0xff]
        %v1221 = vld [vmem:[%s12 + $0xf8] sm:$0xff]
        %v1222 = vld [vmem:[%s12 + $0x100] sm:$0xff]
        %v1223 = vld [vmem:[%s12 + $0x108] sm:$0xff]
        %v1224 = vld [vmem:[%s12 + $0x110] sm:$0xff]
        %v1225 = vld [vmem:[%s12 + $0x118] sm:$0xff]
        %v1226 = vld [vmem:[%s12 + $0x120] sm:$0xff]
        %v1227 = vld [vmem:[%s12 + $0x128] sm:$0xff]
        %v1228 = vld [vmem:[%s12 + $0x130] sm:$0xff]
        %v1229 = vld [vmem:[%s12 + $0x138] sm:$0xff]
        %v1230 = vld [vmem:[%s12 + $0x140] sm:$0xff]
        %v1231 = vld [vmem:[%s12 + $0x148] sm:$0xff]
        %v1232 = vld [vmem:[%s12 + $0x150] sm:$0xff]
        %v1233 = vld [vmem:[%s12 + $0x158] sm:$0xff]
        %v1234 = vld [vmem:[%s12 + $0x160] sm:$0xff]
        %v1235 = vld [vmem:[%s12 + $0x168] sm:$0xff]
        %v1236 = vld [vmem:[%s12 + $0x170] sm:$0xff]
        %v1237 = vld [vmem:[%s12 + $0x178] sm:$0xff]
        %v1238 = vld [vmem:[%s12 + $0x180] sm:$0xff]
        %v1239 = vld [vmem:[%s12 + $0x188] sm:$0xff]
        %v1240 = vld [vmem:[%s12 + $0x190] sm:$0xff]
        %v1241 = vld [vmem:[%s12 + $0x198] sm:$0xff]
        %v1242 = vld [vmem:[%s12 + $0x1a0] sm:$0xff]
        %v1243 = vld [vmem:[%s12 + $0x1a8] sm:$0xff]
        %v1244 = vld [vmem:[%s12 + $0x1b0] sm:$0xff]
        %v1245 = vld [vmem:[%s12 + $0x1b8] sm:$0xff]
        %v1246 = vld [vmem:[%s12 + $0x1c0] sm:$0xff]
        %v1247 = vld [vmem:[%s12 + $0x1c8] sm:$0xff]
        %v1248 = vld [vmem:[%s12 + $0x1d0] sm:$0xff]
        %v1249 = vld [vmem:[%s12 + $0x1d8] sm:$0xff]
        %v1250 = vld [vmem:[%s12 + $0x1e0] sm:$0xff]
        %v1251 = vld [vmem:[%s12 + $0x1e8] sm:$0xff]
        %v1252 = vld [vmem:[%s12 + $0x1f0] sm:$0xff]
        %v1253 = vld [vmem:[%s12 + $0x1f8] sm:$0xff]
        %v1254 = vld [vmem:[%s12 + $0x200] sm:$0xff]
        %v1255 = vld [vmem:[%s12 + $0x208] sm:$0xff]
        %v1256 = vld [vmem:[%s12 + $0x210] sm:$0xff]
        %v1257 = vld [vmem:[%s12 + $0x218] sm:$0xff]
        %v1258 = vld [vmem:[%s12 + $0x220] sm:$0xff]
        %v1259 = vld [vmem:[%s12 + $0x228] sm:$0xff]
        %v1260 = vld [vmem:[%s12 + $0x230] sm:$0xff]
        %v1261 = vld [vmem:[%s12 + $0x238] sm:$0xff]
        %v1262 = vld [vmem:[%s12 + $0x240] sm:$0xff]
        %v1263 = vld [vmem:[%s12 + $0x248] sm:$0xff]
        %v1264 = vld [vmem:[%s12 + $0x250] sm:$0xff]
        %v1265 = vld [vmem:[%s12 + $0x258] sm:$0xff]
        %v1266 = vld [vmem:[%s12 + $0x260] sm:$0xff]
        %v1267 = vld [vmem:[%s12 + $0x268] sm:$0xff]
        %v1268 = vld [vmem:[%s12 + $0x270] sm:$0xff]
        %v1269 = vld [vmem:[%s12 + $0x278] sm:$0xff]
        %v1270 = vld [vmem:[%s12 + $0x280] sm:$0xff]
        %v1271 = vld [vmem:[%s12 + $0x288] sm:$0xff]
        %v1272 = vld [vmem:[%s12 + $0x290] sm:$0xff]
        %v1273 = vld [vmem:[%s12 + $0x298] sm:$0xff]
        %v1274 = vld [vmem:[%s12 + $0x2a0] sm:$0xff]
        %v1275 = vld [vmem:[%s12 + $0x2a8] sm:$0xff]
        %v1276 = vld [vmem:[%s12 + $0x2b0] sm:$0xff]
        %v1277 = vld [vmem:[%s12 + $0x2b8] sm:$0xff]
        %v1278 = vld [vmem:[%s12 + $0x2c0] sm:$0xff]
        %v1279 = vld [vmem:[%s12 + $0x2c8] sm:$0xff]
        %v1280 = vld [vmem:[%s12 + $0x2d0] sm:$0xff]
        %v1281 = vld [vmem:[%s12 + $0x2d8] sm:$0xff]
        %v1282 = vld [vmem:[%s12 + $0x2e0] sm:$0xff]
        %v1283 = vld [vmem:[%s12 + $0x2e8] sm:$0xff]
        %v1284 = vld [vmem:[%s12 + $0x2f0] sm:$0xff]
        %v1285 = vld [vmem:[%s12 + $0x2f8] sm:$0xff]
        %v1286 = vld [vmem:[%s12 + $0x300] sm:$0xff]
        %v1287 = vld [vmem:[%s12 + $0x308] sm:$0xff]
        %v1288 = vld [vmem:[%s12 + $0x310] sm:$0xff]
        %v1289 = vld [vmem:[%s12 + $0x318] sm:$0xff]
        %v1290 = vld [vmem:[%s12 + $0x320] sm:$0xff]
        %v1291 = vld [vmem:[%s12 + $0x328] sm:$0xff]
        %v1292 = vld [vmem:[%s12 + $0x330] sm:$0xff]
        %v1293 = vld [vmem:[%s12 + $0x338] sm:$0xff]
        %v1294 = vld [vmem:[%s12 + $0x340] sm:$0xff]
        %v1295 = vld [vmem:[%s12 + $0x348] sm:$0xff]
        %v1296 = vld [vmem:[%s12 + $0x350] sm:$0xff]
        %v1297 = vld [vmem:[%s12 + $0x358] sm:$0xff]
        %v1298 = vld [vmem:[%s12 + $0x360] sm:$0xff]
        %v1299 = vld [vmem:[%s12 + $0x368] sm:$0xff]
        %v1300 = vld [vmem:[%s12 + $0x370] sm:$0xff]
        %v1301 = vld [vmem:[%s12 + $0x378] sm:$0xff]
        %v1302 = vld [vmem:[%s12 + $0x380] sm:$0xff]
        %v1303 = vld [vmem:[%s12 + $0x388] sm:$0xff]
        %v1304 = vld [vmem:[%s12 + $0x390] sm:$0xff]
        %v1305 = vld [vmem:[%s12 + $0x398] sm:$0xff]
        %v1306 = vld [vmem:[%s12 + $0x3a0] sm:$0xff]
        %v1307 = vld [vmem:[%s12 + $0x3a8] sm:$0xff]
        %v1308 = vld [vmem:[%s12 + $0x3b0] sm:$0xff]
        %v1309 = vld [vmem:[%s12 + $0x3b8] sm:$0xff]
        %v1310 = vld [vmem:[%s12 + $0x3c0] sm:$0xff]
        %v1311 = vld [vmem:[%s12 + $0x3c8] sm:$0xff]
        %v1312 = vld [vmem:[%s12 + $0x3d0] sm:$0xff]
        %v1313 = vld [vmem:[%s12 + $0x3d8] sm:$0xff]
        %v1314 = vld [vmem:[%s12 + $0x3e0] sm:$0xff]
        %v1315 = vld [vmem:[%s12 + $0x3e8] sm:$0xff]
        %v1316 = vld [vmem:[%s12 + $0x3f0] sm:$0xff]
        %v1317 = vld [vmem:[%s12 + $0x3f8] sm:$0xff]
        %v1318 = vld [vmem:[%s12 + $0x400] sm:$0xff]
        %v1319 = vld [vmem:[%s12 + $0x408] sm:$0xff]
        %v1320 = vld [vmem:[%s12 + $0x410] sm:$0xff]
        %v1321 = vld [vmem:[%s12 + $0x418] sm:$0xff]
        %v1322 = vld [vmem:[%s12 + $0x420] sm:$0xff]
        %v1323 = vld [vmem:[%s12 + $0x428] sm:$0xff]
        %v1324 = vld [vmem:[%s12 + $0x430] sm:$0xff]
        %v1325 = vld [vmem:[%s12 + $0x438] sm:$0xff]
        %v1326 = vld [vmem:[%s12 + $0x440] sm:$0xff]
        %v1327 = vld [vmem:[%s12 + $0x448] sm:$0xff]
        %v1328 = vld [vmem:[%s12 + $0x450] sm:$0xff]
        %v1329 = vld [vmem:[%s12 + $0x458] sm:$0xff]
        %v1330 = vld [vmem:[%s12 + $0x460] sm:$0xff]
        %v1331 = vld [vmem:[%s12 + $0x468] sm:$0xff]
        %v1332 = vld [vmem:[%s12 + $0x470] sm:$0xff]
        %v1333 = vld [vmem:[%s12 + $0x478] sm:$0xff]
        %v1334 = vld [vmem:[%s12 + $0x480] sm:$0xff]
        %v1335 = vld [vmem:[%s12 + $0x488] sm:$0xff]
        %v1336 = vld [vmem:[%s12 + $0x490] sm:$0xff]
        %v1337 = vld [vmem:[%s12 + $0x498] sm:$0xff]
        %v1338 = vld [vmem:[%s12 + $0x4a0] sm:$0xff]
        %v1339 = vld [vmem:[%s12 + $0x4a8] sm:$0xff]
        %v1340 = vld [vmem:[%s12 + $0x4b0] sm:$0xff]
        %v1341 = vld [vmem:[%s12 + $0x4b8] sm:$0xff]
        %v1342 = vld [vmem:[%s12 + $0x4c0] sm:$0xff]
        %v1343 = vld [vmem:[%s12 + $0x4c8] sm:$0xff]
        %v1344 = vld [vmem:[%s12 + $0x4d0] sm:$0xff]
        %v1345 = vld [vmem:[%s12 + $0x4d8] sm:$0xff]
        %v1346 = vld [vmem:[%s12 + $0x4e0] sm:$0xff]
        %v1347 = vld [vmem:[%s12 + $0x4e8] sm:$0xff]
        %v1348 = vld [vmem:[%s12 + $0x4f0] sm:$0xff]
        %v1349 = vld [vmem:[%s12 + $0x4f8] sm:$0xff]
        %v1350 = vld [vmem:[%s12 + $0x500] sm:$0xff]
        %v1351 = vld [vmem:[%s12 + $0x508] sm:$0xff]
        %v1352 = vld [vmem:[%s12 + $0x510] sm:$0xff]
        %v1353 = vld [vmem:[%s12 + $0x518] sm:$0xff]
        %v1354 = vld [vmem:[%s12 + $0x520] sm:$0xff]
        %v1355 = vld [vmem:[%s12 + $0x528] sm:$0xff]
        %v1356 = vld [vmem:[%s12 + $0x530] sm:$0xff]
        %v1357 = vld [vmem:[%s12 + $0x538] sm:$0xff]
        %v1358 = vld [vmem:[%s12 + $0x540] sm:$0xff]
        %v1359 = vld [vmem:[%s12 + $0x548] sm:$0xff]
        %v1360 = vld [vmem:[%s12 + $0x550] sm:$0xff]
        %v1361 = vld [vmem:[%s12 + $0x558] sm:$0xff]
        %v1362 = vld [vmem:[%s12 + $0x560] sm:$0xff]
        %v1363 = vld [vmem:[%s12 + $0x568] sm:$0xff]
        %v1364 = vld [vmem:[%s12 + $0x570] sm:$0xff]
        %v1365 = vld [vmem:[%s12 + $0x578] sm:$0xff]
        %v1366 = vld [vmem:[%s12 + $0x580] sm:$0xff]
        %v1367 = vld [vmem:[%s12 + $0x588] sm:$0xff]
        %v1368 = vld [vmem:[%s12 + $0x590] sm:$0xff]
        %v1369 = vld [vmem:[%s12 + $0x598] sm:$0xff]
        %v1370 = vld [vmem:[%s12 + $0x5a0] sm:$0xff]
        %v1371 = vld [vmem:[%s12 + $0x5a8] sm:$0xff]
        %v1372 = vld [vmem:[%s12 + $0x5b0] sm:$0xff]
        %v1373 = vld [vmem:[%s12 + $0x5b8] sm:$0xff]
        %v1374 = vld [vmem:[%s12 + $0x5c0] sm:$0xff]
        %v1375 = vld [vmem:[%s12 + $0x5c8] sm:$0xff]
        %v1376 = vld [vmem:[%s12 + $0x5d0] sm:$0xff]
        %v1377 = vld [vmem:[%s12 + $0x5d8] sm:$0xff]
        %v1378 = vld [vmem:[%s12 + $0x5e0] sm:$0xff]
        %v1379 = vld [vmem:[%s12 + $0x5e8] sm:$0xff]
        %v1380 = vld [vmem:[%s12 + $0x5f0] sm:$0xff]
        %v1381 = vld [vmem:[%s12 + $0x5f8] sm:$0xff]
        %v1382 = vld [vmem:[%s12 + $0x600] sm:$0xff]
        %v1383 = vld [vmem:[%s12 + $0x608] sm:$0xff]
        %v1384 = vld [vmem:[%s12 + $0x610] sm:$0xff]
        %v1385 = vld [vmem:[%s12 + $0x618] sm:$0xff]
        %v1386 = vld [vmem:[%s12 + $0x620] sm:$0xff]
        %v1387 = vld [vmem:[%s12 + $0x628] sm:$0xff]
        %v1388 = vld [vmem:[%s12 + $0x630] sm:$0xff]
        %v1389 = vld [vmem:[%s12 + $0x638] sm:$0xff]
        %v1390 = vld [vmem:[%s12 + $0x640] sm:$0xff]
        %v1391 = vld [vmem:[%s12 + $0x648] sm:$0xff]
        %v1392 = vld [vmem:[%s12 + $0x650] sm:$0xff]
        %v1393 = vld [vmem:[%s12 + $0x658] sm:$0xff]
        %v1394 = vld [vmem:[%s12 + $0x660] sm:$0xff]
        %v1395 = vld [vmem:[%s12 + $0x668] sm:$0xff]
        %v1396 = vld [vmem:[%s12 + $0x670] sm:$0xff]
        %v1397 = vld [vmem:[%s12 + $0x678] sm:$0xff]
        %v1398 = vld [vmem:[%s12 + $0x680] sm:$0xff]
        %v1399 = vld [vmem:[%s12 + $0x688] sm:$0xff]
        %v1400 = vld [vmem:[%s12 + $0x690] sm:$0xff]
        %v1401 = vld [vmem:[%s12 + $0x698] sm:$0xff]
        %v1402 = vld [vmem:[%s12 + $0x6a0] sm:$0xff]
        %v1403 = vld [vmem:[%s12 + $0x6a8] sm:$0xff]
        %v1404 = vld [vmem:[%s12 + $0x6b0] sm:$0xff]
        %v1405 = vld [vmem:[%s12 + $0x6b8] sm:$0xff]
        %v1406 = vld [vmem:[%s12 + $0x6c0] sm:$0xff]
        %v1407 = vld [vmem:[%s12 + $0x6c8] sm:$0xff]
        %v1408 = vld [vmem:[%s12 + $0x6d0] sm:$0xff]
        %v1409 = vld [vmem:[%s12 + $0x6d8] sm:$0xff]
        %v1410 = vld [vmem:[%s12 + $0x6e0] sm:$0xff]
        %v1411 = vld [vmem:[%s12 + $0x6e8] sm:$0xff]
        %v1412 = vld [vmem:[%s12 + $0x6f0] sm:$0xff]
        %v1413 = vld [vmem:[%s12 + $0x6f8] sm:$0xff]
        %v1414 = vld [vmem:[%s12 + $0x700] sm:$0xff]
        %v1415 = vld [vmem:[%s12 + $0x708] sm:$0xff]
        %v1416 = vld [vmem:[%s12 + $0x710] sm:$0xff]
        %v1417 = vld [vmem:[%s12 + $0x718] sm:$0xff]
        %v1418 = vld [vmem:[%s12 + $0x720] sm:$0xff]
        %v1419 = vld [vmem:[%s12 + $0x728] sm:$0xff]
        %v1420 = vld [vmem:[%s12 + $0x730] sm:$0xff]
        %v1421 = vld [vmem:[%s12 + $0x738] sm:$0xff]
        %v1422 = vld [vmem:[%s12 + $0x740] sm:$0xff]
        %v1423 = vld [vmem:[%s12 + $0x748] sm:$0xff]
        %v1424 = vld [vmem:[%s12 + $0x750] sm:$0xff]
        %v1425 = vld [vmem:[%s12 + $0x758] sm:$0xff]
        %v1426 = vld [vmem:[%s12 + $0x760] sm:$0xff]
        %v1427 = vld [vmem:[%s12 + $0x768] sm:$0xff]
        %v1428 = vld [vmem:[%s12 + $0x770] sm:$0xff]
        %v1429 = vld [vmem:[%s12 + $0x778] sm:$0xff]
        %v1430 = vld [vmem:[%s12 + $0x780] sm:$0xff]
        %v1431 = vld [vmem:[%s12 + $0x788] sm:$0xff]
        %v1432 = vld [vmem:[%s12 + $0x790] sm:$0xff]
        %v1433 = vld [vmem:[%s12 + $0x798] sm:$0xff]
        %v1434 = vld [vmem:[%s12 + $0x7a0] sm:$0xff]
        %v1435 = vld [vmem:[%s12 + $0x7a8] sm:$0xff]
        %v1436 = vld [vmem:[%s12 + $0x7b0] sm:$0xff]
        %v1437 = vld [vmem:[%s12 + $0x7b8] sm:$0xff]
        %v1438 = vld [vmem:[%s12 + $0x7c0] sm:$0xff]
        %v1439 = vld [vmem:[%s12 + $0x7c8] sm:$0xff]
        %v1440 = vld [vmem:[%s12 + $0x7d0] sm:$0xff]
        %v1441 = vld [vmem:[%s12 + $0x7d8] sm:$0xff]
        %v1442 = vld [vmem:[%s12 + $0x7e0] sm:$0xff]
        %v1443 = vld [vmem:[%s12 + $0x7e8] sm:$0xff]
        %v1444 = vld [vmem:[%s12 + $0x7f0] sm:$0xff]
        %v1445 = vld [vmem:[%s12 + $0x7f8] sm:$0xff]
        %1446 = vmatprep.subr.mxu0 %v1311
        %1447 = vmatpush1.msra.mxu0 %v1310
        %1448 = vmatprep.subr.mxu0 %v1303
        %1449 = vmatpush1.msra.mxu0 %v1302
        %1450 = vmatprep.subr.mxu0 %v1295
        %1451 = vmatpush1.msra.mxu0 %v1294
        %1452 = vmatprep.subr.mxu0 %v1287
        %1453 = vmatpush1.msra.mxu0 %v1286
        %1454 = vmatprep.subr.mxu0 %v1279
        %1455 = vmatpush1.msra.mxu0 %v1278
        %1456 = vmatprep.subr.mxu0 %v1271
        %1457 = vmatpush1.msra.mxu0 %v1270
        %1458 = vmatprep.subr.mxu0 %v1263
        %1459 = vmatpush1.msra.mxu0 %v1262
        %1460 = vmatprep.subr.mxu0 %v1255
        %1461 = vmatpush1.msra.mxu0 %v1254
        %1462 = vmatprep.subr.mxu0 %v1247
        %1463 = vmatpush1.msra.mxu0 %v1246
        %1464 = vmatprep.subr.mxu0 %v1239
        %1465 = vmatpush1.msra.mxu0 %v1238
        %1466 = vmatprep.subr.mxu0 %v1231
        %1467 = vmatpush1.msra.mxu0 %v1230
        %1468 = vmatprep.subr.mxu0 %v1223
        %1469 = vmatpush1.msra.mxu0 %v1222
        %1470 = vmatprep.subr.mxu0 %v1215
        %1471 = vmatpush1.msra.mxu0 %v1214
        %1472 = vmatprep.subr.mxu0 %v1207
        %1473 = vmatpush1.msra.mxu0 %v1206
        %1474 = vmatprep.subr.mxu0 %v1199
        %1475 = vmatpush1.msra.mxu0 %v1198
        %1476 = vmatprep.subr.mxu0 %v1191
        %1477 = vmatpush1.msra.mxu0 %v1190
        %1478 = vmatprep.subr.mxu0 %v1439
        %1479 = vmatpush2.msra.mxu0 %v1438
        %1480 = vmatprep.subr.mxu0 %v1431
        %1481 = vmatpush2.msra.mxu0 %v1430
        %1482 = vmatprep.subr.mxu0 %v1423
        %1483 = vmatpush2.msra.mxu0 %v1422
        %1484 = vmatprep.subr.mxu0 %v1415
        %1485 = vmatpush2.msra.mxu0 %v1414
        %1486 = vmatprep.subr.mxu0 %v1407
        %1487 = vmatpush2.msra.mxu0 %v1406
        %1488 = vmatprep.subr.mxu0 %v1399
        %1489 = vmatpush2.msra.mxu0 %v1398
        %1490 = vmatprep.subr.mxu0 %v1391
        %1491 = vmatpush2.msra.mxu0 %v1390
        %1492 = vmatprep.subr.mxu0 %v1383
        %1493 = vmatpush2.msra.mxu0 %v1382
        %1494 = vmatprep.subr.mxu0 %v1375
        %1495 = vmatpush2.msra.mxu0 %v1374
        %1496 = vmatprep.subr.mxu0 %v1367
        %1497 = vmatpush2.msra.mxu0 %v1366
        %1498 = vmatprep.subr.mxu0 %v1359
        %1499 = vmatpush2.msra.mxu0 %v1358
        %1500 = vmatprep.subr.mxu0 %v1351
        %1501 = vmatpush2.msra.mxu0 %v1350
        %1502 = vmatprep.subr.mxu0 %v1343
        %1503 = vmatpush2.msra.mxu0 %v1342
        %1504 = vmatprep.subr.mxu0 %v1335
        %1505 = vmatpush2.msra.mxu0 %v1334
        %1506 = vmatprep.subr.mxu0 %v1327
        %1507 = vmatpush2.msra.mxu0 %v1326
        %1508 = vmatprep.subr.mxu0 %v1319
        %1509 = vmatpush2.msra.mxu0 %v1318
        %1510 = vmatprep.mubr.f32.mxu0 %v1187
        %1511 = vmatmul.mubr.f32.gmra.mxu0 %v1186
        %v1512 = vpop.f32.mrf.mxu0
        %v1513 = vadd.f32 0.0, %v1512
        %v1514 = vpop.f32.mrf.mxu0
        %v1515 = vadd.f32 0.0, %v1514
        %1516 = vdwg.mxu0
        %1517 = vmatprep.subr.mxu0 %v1313
        %1518 = vmatpush1.msra.mxu0 %v1312
        %1519 = vmatprep.subr.mxu0 %v1305
        %1520 = vmatpush1.msra.mxu0 %v1304
        %1521 = vmatprep.subr.mxu0 %v1297
        %1522 = vmatpush1.msra.mxu0 %v1296
        %1523 = vmatprep.subr.mxu0 %v1289
        %1524 = vmatpush1.msra.mxu0 %v1288
        %1525 = vmatprep.subr.mxu0 %v1281
        %1526 = vmatpush1.msra.mxu0 %v1280
        %1527 = vmatprep.subr.mxu0 %v1273
        %1528 = vmatpush1.msra.mxu0 %v1272
        %1529 = vmatprep.subr.mxu0 %v1265
        %1530 = vmatpush1.msra.mxu0 %v1264
        %1531 = vmatprep.subr.mxu0 %v1257
        %1532 = vmatpush1.msra.mxu0 %v1256
        %1533 = vmatprep.subr.mxu0 %v1249
        %1534 = vmatpush1.msra.mxu0 %v1248
        %1535 = vmatprep.subr.mxu0 %v1241
        %1536 = vmatpush1.msra.mxu0 %v1240
        %1537 = vmatprep.subr.mxu0 %v1233
        %1538 = vmatpush1.msra.mxu0 %v1232
        %1539 = vmatprep.subr.mxu0 %v1225
        %1540 = vmatpush1.msra.mxu0 %v1224
        %1541 = vmatprep.subr.mxu0 %v1217
        %1542 = vmatpush1.msra.mxu0 %v1216
        %1543 = vmatprep.subr.mxu0 %v1209
        %1544 = vmatpush1.msra.mxu0 %v1208
        %1545 = vmatprep.subr.mxu0 %v1201
        %1546 = vmatpush1.msra.mxu0 %v1200
        %1547 = vmatprep.subr.mxu0 %v1193
        %1548 = vmatpush1.msra.mxu0 %v1192
        %1549 = vmatprep.subr.mxu0 %v1441
        %1550 = vmatpush2.msra.mxu0 %v1440
        %1551 = vmatprep.subr.mxu0 %v1433
        %1552 = vmatpush2.msra.mxu0 %v1432
        %1553 = vmatprep.subr.mxu0 %v1425
        %1554 = vmatpush2.msra.mxu0 %v1424
        %1555 = vmatprep.subr.mxu0 %v1417
        %1556 = vmatpush2.msra.mxu0 %v1416
        %1557 = vmatprep.subr.mxu0 %v1409
        %1558 = vmatpush2.msra.mxu0 %v1408
        %1559 = vmatprep.subr.mxu0 %v1401
        %1560 = vmatpush2.msra.mxu0 %v1400
        %1561 = vmatprep.subr.mxu0 %v1393
        %1562 = vmatpush2.msra.mxu0 %v1392
        %1563 = vmatprep.subr.mxu0 %v1385
        %1564 = vmatpush2.msra.mxu0 %v1384
        %1565 = vmatprep.subr.mxu0 %v1377
        %1566 = vmatpush2.msra.mxu0 %v1376
        %1567 = vmatprep.subr.mxu0 %v1369
        %1568 = vmatpush2.msra.mxu0 %v1368
        %1569 = vmatprep.subr.mxu0 %v1361
        %1570 = vmatpush2.msra.mxu0 %v1360
        %1571 = vmatprep.subr.mxu0 %v1353
        %1572 = vmatpush2.msra.mxu0 %v1352
        %1573 = vmatprep.subr.mxu0 %v1345
        %1574 = vmatpush2.msra.mxu0 %v1344
        %1575 = vmatprep.subr.mxu0 %v1337
        %1576 = vmatpush2.msra.mxu0 %v1336
        %1577 = vmatprep.subr.mxu0 %v1329
        %1578 = vmatpush2.msra.mxu0 %v1328
        %1579 = vmatprep.subr.mxu0 %v1321
        %1580 = vmatpush2.msra.mxu0 %v1320
        %1581 = vmatprep.mubr.f32.mxu0 %v1187
        %1582 = vmatmul.mubr.f32.gmra.mxu0 %v1186
        %v1583 = vpop.f32.mrf.mxu0
        %v1584 = vadd.f32 0.0, %v1583
        %v1585 = vpop.f32.mrf.mxu0
        %v1586 = vadd.f32 0.0, %v1585
        %1587 = vdwg.mxu0
        %1588 = vmatprep.subr.mxu0 %v1315
        %1589 = vmatpush1.msra.mxu0 %v1314
        %1590 = vmatprep.subr.mxu0 %v1307
        %1591 = vmatpush1.msra.mxu0 %v1306
        %1592 = vmatprep.subr.mxu0 %v1299
        %1593 = vmatpush1.msra.mxu0 %v1298
        %1594 = vmatprep.subr.mxu0 %v1291
        %1595 = vmatpush1.msra.mxu0 %v1290
        %1596 = vmatprep.subr.mxu0 %v1283
        %1597 = vmatpush1.msra.mxu0 %v1282
        %1598 = vmatprep.subr.mxu0 %v1275
        %1599 = vmatpush1.msra.mxu0 %v1274
        %1600 = vmatprep.subr.mxu0 %v1267
        %1601 = vmatpush1.msra.mxu0 %v1266
        %1602 = vmatprep.subr.mxu0 %v1259
        %1603 = vmatpush1.msra.mxu0 %v1258
        %1604 = vmatprep.subr.mxu0 %v1251
        %1605 = vmatpush1.msra.mxu0 %v1250
        %1606 = vmatprep.subr.mxu0 %v1243
        %1607 = vmatpush1.msra.mxu0 %v1242
        %1608 = vmatprep.subr.mxu0 %v1235
        %1609 = vmatpush1.msra.mxu0 %v1234
        %1610 = vmatprep.subr.mxu0 %v1227
        %1611 = vmatpush1.msra.mxu0 %v1226
        %1612 = vmatprep.subr.mxu0 %v1219
        %1613 = vmatpush1.msra.mxu0 %v1218
        %1614 = vmatprep.subr.mxu0 %v1211
        %1615 = vmatpush1.msra.mxu0 %v1210
        %1616 = vmatprep.subr.mxu0 %v1203
        %1617 = vmatpush1.msra.mxu0 %v1202
        %1618 = vmatprep.subr.mxu0 %v1195
        %1619 = vmatpush1.msra.mxu0 %v1194
        %1620 = vmatprep.subr.mxu0 %v1443
        %1621 = vmatpush2.msra.mxu0 %v1442
        %1622 = vmatprep.subr.mxu0 %v1435
        %1623 = vmatpush2.msra.mxu0 %v1434
        %1624 = vmatprep.subr.mxu0 %v1427
        %1625 = vmatpush2.msra.mxu0 %v1426
        %1626 = vmatprep.subr.mxu0 %v1419
        %1627 = vmatpush2.msra.mxu0 %v1418
        %1628 = vmatprep.subr.mxu0 %v1411
        %1629 = vmatpush2.msra.mxu0 %v1410
        %1630 = vmatprep.subr.mxu0 %v1403
        %1631 = vmatpush2.msra.mxu0 %v1402
        %1632 = vmatprep.subr.mxu0 %v1395
        %1633 = vmatpush2.msra.mxu0 %v1394
        %1634 = vmatprep.subr.mxu0 %v1387
        %1635 = vmatpush2.msra.mxu0 %v1386
        %1636 = vmatprep.subr.mxu0 %v1379
        %1637 = vmatpush2.msra.mxu0 %v1378
        %1638 = vmatprep.subr.mxu0 %v1371
        %1639 = vmatpush2.msra.mxu0 %v1370
        %1640 = vmatprep.subr.mxu0 %v1363
        %1641 = vmatpush2.msra.mxu0 %v1362
        %1642 = vmatprep.subr.mxu0 %v1355
        %1643 = vmatpush2.msra.mxu0 %v1354
        %1644 = vmatprep.subr.mxu0 %v1347
        %1645 = vmatpush2.msra.mxu0 %v1346
        %1646 = vmatprep.subr.mxu0 %v1339
        %1647 = vmatpush2.msra.mxu0 %v1338
        %1648 = vmatprep.subr.mxu0 %v1331
        %1649 = vmatpush2.msra.mxu0 %v1330
        %1650 = vmatprep.subr.mxu0 %v1323
        %1651 = vmatpush2.msra.mxu0 %v1322
        %1652 = vmatprep.mubr.f32.mxu0 %v1187
        %1653 = vmatmul.mubr.f32.gmra.mxu0 %v1186
        %v1654 = vpop.f32.mrf.mxu0
        %v1655 = vadd.f32 0.0, %v1654
        %v1656 = vpop.f32.mrf.mxu0
        %v1657 = vadd.f32 0.0, %v1656
        %1658 = vdwg.mxu0
        %1659 = vmatprep.subr.mxu0 %v1317
        %1660 = vmatpush1.msra.mxu0 %v1316
        %1661 = vmatprep.subr.mxu0 %v1309
        %1662 = vmatpush1.msra.mxu0 %v1308
        %1663 = vmatprep.subr.mxu0 %v1301
        %1664 = vmatpush1.msra.mxu0 %v1300
        %1665 = vmatprep.subr.mxu0 %v1293
        %1666 = vmatpush1.msra.mxu0 %v1292
        %1667 = vmatprep.subr.mxu0 %v1285
        %1668 = vmatpush1.msra.mxu0 %v1284
        %1669 = vmatprep.subr.mxu0 %v1277
        %1670 = vmatpush1.msra.mxu0 %v1276
        %1671 = vmatprep.subr.mxu0 %v1269
        %1672 = vmatpush1.msra.mxu0 %v1268
        %1673 = vmatprep.subr.mxu0 %v1261
        %1674 = vmatpush1.msra.mxu0 %v1260
        %1675 = vmatprep.subr.mxu0 %v1253
        %1676 = vmatpush1.msra.mxu0 %v1252
        %1677 = vmatprep.subr.mxu0 %v1245
        %1678 = vmatpush1.msra.mxu0 %v1244
        %1679 = vmatprep.subr.mxu0 %v1237
        %1680 = vmatpush1.msra.mxu0 %v1236
        %1681 = vmatprep.subr.mxu0 %v1229
        %1682 = vmatpush1.msra.mxu0 %v1228
        %1683 = vmatprep.subr.mxu0 %v1221
        %1684 = vmatpush1.msra.mxu0 %v1220
        %1685 = vmatprep.subr.mxu0 %v1213
        %1686 = vmatpush1.msra.mxu0 %v1212
        %1687 = vmatprep.subr.mxu0 %v1205
        %1688 = vmatpush1.msra.mxu0 %v1204
        %1689 = vmatprep.subr.mxu0 %v1197
        %1690 = vmatpush1.msra.mxu0 %v1196
        %1691 = vmatprep.subr.mxu0 %v1445
        %1692 = vmatpush2.msra.mxu0 %v1444
        %1693 = vmatprep.subr.mxu0 %v1437
        %1694 = vmatpush2.msra.mxu0 %v1436
        %1695 = vmatprep.subr.mxu0 %v1429
        %1696 = vmatpush2.msra.mxu0 %v1428
        %1697 = vmatprep.subr.mxu0 %v1421
        %1698 = vmatpush2.msra.mxu0 %v1420
        %1699 = vmatprep.subr.mxu0 %v1413
        %1700 = vmatpush2.msra.mxu0 %v1412
        %1701 = vmatprep.subr.mxu0 %v1405
        %1702 = vmatpush2.msra.mxu0 %v1404
        %1703 = vmatprep.subr.mxu0 %v1397
        %1704 = vmatpush2.msra.mxu0 %v1396
        %1705 = vmatprep.subr.mxu0 %v1389
        %1706 = vmatpush2.msra.mxu0 %v1388
        %1707 = vmatprep.subr.mxu0 %v1381
        %1708 = vmatpush2.msra.mxu0 %v1380
        %1709 = vmatprep.subr.mxu0 %v1373
        %1710 = vmatpush2.msra.mxu0 %v1372
        %1711 = vmatprep.subr.mxu0 %v1365
        %1712 = vmatpush2.msra.mxu0 %v1364
        %1713 = vmatprep.subr.mxu0 %v1357
        %1714 = vmatpush2.msra.mxu0 %v1356
        %1715 = vmatprep.subr.mxu0 %v1349
        %1716 = vmatpush2.msra.mxu0 %v1348
        %1717 = vmatprep.subr.mxu0 %v1341
        %1718 = vmatpush2.msra.mxu0 %v1340
        %1719 = vmatprep.subr.mxu0 %v1333
        %1720 = vmatpush2.msra.mxu0 %v1332
        %1721 = vmatprep.subr.mxu0 %v1325
        %1722 = vmatpush2.msra.mxu0 %v1324
        %1723 = vmatprep.mubr.f32.mxu0 %v1187
        %1724 = vmatmul.mubr.f32.gmra.mxu0 %v1186
        %v1725 = vpop.f32.mrf.mxu0
        %v1726 = vadd.f32 0.0, %v1725
        %v1727 = vpop.f32.mrf.mxu0
        %v1728 = vadd.f32 0.0, %v1727
        %1729 = vdwg.mxu0
        %v1738 = vcombine.low %v1513, %v1515
        %v1739 = vcombine.low %v1584, %v1586
        %v1741 = vunpack.c.l.s4 1983009808
        %v1742 = vunpack.c.0.s8 %v1741
        %v1743 = vlaneseq
        %v1744 = vshrl.u32 %v1743, 7
        %v1745 = vsub.s32 %v1742, %v1744
        %v1746 = vrot.slane %v1738, %v1745
        %v1748 = vunpack.c.l.s4 1983009808
        %v1749 = vunpack.c.0.s8 %v1748
        %v1750 = vlaneseq
        %v1751 = vshrl.u32 %v1750, 7
        %v1752 = vsub.s32 %v1749, %v1751
        %v1753 = vrot.slane %v1739, %v1752
        %v1754 = vcombine.low %v1746, %v1753
        %v1755 = vcombine.low %v1655, %v1657
        %v1756 = vcombine.low %v1726, %v1728
        %v1758 = vunpack.c.l.s4 1983009808
        %v1759 = vunpack.c.0.s8 %v1758
        %v1760 = vlaneseq
        %v1761 = vshrl.u32 %v1760, 7
        %v1762 = vsub.s32 %v1759, %v1761
        %v1763 = vrot.slane %v1755, %v1762
        %v1765 = vunpack.c.l.s4 1983009808
        %v1766 = vunpack.c.0.s8 %v1765
        %v1767 = vlaneseq
        %v1768 = vshrl.u32 %v1767, 7
        %v1769 = vsub.s32 %v1766, %v1768
        %v1770 = vrot.slane %v1756, %v1769
        %v1771 = vcombine.low %v1763, %v1770
        %v1774 = vadd.f32 %v1188, %v1754
        %v1775 = vadd.f32 %v1189, %v1771
        %v1776 = vld [vmem:[%s13] sm:$0xff]
        %v1777 = vld [vmem:[%s13 + $0x8] sm:$0xff]
        %v1778 = vld [vmem:[%s13 + $0x10] sm:$0xff]
        %v1779 = vld [vmem:[%s13 + $0x18] sm:$0xff]
        %v1780 = vld [vmem:[%s13 + $0x20] sm:$0xff]
        %v1781 = vld [vmem:[%s13 + $0x28] sm:$0xff]
        %v1782 = vld [vmem:[%s13 + $0x30] sm:$0xff]
        %v1783 = vld [vmem:[%s13 + $0x38] sm:$0xff]
        %v1784 = vld [vmem:[%s13 + $0x40] sm:$0xff]
        %v1785 = vld [vmem:[%s13 + $0x48] sm:$0xff]
        %v1786 = vld [vmem:[%s13 + $0x50] sm:$0xff]
        %v1787 = vld [vmem:[%s13 + $0x58] sm:$0xff]
        %v1788 = vld [vmem:[%s13 + $0x60] sm:$0xff]
        %v1789 = vld [vmem:[%s13 + $0x68] sm:$0xff]
        %v1790 = vld [vmem:[%s13 + $0x70] sm:$0xff]
        %v1791 = vld [vmem:[%s13 + $0x78] sm:$0xff]
        %v1792 = vld [vmem:[%s13 + $0x80] sm:$0xff]
        %v1793 = vld [vmem:[%s13 + $0x88] sm:$0xff]
        %v1794 = vld [vmem:[%s13 + $0x90] sm:$0xff]
        %v1795 = vld [vmem:[%s13 + $0x98] sm:$0xff]
        %v1796 = vld [vmem:[%s13 + $0xa0] sm:$0xff]
        %v1797 = vld [vmem:[%s13 + $0xa8] sm:$0xff]
        %v1798 = vld [vmem:[%s13 + $0xb0] sm:$0xff]
        %v1799 = vld [vmem:[%s13 + $0xb8] sm:$0xff]
        %v1800 = vld [vmem:[%s13 + $0xc0] sm:$0xff]
        %v1801 = vld [vmem:[%s13 + $0xc8] sm:$0xff]
        %v1802 = vld [vmem:[%s13 + $0xd0] sm:$0xff]
        %v1803 = vld [vmem:[%s13 + $0xd8] sm:$0xff]
        %v1804 = vld [vmem:[%s13 + $0xe0] sm:$0xff]
        %v1805 = vld [vmem:[%s13 + $0xe8] sm:$0xff]
        %v1806 = vld [vmem:[%s13 + $0xf0] sm:$0xff]
        %v1807 = vld [vmem:[%s13 + $0xf8] sm:$0xff]
        %v1808 = vld [vmem:[%s13 + $0x100] sm:$0xff]
        %v1809 = vld [vmem:[%s13 + $0x108] sm:$0xff]
        %v1810 = vld [vmem:[%s13 + $0x110] sm:$0xff]
        %v1811 = vld [vmem:[%s13 + $0x118] sm:$0xff]
        %v1812 = vld [vmem:[%s13 + $0x120] sm:$0xff]
        %v1813 = vld [vmem:[%s13 + $0x128] sm:$0xff]
        %v1814 = vld [vmem:[%s13 + $0x130] sm:$0xff]
        %v1815 = vld [vmem:[%s13 + $0x138] sm:$0xff]
        %v1816 = vld [vmem:[%s13 + $0x140] sm:$0xff]
        %v1817 = vld [vmem:[%s13 + $0x148] sm:$0xff]
        %v1818 = vld [vmem:[%s13 + $0x150] sm:$0xff]
        %v1819 = vld [vmem:[%s13 + $0x158] sm:$0xff]
        %v1820 = vld [vmem:[%s13 + $0x160] sm:$0xff]
        %v1821 = vld [vmem:[%s13 + $0x168] sm:$0xff]
        %v1822 = vld [vmem:[%s13 + $0x170] sm:$0xff]
        %v1823 = vld [vmem:[%s13 + $0x178] sm:$0xff]
        %v1824 = vld [vmem:[%s13 + $0x180] sm:$0xff]
        %v1825 = vld [vmem:[%s13 + $0x188] sm:$0xff]
        %v1826 = vld [vmem:[%s13 + $0x190] sm:$0xff]
        %v1827 = vld [vmem:[%s13 + $0x198] sm:$0xff]
        %v1828 = vld [vmem:[%s13 + $0x1a0] sm:$0xff]
        %v1829 = vld [vmem:[%s13 + $0x1a8] sm:$0xff]
        %v1830 = vld [vmem:[%s13 + $0x1b0] sm:$0xff]
        %v1831 = vld [vmem:[%s13 + $0x1b8] sm:$0xff]
        %v1832 = vld [vmem:[%s13 + $0x1c0] sm:$0xff]
        %v1833 = vld [vmem:[%s13 + $0x1c8] sm:$0xff]
        %v1834 = vld [vmem:[%s13 + $0x1d0] sm:$0xff]
        %v1835 = vld [vmem:[%s13 + $0x1d8] sm:$0xff]
        %v1836 = vld [vmem:[%s13 + $0x1e0] sm:$0xff]
        %v1837 = vld [vmem:[%s13 + $0x1e8] sm:$0xff]
        %v1838 = vld [vmem:[%s13 + $0x1f0] sm:$0xff]
        %v1839 = vld [vmem:[%s13 + $0x1f8] sm:$0xff]
        %v1840 = vld [vmem:[%s13 + $0x200] sm:$0xff]
        %v1841 = vld [vmem:[%s13 + $0x208] sm:$0xff]
        %v1842 = vld [vmem:[%s13 + $0x210] sm:$0xff]
        %v1843 = vld [vmem:[%s13 + $0x218] sm:$0xff]
        %v1844 = vld [vmem:[%s13 + $0x220] sm:$0xff]
        %v1845 = vld [vmem:[%s13 + $0x228] sm:$0xff]
        %v1846 = vld [vmem:[%s13 + $0x230] sm:$0xff]
        %v1847 = vld [vmem:[%s13 + $0x238] sm:$0xff]
        %v1848 = vld [vmem:[%s13 + $0x240] sm:$0xff]
        %v1849 = vld [vmem:[%s13 + $0x248] sm:$0xff]
        %v1850 = vld [vmem:[%s13 + $0x250] sm:$0xff]
        %v1851 = vld [vmem:[%s13 + $0x258] sm:$0xff]
        %v1852 = vld [vmem:[%s13 + $0x260] sm:$0xff]
        %v1853 = vld [vmem:[%s13 + $0x268] sm:$0xff]
        %v1854 = vld [vmem:[%s13 + $0x270] sm:$0xff]
        %v1855 = vld [vmem:[%s13 + $0x278] sm:$0xff]
        %v1856 = vld [vmem:[%s13 + $0x280] sm:$0xff]
        %v1857 = vld [vmem:[%s13 + $0x288] sm:$0xff]
        %v1858 = vld [vmem:[%s13 + $0x290] sm:$0xff]
        %v1859 = vld [vmem:[%s13 + $0x298] sm:$0xff]
        %v1860 = vld [vmem:[%s13 + $0x2a0] sm:$0xff]
        %v1861 = vld [vmem:[%s13 + $0x2a8] sm:$0xff]
        %v1862 = vld [vmem:[%s13 + $0x2b0] sm:$0xff]
        %v1863 = vld [vmem:[%s13 + $0x2b8] sm:$0xff]
        %v1864 = vld [vmem:[%s13 + $0x2c0] sm:$0xff]
        %v1865 = vld [vmem:[%s13 + $0x2c8] sm:$0xff]
        %v1866 = vld [vmem:[%s13 + $0x2d0] sm:$0xff]
        %v1867 = vld [vmem:[%s13 + $0x2d8] sm:$0xff]
        %v1868 = vld [vmem:[%s13 + $0x2e0] sm:$0xff]
        %v1869 = vld [vmem:[%s13 + $0x2e8] sm:$0xff]
        %v1870 = vld [vmem:[%s13 + $0x2f0] sm:$0xff]
        %v1871 = vld [vmem:[%s13 + $0x2f8] sm:$0xff]
        %v1872 = vld [vmem:[%s13 + $0x300] sm:$0xff]
        %v1873 = vld [vmem:[%s13 + $0x308] sm:$0xff]
        %v1874 = vld [vmem:[%s13 + $0x310] sm:$0xff]
        %v1875 = vld [vmem:[%s13 + $0x318] sm:$0xff]
        %v1876 = vld [vmem:[%s13 + $0x320] sm:$0xff]
        %v1877 = vld [vmem:[%s13 + $0x328] sm:$0xff]
        %v1878 = vld [vmem:[%s13 + $0x330] sm:$0xff]
        %v1879 = vld [vmem:[%s13 + $0x338] sm:$0xff]
        %v1880 = vld [vmem:[%s13 + $0x340] sm:$0xff]
        %v1881 = vld [vmem:[%s13 + $0x348] sm:$0xff]
        %v1882 = vld [vmem:[%s13 + $0x350] sm:$0xff]
        %v1883 = vld [vmem:[%s13 + $0x358] sm:$0xff]
        %v1884 = vld [vmem:[%s13 + $0x360] sm:$0xff]
        %v1885 = vld [vmem:[%s13 + $0x368] sm:$0xff]
        %v1886 = vld [vmem:[%s13 + $0x370] sm:$0xff]
        %v1887 = vld [vmem:[%s13 + $0x378] sm:$0xff]
        %v1888 = vld [vmem:[%s13 + $0x380] sm:$0xff]
        %v1889 = vld [vmem:[%s13 + $0x388] sm:$0xff]
        %v1890 = vld [vmem:[%s13 + $0x390] sm:$0xff]
        %v1891 = vld [vmem:[%s13 + $0x398] sm:$0xff]
        %v1892 = vld [vmem:[%s13 + $0x3a0] sm:$0xff]
        %v1893 = vld [vmem:[%s13 + $0x3a8] sm:$0xff]
        %v1894 = vld [vmem:[%s13 + $0x3b0] sm:$0xff]
        %v1895 = vld [vmem:[%s13 + $0x3b8] sm:$0xff]
        %v1896 = vld [vmem:[%s13 + $0x3c0] sm:$0xff]
        %v1897 = vld [vmem:[%s13 + $0x3c8] sm:$0xff]
        %v1898 = vld [vmem:[%s13 + $0x3d0] sm:$0xff]
        %v1899 = vld [vmem:[%s13 + $0x3d8] sm:$0xff]
        %v1900 = vld [vmem:[%s13 + $0x3e0] sm:$0xff]
        %v1901 = vld [vmem:[%s13 + $0x3e8] sm:$0xff]
        %v1902 = vld [vmem:[%s13 + $0x3f0] sm:$0xff]
        %v1903 = vld [vmem:[%s13 + $0x3f8] sm:$0xff]
        %v1904 = vld [vmem:[%s13 + $0x400] sm:$0xff]
        %v1905 = vld [vmem:[%s13 + $0x408] sm:$0xff]
        %v1906 = vld [vmem:[%s13 + $0x410] sm:$0xff]
        %v1907 = vld [vmem:[%s13 + $0x418] sm:$0xff]
        %v1908 = vld [vmem:[%s13 + $0x420] sm:$0xff]
        %v1909 = vld [vmem:[%s13 + $0x428] sm:$0xff]
        %v1910 = vld [vmem:[%s13 + $0x430] sm:$0xff]
        %v1911 = vld [vmem:[%s13 + $0x438] sm:$0xff]
        %v1912 = vld [vmem:[%s13 + $0x440] sm:$0xff]
        %v1913 = vld [vmem:[%s13 + $0x448] sm:$0xff]
        %v1914 = vld [vmem:[%s13 + $0x450] sm:$0xff]
        %v1915 = vld [vmem:[%s13 + $0x458] sm:$0xff]
        %v1916 = vld [vmem:[%s13 + $0x460] sm:$0xff]
        %v1917 = vld [vmem:[%s13 + $0x468] sm:$0xff]
        %v1918 = vld [vmem:[%s13 + $0x470] sm:$0xff]
        %v1919 = vld [vmem:[%s13 + $0x478] sm:$0xff]
        %v1920 = vld [vmem:[%s13 + $0x480] sm:$0xff]
        %v1921 = vld [vmem:[%s13 + $0x488] sm:$0xff]
        %v1922 = vld [vmem:[%s13 + $0x490] sm:$0xff]
        %v1923 = vld [vmem:[%s13 + $0x498] sm:$0xff]
        %v1924 = vld [vmem:[%s13 + $0x4a0] sm:$0xff]
        %v1925 = vld [vmem:[%s13 + $0x4a8] sm:$0xff]
        %v1926 = vld [vmem:[%s13 + $0x4b0] sm:$0xff]
        %v1927 = vld [vmem:[%s13 + $0x4b8] sm:$0xff]
        %v1928 = vld [vmem:[%s13 + $0x4c0] sm:$0xff]
        %v1929 = vld [vmem:[%s13 + $0x4c8] sm:$0xff]
        %v1930 = vld [vmem:[%s13 + $0x4d0] sm:$0xff]
        %v1931 = vld [vmem:[%s13 + $0x4d8] sm:$0xff]
        %v1932 = vld [vmem:[%s13 + $0x4e0] sm:$0xff]
        %v1933 = vld [vmem:[%s13 + $0x4e8] sm:$0xff]
        %v1934 = vld [vmem:[%s13 + $0x4f0] sm:$0xff]
        %v1935 = vld [vmem:[%s13 + $0x4f8] sm:$0xff]
        %v1936 = vld [vmem:[%s13 + $0x500] sm:$0xff]
        %v1937 = vld [vmem:[%s13 + $0x508] sm:$0xff]
        %v1938 = vld [vmem:[%s13 + $0x510] sm:$0xff]
        %v1939 = vld [vmem:[%s13 + $0x518] sm:$0xff]
        %v1940 = vld [vmem:[%s13 + $0x520] sm:$0xff]
        %v1941 = vld [vmem:[%s13 + $0x528] sm:$0xff]
        %v1942 = vld [vmem:[%s13 + $0x530] sm:$0xff]
        %v1943 = vld [vmem:[%s13 + $0x538] sm:$0xff]
        %v1944 = vld [vmem:[%s13 + $0x540] sm:$0xff]
        %v1945 = vld [vmem:[%s13 + $0x548] sm:$0xff]
        %v1946 = vld [vmem:[%s13 + $0x550] sm:$0xff]
        %v1947 = vld [vmem:[%s13 + $0x558] sm:$0xff]
        %v1948 = vld [vmem:[%s13 + $0x560] sm:$0xff]
        %v1949 = vld [vmem:[%s13 + $0x568] sm:$0xff]
        %v1950 = vld [vmem:[%s13 + $0x570] sm:$0xff]
        %v1951 = vld [vmem:[%s13 + $0x578] sm:$0xff]
        %v1952 = vld [vmem:[%s13 + $0x580] sm:$0xff]
        %v1953 = vld [vmem:[%s13 + $0x588] sm:$0xff]
        %v1954 = vld [vmem:[%s13 + $0x590] sm:$0xff]
        %v1955 = vld [vmem:[%s13 + $0x598] sm:$0xff]
        %v1956 = vld [vmem:[%s13 + $0x5a0] sm:$0xff]
        %v1957 = vld [vmem:[%s13 + $0x5a8] sm:$0xff]
        %v1958 = vld [vmem:[%s13 + $0x5b0] sm:$0xff]
        %v1959 = vld [vmem:[%s13 + $0x5b8] sm:$0xff]
        %v1960 = vld [vmem:[%s13 + $0x5c0] sm:$0xff]
        %v1961 = vld [vmem:[%s13 + $0x5c8] sm:$0xff]
        %v1962 = vld [vmem:[%s13 + $0x5d0] sm:$0xff]
        %v1963 = vld [vmem:[%s13 + $0x5d8] sm:$0xff]
        %v1964 = vld [vmem:[%s13 + $0x5e0] sm:$0xff]
        %v1965 = vld [vmem:[%s13 + $0x5e8] sm:$0xff]
        %v1966 = vld [vmem:[%s13 + $0x5f0] sm:$0xff]
        %v1967 = vld [vmem:[%s13 + $0x5f8] sm:$0xff]
        %v1968 = vld [vmem:[%s13 + $0x600] sm:$0xff]
        %v1969 = vld [vmem:[%s13 + $0x608] sm:$0xff]
        %v1970 = vld [vmem:[%s13 + $0x610] sm:$0xff]
        %v1971 = vld [vmem:[%s13 + $0x618] sm:$0xff]
        %v1972 = vld [vmem:[%s13 + $0x620] sm:$0xff]
        %v1973 = vld [vmem:[%s13 + $0x628] sm:$0xff]
        %v1974 = vld [vmem:[%s13 + $0x630] sm:$0xff]
        %v1975 = vld [vmem:[%s13 + $0x638] sm:$0xff]
        %v1976 = vld [vmem:[%s13 + $0x640] sm:$0xff]
        %v1977 = vld [vmem:[%s13 + $0x648] sm:$0xff]
        %v1978 = vld [vmem:[%s13 + $0x650] sm:$0xff]
        %v1979 = vld [vmem:[%s13 + $0x658] sm:$0xff]
        %v1980 = vld [vmem:[%s13 + $0x660] sm:$0xff]
        %v1981 = vld [vmem:[%s13 + $0x668] sm:$0xff]
        %v1982 = vld [vmem:[%s13 + $0x670] sm:$0xff]
        %v1983 = vld [vmem:[%s13 + $0x678] sm:$0xff]
        %v1984 = vld [vmem:[%s13 + $0x680] sm:$0xff]
        %v1985 = vld [vmem:[%s13 + $0x688] sm:$0xff]
        %v1986 = vld [vmem:[%s13 + $0x690] sm:$0xff]
        %v1987 = vld [vmem:[%s13 + $0x698] sm:$0xff]
        %v1988 = vld [vmem:[%s13 + $0x6a0] sm:$0xff]
        %v1989 = vld [vmem:[%s13 + $0x6a8] sm:$0xff]
        %v1990 = vld [vmem:[%s13 + $0x6b0] sm:$0xff]
        %v1991 = vld [vmem:[%s13 + $0x6b8] sm:$0xff]
        %v1992 = vld [vmem:[%s13 + $0x6c0] sm:$0xff]
        %v1993 = vld [vmem:[%s13 + $0x6c8] sm:$0xff]
        %v1994 = vld [vmem:[%s13 + $0x6d0] sm:$0xff]
        %v1995 = vld [vmem:[%s13 + $0x6d8] sm:$0xff]
        %v1996 = vld [vmem:[%s13 + $0x6e0] sm:$0xff]
        %v1997 = vld [vmem:[%s13 + $0x6e8] sm:$0xff]
        %v1998 = vld [vmem:[%s13 + $0x6f0] sm:$0xff]
        %v1999 = vld [vmem:[%s13 + $0x6f8] sm:$0xff]
        %v2000 = vld [vmem:[%s13 + $0x700] sm:$0xff]
        %v2001 = vld [vmem:[%s13 + $0x708] sm:$0xff]
        %v2002 = vld [vmem:[%s13 + $0x710] sm:$0xff]
        %v2003 = vld [vmem:[%s13 + $0x718] sm:$0xff]
        %v2004 = vld [vmem:[%s13 + $0x720] sm:$0xff]
        %v2005 = vld [vmem:[%s13 + $0x728] sm:$0xff]
        %v2006 = vld [vmem:[%s13 + $0x730] sm:$0xff]
        %v2007 = vld [vmem:[%s13 + $0x738] sm:$0xff]
        %v2008 = vld [vmem:[%s13 + $0x740] sm:$0xff]
        %v2009 = vld [vmem:[%s13 + $0x748] sm:$0xff]
        %v2010 = vld [vmem:[%s13 + $0x750] sm:$0xff]
        %v2011 = vld [vmem:[%s13 + $0x758] sm:$0xff]
        %v2012 = vld [vmem:[%s13 + $0x760] sm:$0xff]
        %v2013 = vld [vmem:[%s13 + $0x768] sm:$0xff]
        %v2014 = vld [vmem:[%s13 + $0x770] sm:$0xff]
        %v2015 = vld [vmem:[%s13 + $0x778] sm:$0xff]
        %v2016 = vld [vmem:[%s13 + $0x780] sm:$0xff]
        %v2017 = vld [vmem:[%s13 + $0x788] sm:$0xff]
        %v2018 = vld [vmem:[%s13 + $0x790] sm:$0xff]
        %v2019 = vld [vmem:[%s13 + $0x798] sm:$0xff]
        %v2020 = vld [vmem:[%s13 + $0x7a0] sm:$0xff]
        %v2021 = vld [vmem:[%s13 + $0x7a8] sm:$0xff]
        %v2022 = vld [vmem:[%s13 + $0x7b0] sm:$0xff]
        %v2023 = vld [vmem:[%s13 + $0x7b8] sm:$0xff]
        %v2024 = vld [vmem:[%s13 + $0x7c0] sm:$0xff]
        %v2025 = vld [vmem:[%s13 + $0x7c8] sm:$0xff]
        %v2026 = vld [vmem:[%s13 + $0x7d0] sm:$0xff]
        %v2027 = vld [vmem:[%s13 + $0x7d8] sm:$0xff]
        %v2028 = vld [vmem:[%s13 + $0x7e0] sm:$0xff]
        %v2029 = vld [vmem:[%s13 + $0x7e8] sm:$0xff]
        %v2030 = vld [vmem:[%s13 + $0x7f0] sm:$0xff]
        %v2031 = vld [vmem:[%s13 + $0x7f8] sm:$0xff]
        %2032 = vmatprep.subr.mxu0 %v1897
        %2033 = vmatpush1.msra.mxu0 %v1896
        %2034 = vmatprep.subr.mxu0 %v1889
        %2035 = vmatpush1.msra.mxu0 %v1888
        %2036 = vmatprep.subr.mxu0 %v1881
        %2037 = vmatpush1.msra.mxu0 %v1880
        %2038 = vmatprep.subr.mxu0 %v1873
        %2039 = vmatpush1.msra.mxu0 %v1872
        %2040 = vmatprep.subr.mxu0 %v1865
        %2041 = vmatpush1.msra.mxu0 %v1864
        %2042 = vmatprep.subr.mxu0 %v1857
        %2043 = vmatpush1.msra.mxu0 %v1856
        %2044 = vmatprep.subr.mxu0 %v1849
        %2045 = vmatpush1.msra.mxu0 %v1848
        %2046 = vmatprep.subr.mxu0 %v1841
        %2047 = vmatpush1.msra.mxu0 %v1840
        %2048 = vmatprep.subr.mxu0 %v1833
        %2049 = vmatpush1.msra.mxu0 %v1832
        %2050 = vmatprep.subr.mxu0 %v1825
        %2051 = vmatpush1.msra.mxu0 %v1824
        %2052 = vmatprep.subr.mxu0 %v1817
        %2053 = vmatpush1.msra.mxu0 %v1816
        %2054 = vmatprep.subr.mxu0 %v1809
        %2055 = vmatpush1.msra.mxu0 %v1808
        %2056 = vmatprep.subr.mxu0 %v1801
        %2057 = vmatpush1.msra.mxu0 %v1800
        %2058 = vmatprep.subr.mxu0 %v1793
        %2059 = vmatpush1.msra.mxu0 %v1792
        %2060 = vmatprep.subr.mxu0 %v1785
        %2061 = vmatpush1.msra.mxu0 %v1784
        %2062 = vmatprep.subr.mxu0 %v1777
        %2063 = vmatpush1.msra.mxu0 %v1776
        %2064 = vmatprep.subr.mxu0 %v2025
        %2065 = vmatpush2.msra.mxu0 %v2024
        %2066 = vmatprep.subr.mxu0 %v2017
        %2067 = vmatpush2.msra.mxu0 %v2016
        %2068 = vmatprep.subr.mxu0 %v2009
        %2069 = vmatpush2.msra.mxu0 %v2008
        %2070 = vmatprep.subr.mxu0 %v2001
        %2071 = vmatpush2.msra.mxu0 %v2000
        %2072 = vmatprep.subr.mxu0 %v1993
        %2073 = vmatpush2.msra.mxu0 %v1992
        %2074 = vmatprep.subr.mxu0 %v1985
        %2075 = vmatpush2.msra.mxu0 %v1984
        %2076 = vmatprep.subr.mxu0 %v1977
        %2077 = vmatpush2.msra.mxu0 %v1976
        %2078 = vmatprep.subr.mxu0 %v1969
        %2079 = vmatpush2.msra.mxu0 %v1968
        %2080 = vmatprep.subr.mxu0 %v1961
        %2081 = vmatpush2.msra.mxu0 %v1960
        %2082 = vmatprep.subr.mxu0 %v1953
        %2083 = vmatpush2.msra.mxu0 %v1952
        %2084 = vmatprep.subr.mxu0 %v1945
        %2085 = vmatpush2.msra.mxu0 %v1944
        %2086 = vmatprep.subr.mxu0 %v1937
        %2087 = vmatpush2.msra.mxu0 %v1936
        %2088 = vmatprep.subr.mxu0 %v1929
        %2089 = vmatpush2.msra.mxu0 %v1928
        %2090 = vmatprep.subr.mxu0 %v1921
        %2091 = vmatpush2.msra.mxu0 %v1920
        %2092 = vmatprep.subr.mxu0 %v1913
        %2093 = vmatpush2.msra.mxu0 %v1912
        %2094 = vmatprep.subr.mxu0 %v1905
        %2095 = vmatpush2.msra.mxu0 %v1904
        %2096 = vmatprep.mubr.f32.mxu0 %v565
        %2097 = vmatmul.mubr.f32.gmra.mxu0 %v564
        %v2098 = vpop.f32.mrf.mxu0
        %v2099 = vadd.f32 0.0, %v2098
        %v2100 = vpop.f32.mrf.mxu0
        %v2101 = vadd.f32 0.0, %v2100
        %2102 = vdwg.mxu0
        %2103 = vmatprep.subr.mxu0 %v1899
        %2104 = vmatpush1.msra.mxu0 %v1898
        %2105 = vmatprep.subr.mxu0 %v1891
        %2106 = vmatpush1.msra.mxu0 %v1890
        %2107 = vmatprep.subr.mxu0 %v1883
        %2108 = vmatpush1.msra.mxu0 %v1882
        %2109 = vmatprep.subr.mxu0 %v1875
        %2110 = vmatpush1.msra.mxu0 %v1874
        %2111 = vmatprep.subr.mxu0 %v1867
        %2112 = vmatpush1.msra.mxu0 %v1866
        %2113 = vmatprep.subr.mxu0 %v1859
        %2114 = vmatpush1.msra.mxu0 %v1858
        %2115 = vmatprep.subr.mxu0 %v1851
        %2116 = vmatpush1.msra.mxu0 %v1850
        %2117 = vmatprep.subr.mxu0 %v1843
        %2118 = vmatpush1.msra.mxu0 %v1842
        %2119 = vmatprep.subr.mxu0 %v1835
        %2120 = vmatpush1.msra.mxu0 %v1834
        %2121 = vmatprep.subr.mxu0 %v1827
        %2122 = vmatpush1.msra.mxu0 %v1826
        %2123 = vmatprep.subr.mxu0 %v1819
        %2124 = vmatpush1.msra.mxu0 %v1818
        %2125 = vmatprep.subr.mxu0 %v1811
        %2126 = vmatpush1.msra.mxu0 %v1810
        %2127 = vmatprep.subr.mxu0 %v1803
        %2128 = vmatpush1.msra.mxu0 %v1802
        %2129 = vmatprep.subr.mxu0 %v1795
        %2130 = vmatpush1.msra.mxu0 %v1794
        %2131 = vmatprep.subr.mxu0 %v1787
        %2132 = vmatpush1.msra.mxu0 %v1786
        %2133 = vmatprep.subr.mxu0 %v1779
        %2134 = vmatpush1.msra.mxu0 %v1778
        %2135 = vmatprep.subr.mxu0 %v2027
        %2136 = vmatpush2.msra.mxu0 %v2026
        %2137 = vmatprep.subr.mxu0 %v2019
        %2138 = vmatpush2.msra.mxu0 %v2018
        %2139 = vmatprep.subr.mxu0 %v2011
        %2140 = vmatpush2.msra.mxu0 %v2010
        %2141 = vmatprep.subr.mxu0 %v2003
        %2142 = vmatpush2.msra.mxu0 %v2002
        %2143 = vmatprep.subr.mxu0 %v1995
        %2144 = vmatpush2.msra.mxu0 %v1994
        %2145 = vmatprep.subr.mxu0 %v1987
        %2146 = vmatpush2.msra.mxu0 %v1986
        %2147 = vmatprep.subr.mxu0 %v1979
        %2148 = vmatpush2.msra.mxu0 %v1978
        %2149 = vmatprep.subr.mxu0 %v1971
        %2150 = vmatpush2.msra.mxu0 %v1970
        %2151 = vmatprep.subr.mxu0 %v1963
        %2152 = vmatpush2.msra.mxu0 %v1962
        %2153 = vmatprep.subr.mxu0 %v1955
        %2154 = vmatpush2.msra.mxu0 %v1954
        %2155 = vmatprep.subr.mxu0 %v1947
        %2156 = vmatpush2.msra.mxu0 %v1946
        %2157 = vmatprep.subr.mxu0 %v1939
        %2158 = vmatpush2.msra.mxu0 %v1938
        %2159 = vmatprep.subr.mxu0 %v1931
        %2160 = vmatpush2.msra.mxu0 %v1930
        %2161 = vmatprep.subr.mxu0 %v1923
        %2162 = vmatpush2.msra.mxu0 %v1922
        %2163 = vmatprep.subr.mxu0 %v1915
        %2164 = vmatpush2.msra.mxu0 %v1914
        %2165 = vmatprep.subr.mxu0 %v1907
        %2166 = vmatpush2.msra.mxu0 %v1906
        %2167 = vmatprep.mubr.f32.mxu0 %v565
        %2168 = vmatmul.mubr.f32.gmra.mxu0 %v564
        %v2169 = vpop.f32.mrf.mxu0
        %v2170 = vadd.f32 0.0, %v2169
        %v2171 = vpop.f32.mrf.mxu0
        %v2172 = vadd.f32 0.0, %v2171
        %2173 = vdwg.mxu0
        %2174 = vmatprep.subr.mxu0 %v1901
        %2175 = vmatpush1.msra.mxu0 %v1900
        %2176 = vmatprep.subr.mxu0 %v1893
        %2177 = vmatpush1.msra.mxu0 %v1892
        %2178 = vmatprep.subr.mxu0 %v1885
        %2179 = vmatpush1.msra.mxu0 %v1884
        %2180 = vmatprep.subr.mxu0 %v1877
        %2181 = vmatpush1.msra.mxu0 %v1876
        %2182 = vmatprep.subr.mxu0 %v1869
        %2183 = vmatpush1.msra.mxu0 %v1868
        %2184 = vmatprep.subr.mxu0 %v1861
        %2185 = vmatpush1.msra.mxu0 %v1860
        %2186 = vmatprep.subr.mxu0 %v1853
        %2187 = vmatpush1.msra.mxu0 %v1852
        %2188 = vmatprep.subr.mxu0 %v1845
        %2189 = vmatpush1.msra.mxu0 %v1844
        %2190 = vmatprep.subr.mxu0 %v1837
        %2191 = vmatpush1.msra.mxu0 %v1836
        %2192 = vmatprep.subr.mxu0 %v1829
        %2193 = vmatpush1.msra.mxu0 %v1828
        %2194 = vmatprep.subr.mxu0 %v1821
        %2195 = vmatpush1.msra.mxu0 %v1820
        %2196 = vmatprep.subr.mxu0 %v1813
        %2197 = vmatpush1.msra.mxu0 %v1812
        %2198 = vmatprep.subr.mxu0 %v1805
        %2199 = vmatpush1.msra.mxu0 %v1804
        %2200 = vmatprep.subr.mxu0 %v1797
        %2201 = vmatpush1.msra.mxu0 %v1796
        %2202 = vmatprep.subr.mxu0 %v1789
        %2203 = vmatpush1.msra.mxu0 %v1788
        %2204 = vmatprep.subr.mxu0 %v1781
        %2205 = vmatpush1.msra.mxu0 %v1780
        %2206 = vmatprep.subr.mxu0 %v2029
        %2207 = vmatpush2.msra.mxu0 %v2028
        %2208 = vmatprep.subr.mxu0 %v2021
        %2209 = vmatpush2.msra.mxu0 %v2020
        %2210 = vmatprep.subr.mxu0 %v2013
        %2211 = vmatpush2.msra.mxu0 %v2012
        %2212 = vmatprep.subr.mxu0 %v2005
        %2213 = vmatpush2.msra.mxu0 %v2004
        %2214 = vmatprep.subr.mxu0 %v1997
        %2215 = vmatpush2.msra.mxu0 %v1996
        %2216 = vmatprep.subr.mxu0 %v1989
        %2217 = vmatpush2.msra.mxu0 %v1988
        %2218 = vmatprep.subr.mxu0 %v1981
        %2219 = vmatpush2.msra.mxu0 %v1980
        %2220 = vmatprep.subr.mxu0 %v1973
        %2221 = vmatpush2.msra.mxu0 %v1972
        %2222 = vmatprep.subr.mxu0 %v1965
        %2223 = vmatpush2.msra.mxu0 %v1964
        %2224 = vmatprep.subr.mxu0 %v1957
        %2225 = vmatpush2.msra.mxu0 %v1956
        %2226 = vmatprep.subr.mxu0 %v1949
        %2227 = vmatpush2.msra.mxu0 %v1948
        %2228 = vmatprep.subr.mxu0 %v1941
        %2229 = vmatpush2.msra.mxu0 %v1940
        %2230 = vmatprep.subr.mxu0 %v1933
        %2231 = vmatpush2.msra.mxu0 %v1932
        %2232 = vmatprep.subr.mxu0 %v1925
        %2233 = vmatpush2.msra.mxu0 %v1924
        %2234 = vmatprep.subr.mxu0 %v1917
        %2235 = vmatpush2.msra.mxu0 %v1916
        %2236 = vmatprep.subr.mxu0 %v1909
        %2237 = vmatpush2.msra.mxu0 %v1908
        %2238 = vmatprep.mubr.f32.mxu0 %v565
        %2239 = vmatmul.mubr.f32.gmra.mxu0 %v564
        %v2240 = vpop.f32.mrf.mxu0
        %v2241 = vadd.f32 0.0, %v2240
        %v2242 = vpop.f32.mrf.mxu0
        %v2243 = vadd.f32 0.0, %v2242
        %2244 = vdwg.mxu0
        %2245 = vmatprep.subr.mxu0 %v1903
        %2246 = vmatpush1.msra.mxu0 %v1902
        %2247 = vmatprep.subr.mxu0 %v1895
        %2248 = vmatpush1.msra.mxu0 %v1894
        %2249 = vmatprep.subr.mxu0 %v1887
        %2250 = vmatpush1.msra.mxu0 %v1886
        %2251 = vmatprep.subr.mxu0 %v1879
        %2252 = vmatpush1.msra.mxu0 %v1878
        %2253 = vmatprep.subr.mxu0 %v1871
        %2254 = vmatpush1.msra.mxu0 %v1870
        %2255 = vmatprep.subr.mxu0 %v1863
        %2256 = vmatpush1.msra.mxu0 %v1862
        %2257 = vmatprep.subr.mxu0 %v1855
        %2258 = vmatpush1.msra.mxu0 %v1854
        %2259 = vmatprep.subr.mxu0 %v1847
        %2260 = vmatpush1.msra.mxu0 %v1846
        %2261 = vmatprep.subr.mxu0 %v1839
        %2262 = vmatpush1.msra.mxu0 %v1838
        %2263 = vmatprep.subr.mxu0 %v1831
        %2264 = vmatpush1.msra.mxu0 %v1830
        %2265 = vmatprep.subr.mxu0 %v1823
        %2266 = vmatpush1.msra.mxu0 %v1822
        %2267 = vmatprep.subr.mxu0 %v1815
        %2268 = vmatpush1.msra.mxu0 %v1814
        %2269 = vmatprep.subr.mxu0 %v1807
        %2270 = vmatpush1.msra.mxu0 %v1806
        %2271 = vmatprep.subr.mxu0 %v1799
        %2272 = vmatpush1.msra.mxu0 %v1798
        %2273 = vmatprep.subr.mxu0 %v1791
        %2274 = vmatpush1.msra.mxu0 %v1790
        %2275 = vmatprep.subr.mxu0 %v1783
        %2276 = vmatpush1.msra.mxu0 %v1782
        %2277 = vmatprep.subr.mxu0 %v2031
        %2278 = vmatpush2.msra.mxu0 %v2030
        %2279 = vmatprep.subr.mxu0 %v2023
        %2280 = vmatpush2.msra.mxu0 %v2022
        %2281 = vmatprep.subr.mxu0 %v2015
        %2282 = vmatpush2.msra.mxu0 %v2014
        %2283 = vmatprep.subr.mxu0 %v2007
        %2284 = vmatpush2.msra.mxu0 %v2006
        %2285 = vmatprep.subr.mxu0 %v1999
        %2286 = vmatpush2.msra.mxu0 %v1998
        %2287 = vmatprep.subr.mxu0 %v1991
        %2288 = vmatpush2.msra.mxu0 %v1990
        %2289 = vmatprep.subr.mxu0 %v1983
        %2290 = vmatpush2.msra.mxu0 %v1982
        %2291 = vmatprep.subr.mxu0 %v1975
        %2292 = vmatpush2.msra.mxu0 %v1974
        %2293 = vmatprep.subr.mxu0 %v1967
        %2294 = vmatpush2.msra.mxu0 %v1966
        %2295 = vmatprep.subr.mxu0 %v1959
        %2296 = vmatpush2.msra.mxu0 %v1958
        %2297 = vmatprep.subr.mxu0 %v1951
        %2298 = vmatpush2.msra.mxu0 %v1950
        %2299 = vmatprep.subr.mxu0 %v1943
        %2300 = vmatpush2.msra.mxu0 %v1942
        %2301 = vmatprep.subr.mxu0 %v1935
        %2302 = vmatpush2.msra.mxu0 %v1934
        %2303 = vmatprep.subr.mxu0 %v1927
        %2304 = vmatpush2.msra.mxu0 %v1926
        %2305 = vmatprep.subr.mxu0 %v1919
        %2306 = vmatpush2.msra.mxu0 %v1918
        %2307 = vmatprep.subr.mxu0 %v1911
        %2308 = vmatpush2.msra.mxu0 %v1910
        %2309 = vmatprep.mubr.f32.mxu0 %v565
        %2310 = vmatmul.mubr.f32.gmra.mxu0 %v564
        %v2311 = vpop.f32.mrf.mxu0
        %v2312 = vadd.f32 0.0, %v2311
        %v2313 = vpop.f32.mrf.mxu0
        %v2314 = vadd.f32 0.0, %v2313
        %2315 = vdwg.mxu0
        %v2324 = vcombine.low %v2099, %v2101
        %v2325 = vcombine.low %v2170, %v2172
        %v2327 = vunpack.c.l.s4 1983009808
        %v2328 = vunpack.c.0.s8 %v2327
        %v2329 = vlaneseq
        %v2330 = vshrl.u32 %v2329, 7
        %v2331 = vsub.s32 %v2328, %v2330
        %v2332 = vrot.slane %v2324, %v2331
        %v2334 = vunpack.c.l.s4 1983009808
        %v2335 = vunpack.c.0.s8 %v2334
        %v2336 = vlaneseq
        %v2337 = vshrl.u32 %v2336, 7
        %v2338 = vsub.s32 %v2335, %v2337
        %v2339 = vrot.slane %v2325, %v2338
        %v2340 = vcombine.low %v2332, %v2339
        %v2341 = vcombine.low %v2241, %v2243
        %v2342 = vcombine.low %v2312, %v2314
        %v2344 = vunpack.c.l.s4 1983009808
        %v2345 = vunpack.c.0.s8 %v2344
        %v2346 = vlaneseq
        %v2347 = vshrl.u32 %v2346, 7
        %v2348 = vsub.s32 %v2345, %v2347
        %v2349 = vrot.slane %v2341, %v2348
        %v2351 = vunpack.c.l.s4 1983009808
        %v2352 = vunpack.c.0.s8 %v2351
        %v2353 = vlaneseq
        %v2354 = vshrl.u32 %v2353, 7
        %v2355 = vsub.s32 %v2352, %v2354
        %v2356 = vrot.slane %v2342, %v2355
        %v2357 = vcombine.low %v2349, %v2356
        %v2360 = vadd.f32 %v1774, %v2340
        %v2361 = vadd.f32 %v1775, %v2357
        %v2362 = vsub.f32 0.0, %v2360
        %v2363 = vmul.f32 %v2362, 1.442695
        %v2364 = vpow.pop %v2363
        %v2365 = vadd.f32 %v2364, 1.0
        %v2366 = vrcp.pop %v2365
        %v2367 = vmul.f32 1.0, %v2366
        %v2369 = vrot.slane %v2360, 4
        %v2371 = vsub.f32 0.0, %v2369
        %v2372 = vmul.f32 %v2371, 1.442695
        %v2373 = vpow.pop %v2372
        %v2374 = vadd.f32 %v2373, 1.0
        %v2375 = vrcp.pop %v2374
        %v2376 = vmul.f32 1.0, %v2375
        %v2377 = vtanh.pop %v2361
        %v2379 = vrot.slane %v2361, 4
        %v2381 = vsub.f32 0.0, %v2379
        %v2382 = vmul.f32 %v2381, 1.442695
        %v2383 = vpow.pop %v2382
        %v2384 = vadd.f32 %v2383, 1.0
        %v2385 = vrcp.pop %v2384
        %v2386 = vmul.f32 1.0, %v2385
        %v2387 = vmul.f32 %v2376, %v517
        %v2388 = vmul.f32 %v2367, %v2377
        %v2389 = vadd.f32 %v2387, %v2388
        %v2390 = vtanh.pop %v2389
        %v2391 = vmul.f32 %v2386, %v2390
        %v2392 = vld [vmem:[%s0] sm:$0x3]
        %v2393 = vstv %s32
        %vm2394 = vcmp.gt.s32.totalorder %v2392, %v2393
        %v2395 = vsel %vm2394, 1, 0
        %2396 = vset.pattern.permute.xlu0 0
        %2397 = vperm.xlu0 %2396, %v2395
        %v2398 = vpop.permute.xlu0 %2397
        %vm2399 = vcmp.eq.s32.totalorder %v2398, 1
        %v2402 = vunpack.c.l.s4 1983009808
        %v2403 = vunpack.c.0.s8 %v2402
        %v2404 = vlaneseq
        %v2405 = vshrl.u32 %v2404, 7
        %v2406 = vsub.s32 %v2403, %v2405
        %v2407 = vrot.slane %v2391, %v2406
        %v2408 = vcombine.high %v2407, %v2407
        %v2411 = vsel %vm2399, %v2407, %v564
        %v2412 = vsel %vm2399, %v2408, %v565
        %v2415 = vcombine.low %v2411, %v2412
        %v2417 = vunpack.c.l.s4 1983009808
        %v2418 = vunpack.c.0.s8 %v2417
        %v2419 = vlaneseq
        %v2420 = vshrl.u32 %v2419, 7
        %v2421 = vsub.s32 %v2418, %v2420
        %v2422 = vrot.slane %v2415, %v2421
        %2424 = vst [vmem:[#allocation2] sm:$0xf] %v2422
        %v2427 = vunpack.c.l.s4 1983009808
        %v2428 = vunpack.c.0.s8 %v2427
        %v2429 = vlaneseq
        %v2430 = vshrl.u32 %v2429, 7
        %v2431 = vsub.s32 %v2428, %v2430
        %v2432 = vrot.slane %v2389, %v2431
        %v2433 = vcombine.high %v2432, %v2432
        %v2438 = vunpack.c.l.s4 1983009808
        %v2439 = vunpack.c.0.s8 %v2438
        %v2440 = vlaneseq
        %v2441 = vshrl.u32 %v2440, 7
        %v2442 = vsub.s32 %v2439, %v2441
        %v2443 = vrot.slane %v517, %v2442
        %v2444 = vcombine.high %v2443, %v2443
        %v2447 = vsel %vm2399, %v2432, %v2443
        %v2448 = vsel %vm2399, %v2433, %v2444
        %v2451 = vcombine.low %v2447, %v2448
        %v2453 = vunpack.c.l.s4 1983009808
        %v2454 = vunpack.c.0.s8 %v2453
        %v2455 = vlaneseq
        %v2456 = vshrl.u32 %v2455, 7
        %v2457 = vsub.s32 %v2454, %v2456
        %v2458 = vrot.slane %v2451, %v2457
        %2460 = vst [vmem:[#allocation3] sm:$0xf] %v2458
        %2461 = vst [vmem:[%s507] sm:$0xf] %v2391
        %v2462 = vsel %vm742, %v943, %v852
        %v2464 = vsel %vm2399, %v2462, 0.0
        %2465 = vst.msk [vmem:[%s497] sm:$0x3] %vm745, %v2464
        %p2466 = scmp.lt.s32.totalorder %s32, 6
        %s2467 = scalar_select %p2466, %s32, 6
        %s2468 = smul.addr %s2467, 2
        %s2469 = smul.addr %s2468, 2
        %s2470 = scalar_lea.vmem %s14, %s2469
        %s2471 = sand.u32 %s365, 1
        %s2472 = scalar_lea.sflag [#allocation6], %s2471
        %s2473 = sand.u32 %s365, 1
        %s2474 = smul.addr %s2473, 2
        %s2475 = scalar_lea.vmem [#allocation5], %s2474
        // Predicated region
        $region81: #{decoder_forward.8} parent=75 // pred_check
          %p2476 = pneg %p349
        $region82: #{decoder_forward.8} parent=75 // pred_check_branch
          %2478 = sbr.rel (%p2476) target = $region84
        $region83: #{decoder_forward.8} parent=75 // pred_region
          _
        $region84: #{decoder_forward.8} parent=75 // pred_fallthru
          _
        // Predicated region
        $region85: #{decoder_forward.8} parent=75 // pred_check
          %p2479 = pneg %p375
        $region86: #{decoder_forward.8} parent=75 // pred_check_branch
          %2481 = sbr.rel (%p2479) target = $region88
        $region87: #{decoder_forward.8} parent=75 // pred_region
          %s2483 = ssub.s32 32, 32
          %2484 = vsyncadd %s2472, %s2483
          %s2485 = smul.addr %s32, 32
          %s2486 = scalar_lea.hbm %s15, %s2485
          %s2488 = sshll.u32 %s2475, 4
          %s2489 = int_to_ptr.vmem [resolvable:$true] %s2488
          %2491 = dma.vmem_to_hbm [thread:$0]  %s2489, 32, %s2486, %s2472
        $region88: #{decoder_forward.8} parent=75 // pred_fallthru
          _
      $region76: #{decoder_forward.8} parent=5 // pred_fallthru
        _
      %p2492 = scmp.le.s32.totalorder 2, %s27
      // Predicated region
      $region89: #{decoder_forward.8} parent=5 // pred_check
        %p2493 = pneg %p2492
      $region90: #{decoder_forward.8} parent=5 // pred_check_branch
        %2495 = sbr.rel (%p2493) target = $region92
      $region91: #{decoder_forward.8} parent=5 // pred_region
        %s2496 = ssub.s32 %s27, 2
        // Predicated region
        $region93: #{decoder_forward.8} parent=91 // pred_check
          %p2497 = pneg %p355
        $region94: #{decoder_forward.8} parent=91 // pred_check_branch
          %2499 = sbr.rel (%p2497) target = $region96
        $region95: #{decoder_forward.8} parent=91 // pred_region
          %p2500 = scmp.lt.s32.totalorder %s33, 6
          %s2501 = scalar_select %p2500, %s33, 6
          %s2502 = smul.addr %s2501, 2
          %s2503 = smul.addr %s2502, 2
          %s2504 = scalar_lea.vmem %s14, %s2503
        $region96: #{decoder_forward.8} parent=91 // pred_fallthru
          _
        // Predicated region
        $region97: #{decoder_forward.8} parent=91 // pred_check
          %p2505 = pneg %p381
        $region98: #{decoder_forward.8} parent=91 // pred_check_branch
          %2507 = sbr.rel (%p2505) target = $region100
        $region99: #{decoder_forward.8} parent=91 // pred_region
          %s2508 = sand.u32 %s366, 1
          %s2509 = scalar_lea.sflag [#allocation6], %s2508
          %s2510 = sand.u32 %s366, 1
          %s2511 = smul.addr %s2510, 2
          %s2512 = scalar_lea.vmem [#allocation5], %s2511
          %2513 = dma.done %s2509, 32
        $region100: #{decoder_forward.8} parent=91 // pred_fallthru
          _
      $region92: #{decoder_forward.8} parent=5 // pred_fallthru
        _
    $region6: #{decoder_forward.8} parent=1 // loop_footer
      %s31 = sadd.s32 1, %s27
    $region7: #{decoder_forward.8} parent=1 // loop_footer_branch
      %26 = sbr.rel target = $region3
    $region8: #{decoder_forward.8} parent=1 // loop_exit
      _
    %2514 = vsyncpa [#allocation6], 1
    %s2515 = scalar_lea.sflag [#allocation6], 1
    %2516 = vsyncpa %s2515, 1

</llo_original>
